<compile_context>
chip_gen: v7x
topology: tpu7x:2x2x1
jax: 0.10.0
libtpu: 0.0.40
codegen_flags: <defaults>
</compile_context>

<pallas_src>
import jax
import jax.numpy as jnp
from jax.experimental import pallas as pl
from jax.experimental.pallas import tpu as pltpu

# ---- module hyper-parameters (defaults of Regression.__init__) --------------
CURRENT_DIM = 2
PM_TEMP_DIM = 1
PM_MATERIAL_DIM = 10
HIDDEN_INIT = 6
NUM_HIDDEN = 3
H_OTHER1, H_OUT1 = 25, 50
H_OTHER2, H_OUT2 = 35, 50
OUT_DIM1, OUT_DIM2 = 1, 1
NUM_FTRS = 1000
NUM_FTRS_PAD = 1024                        # pad 1000 -> 1024 lanes

PARAM_DIM = CURRENT_DIM + PM_TEMP_DIM      # `parameters` input width = 3
PARPM_DIM = PARAM_DIM + PM_MATERIAL_DIM    # merged parameters+pm_material = 13
PARPM_PAD = 16                             # padded to 16 for aligned packing
CONCAT_DIM = HIDDEN_INIT + PARPM_DIM       # 19

BN_EPS = 1e-5
LANE = 128

# packed head-weight buffer row layout (all blocks lane-padded to 128)
R_AH = 0                      # (128,128): layer-a weight for h   (valid 6 x 60)
R_APM = R_AH + LANE           # ( 16,128): layer-a weight for parpm (valid 13 x 60)
R_B = R_APM + PARPM_PAD       # (128,128): layer-b block-diag     (valid 60 x 60)
R_C = R_B + LANE              # (128,128): layer-c block-diag     (valid 60 x 100)
R_O = R_C + LANE              # (128,128): merged output heads    (valid 100 x 2)
WPACK_ROWS = R_O + LANE       # 528


# ---- Pallas kernel -----------------------------------------------------------
def fused_regression_kernel(img_ref, wft_ref, w1_ref, wpack_ref, bpack_ref,
                            parpm_ref, y_ref, acc_ref):
    """K-tiled backbone-stub matmul (bf16 operands, f32 accumulator) with the
    whole MLP head fused into the last K step."""
    k = pl.program_id(0)

    @pl.when(k == 0)
    def _():
        acc_ref[...] = jnp.zeros_like(acc_ref)

    # feats accumulation: (B, TILE_K) bf16 @ (TILE_K, 1024) bf16 -> f32
    acc_ref[...] += jnp.dot(img_ref[...], wft_ref[...],
                            preferred_element_type=jnp.float32)

    @pl.when(k == pl.num_programs(0) - 1)
    def _():
        relu = lambda v: jnp.maximum(v, 0.0)
        dot = lambda a, b: jnp.dot(a, b, preferred_element_type=jnp.float32)

        # linear1 (+bn1 folded, + backbone bias folded): bf16 operands, f32 acc.
        feats = acc_ref[...].astype(jnp.bfloat16)                       # (B, 1024)
        h = relu(dot(feats, w1_ref[...]) + bpack_ref[0:1, :])            # (B, 128)

        # torch.cat([h, parameters, pm_material], 1) @ W  ==  h @ W_h + parpm @ W_pm.
        # branch1 / branch2 merged: layer-a concatenated along outputs,
        # layers b/c block-diagonal, output heads lane-merged into 2 columns.
        a = relu(dot(h, wpack_ref[R_AH:R_AH + LANE, :])
                 + dot(parpm_ref[...], wpack_ref[R_APM:R_APM + PARPM_PAD, :])
                 + bpack_ref[1:2, :])                                    # (B, 128)
        b = relu(dot(a, wpack_ref[R_B:R_B + LANE, :]) + bpack_ref[2:3, :])
        c = relu(dot(b, wpack_ref[R_C:R_C + LANE, :]) + bpack_ref[3:4, :])
        y = dot(c, wpack_ref[R_O:R_O + LANE, :]) + bpack_ref[4:5, :]     # (B, 128)
        y_ref[...] = y[:, 0:2]                                           # y1 | y2


# ---- parameter construction (deterministic, synthetic) ----------------------
def _linear(key, fan_in, fan_out):
    kw, kb = jax.random.split(key)
    bound = 1.0 / (fan_in ** 0.5)
    w = jax.random.uniform(kw, (fan_in, fan_out), jnp.float32, -bound, bound)
    b = jax.random.uniform(kb, (1, fan_out), jnp.float32, -bound, bound)
    return w, b


def _bn(dim, idx):
    # deterministic, non-trivial inference-mode BatchNorm statistics
    r = jnp.arange(dim, dtype=jnp.float32) / dim
    gamma = 1.0 + 0.05 * r
    beta = 0.01 * (idx + 1) * jnp.ones((dim,), jnp.float32)
    mean = 0.02 * r
    var = 1.0 + 0.1 * r
    return gamma, beta, mean, var


def _fold_bn(w, b, gamma, beta, mean, var):
    scale = gamma / jnp.sqrt(var + BN_EPS)
    return w * scale[None, :], (b - mean[None, :]) * scale[None, :] + beta[None, :]


def _pad2(a, rows, cols):
    return jnp.pad(a, ((0, rows - a.shape[0]), (0, cols - a.shape[1])))


def _make_branch(kbase, hidden_other, hidden_out, bn_off):
    dims = [hidden_other] * NUM_HIDDEN
    dims[-1] = hidden_out
    ks = jax.random.split(kbase, NUM_HIDDEN)
    ws, bs = [], []
    d_in = CONCAT_DIM
    for i, d_out in enumerate(dims):
        w, b = _linear(ks[i], d_in, d_out)
        w, b = _fold_bn(w, b, *_bn(d_out, bn_off + i))   # eval-mode BN folded (exact)
        ws.append(w)
        bs.append(b)
        d_in = d_out
    return ws, bs


def _choose_k_tiling(k):
    """Large, lane-dense K tiles: one tile if K fits 2048, else 2048-wide tiles."""
    k_pad = ((k + 255) // 256) * 256
    if k_pad <= 2048:
        return k_pad, k_pad
    k_pad = ((k + 2047) // 2048) * 2048
    return k_pad, 2048


def make_params(key, img_flat_dim):
    keys = jax.random.split(key, 8)
    p = {}
    k_pad, tile_k = _choose_k_tiling(img_flat_dim)
    p["k_pad"], p["tile_k"] = k_pad, tile_k

    # ---- backbone stub (stands in for prediction_model.model) ----
    wft, bft = _linear(keys[0], img_flat_dim, NUM_FTRS)          # (K,1000),(1,1000)
    p["ref_wft"], p["ref_bft"] = wft, bft
    p["wft"] = _pad2(wft, k_pad, NUM_FTRS_PAD).astype(jnp.bfloat16)   # bf16 stream

    # ---- linear1 + bn1 folded; backbone bias folded into b1 (exact) ----
    w1, b1 = _linear(keys[1], NUM_FTRS, HIDDEN_INIT)
    w1f, b1f = _fold_bn(w1, b1, *_bn(HIDDEN_INIT, 0))
    p["ref_w1"], p["ref_b1"] = w1f, b1f
    b1_tot = b1f + bft @ w1f                                     # (1, 6)
    p["w1p"] = _pad2(w1f, NUM_FTRS_PAD, LANE).astype(jnp.bfloat16)    # (1024, 128)

    # ---- two branch MLPs (bn folded) + output heads ----
    ws1, bs1 = _make_branch(keys[2], H_OTHER1, H_OUT1, 1)
    ws2, bs2 = _make_branch(keys[3], H_OTHER2, H_OUT2, 4)
    wo1, bo1 = _linear(keys[4], H_OUT1, OUT_DIM1)
    wo2, bo2 = _linear(keys[5], H_OUT2, OUT_DIM2)
    p["ref_ws1"], p["ref_bs1"] = ws1, bs1
    p["ref_ws2"], p["ref_bs2"] = ws2, bs2
    p["ref_wo1"], p["ref_bo1"] = wo1, bo1
    p["ref_wo2"], p["ref_bo2"] = wo2, bo2

    # ---- merge branches & pack the head into two flat buffers ----
    s0 = HIDDEN_INIT
    d_b = H_OTHER1 + H_OTHER2          # 60
    d_c = H_OUT1 + H_OUT2              # 100

    wA_h = jnp.concatenate([ws1[0][:s0], ws2[0][:s0]], axis=1)       # (6, 60)
    wA_pm = jnp.concatenate([ws1[0][s0:], ws2[0][s0:]], axis=1)      # (13, 60)
    bA = jnp.concatenate([bs1[0], bs2[0]], axis=1)                   # (1, 60)

    wB = jnp.zeros((d_b, d_b), jnp.float32)
    wB = wB.at[:H_OTHER1, :H_OTHER1].set(ws1[1]).at[H_OTHER1:, H_OTHER1:].set(ws2[1])
    bB = jnp.concatenate([bs1[1], bs2[1]], axis=1)                   # (1, 60)

    wC = jnp.zeros((d_b, d_c), jnp.float32)
    wC = wC.at[:H_OTHER1, :H_OUT1].set(ws1[2]).at[H_OTHER1:, H_OUT1:].set(ws2[2])
    bC = jnp.concatenate([bs1[2], bs2[2]], axis=1)                   # (1, 100)

    wO = jnp.zeros((d_c, 2), jnp.float32)
    wO = wO.at[:H_OUT1, 0:1].set(wo1).at[H_OUT1:, 1:2].set(wo2)      # (100, 2)
    bO = jnp.concatenate([bo1, bo2], axis=1)                         # (1, 2)

    p["wpack"] = jnp.concatenate([
        _pad2(wA_h, LANE, LANE),
        _pad2(wA_pm, PARPM_PAD, LANE),
        _pad2(wB, LANE, LANE),
        _pad2(wC, LANE, LANE),
        _pad2(wO, LANE, LANE),
    ], axis=0)                                                       # (528, 128) f32

    p["bpack"] = jnp.concatenate([
        _pad2(b1_tot, 1, LANE), _pad2(bA, 1, LANE), _pad2(bB, 1, LANE),
        _pad2(bC, 1, LANE), _pad2(bO, 1, LANE), jnp.zeros((3, LANE), jnp.float32),
    ], axis=0)                                                       # (8, 128) f32
    return p


# ---- wrapper -----------------------------------------------------------------
def regression_forward(image_nchw, parameters, pm_material, p):
    B = image_nchw.shape[0]
    k_pad, tile_k = p["k_pad"], p["tile_k"]
    B_pad = ((B + 7) // 8) * 8

    img = image_nchw.reshape(B, -1).astype(jnp.float32)
    img = jnp.pad(img, ((0, B_pad - B), (0, k_pad - img.shape[1])))
    img = img.astype(jnp.bfloat16)

    parpm = jnp.concatenate([parameters, pm_material], axis=1).astype(jnp.float32)
    parpm = jnp.pad(parpm, ((0, B_pad - B), (0, PARPM_PAD - parpm.shape[1])))

    k_tiles = k_pad // tile_k
    # dominant weight stream: full-row lane-dense tiles; deeper buffering only
    # pays when the K grid is long enough to pipeline (esp. v5e HBM BW).
    if k_tiles >= 3:
        wft_spec = pl.BlockSpec((tile_k, NUM_FTRS_PAD), lambda k: (k, 0),
                                pipeline_mode=pl.Buffered(3))
    else:
        wft_spec = pl.BlockSpec((tile_k, NUM_FTRS_PAD), lambda k: (k, 0))

    y = pl.pallas_call(
        fused_regression_kernel,
        out_shape=jax.ShapeDtypeStruct((B_pad, 2), jnp.float32),
        grid_spec=pltpu.PrefetchScalarGridSpec(
            num_scalar_prefetch=0,
            grid=(k_tiles,),
            in_specs=[
                pl.BlockSpec((B_pad, tile_k), lambda k: (0, k)),          # img  bf16
                wft_spec,                                                 # wft  bf16
                pl.BlockSpec((NUM_FTRS_PAD, LANE), lambda k: (0, 0)),     # w1p  bf16
                pl.BlockSpec((WPACK_ROWS, LANE), lambda k: (0, 0)),       # wpack f32
                pl.BlockSpec((8, LANE), lambda k: (0, 0)),                # bpack f32
                pl.BlockSpec((B_pad, PARPM_PAD), lambda k: (0, 0)),       # parpm f32
            ],
            out_specs=pl.BlockSpec((B_pad, 2), lambda k: (0, 0)),
            scratch_shapes=[pltpu.VMEM((B_pad, NUM_FTRS_PAD), jnp.float32)],
        ),
        compiler_params=pltpu.CompilerParams(
            dimension_semantics=("arbitrary",),   # K is a reduction axis
            vmem_limit_bytes=32 << 20,
        ),
    )(img, p["wft"], p["w1p"], p["wpack"], p["bpack"], parpm)

    return y[:B, 0:1], y[:B, 1:2]


# ---- pure-f32 reference (mirrors the PyTorch forward, eval-mode BN) ----------
def regression_reference(image_nchw, parameters, pm_material, p):
    B = image_nchw.shape[0]
    relu = lambda v: jnp.maximum(v, 0.0)
    img = image_nchw.reshape(B, -1).astype(jnp.float32)
    feats = img @ p["ref_wft"] + p["ref_bft"]
    h = relu(feats @ p["ref_w1"] + p["ref_b1"])
    x = jnp.concatenate([h, parameters, pm_material], axis=1)

    x1 = x
    for w, b in zip(p["ref_ws1"], p["ref_bs1"]):
        x1 = relu(x1 @ w + b)
    y1 = x1 @ p["ref_wo1"] + p["ref_bo1"]

    x2 = x
    for w, b in zip(p["ref_ws2"], p["ref_bs2"]):
        x2 = relu(x2 @ w + b)
    y2 = x2 @ p["ref_wo2"] + p["ref_bo2"]
    return y1, y2


if __name__ == "__main__":
    key = jax.random.PRNGKey(0)
    k_img, k_par, k_mat, k_param = jax.random.split(key, 4)

    B, C, H, W = 8, 3, 16, 16
    image = jax.random.normal(k_img, (B, C, H, W), jnp.float32)          # NCHW
    parameters = jax.random.normal(k_par, (B, PARAM_DIM), jnp.float32)   # current(2)+temp(1)
    pm_onehot = jax.nn.one_hot(
        jax.random.randint(k_mat, (B,), 0, PM_MATERIAL_DIM), PM_MATERIAL_DIM
    ).astype(jnp.float32)

    params = make_params(k_param, C * H * W)

    y1, y2 = regression_forward(image, parameters, pm_onehot, params)
    jax.block_until_ready((y1, y2))

    r1, r2 = regression_reference(image, parameters, pm_onehot, params)
    assert y1.shape == (B, OUT_DIM1) and y2.shape == (B, OUT_DIM2)
    # reference is pure f32; tolerance bounds the documented bf16-backbone-weight
    # design choice (observed deviation is well below this bound).
    assert jnp.allclose(y1, r1, atol=1e-2, rtol=1e-2), float(jnp.max(jnp.abs(y1 - r1)))
    assert jnp.allclose(y2, r2, atol=1e-2, rtol=1e-2), float(jnp.max(jnp.abs(y2 - r2)))

    print("KERNEL_OK")
</pallas_src>

<mosaic_0001>
module attributes {stable_mosaic.version = 11 : i64} {
  func.func @fused_regression_kernel(%arg0: i32, %arg1: memref<8x768xbf16, #tpu.memory_space<vmem>>, %arg2: memref<768x1024xbf16, #tpu.memory_space<vmem>>, %arg3: memref<1024x128xbf16, #tpu.memory_space<vmem>>, %arg4: memref<528x128xf32, #tpu.memory_space<vmem>>, %arg5: memref<8x128xf32, #tpu.memory_space<vmem>>, %arg6: memref<8x16xf32, #tpu.memory_space<vmem>>, %arg7: memref<8x2xf32, #tpu.memory_space<vmem>>, %arg8: memref<8x1024xf32, #tpu.memory_space<vmem>>) attributes {dimension_semantics = [#tpu.dimension_semantics<arbitrary>], iteration_bounds = array<i64: 1>, scalar_prefetch = 0 : i64, scratch_operands = 1 : i64, tpu.core_type = #tpu.core_type<tc>, window_params = [{transform_indices = @transform_0, window_bounds = array<i64: 8, 768>}, {transform_indices = @transform_1, window_bounds = array<i64: 768, 1024>}, {pipeline_mode = #tpu.pipeline_mode<synchronous>, transform_indices = @transform_2, window_bounds = array<i64: 1024, 128>}, {pipeline_mode = #tpu.pipeline_mode<synchronous>, transform_indices = @transform_3, window_bounds = array<i64: 528, 128>}, {pipeline_mode = #tpu.pipeline_mode<synchronous>, transform_indices = @transform_4, window_bounds = array<i64: 8, 128>}, {pipeline_mode = #tpu.pipeline_mode<synchronous>, transform_indices = @transform_5, window_bounds = array<i64: 8, 16>}, {pipeline_mode = #tpu.pipeline_mode<synchronous>, transform_indices = @transform_6, window_bounds = array<i64: 8, 2>}]} {
    %c0_i32 = arith.constant 0 : i32
    %0 = arith.cmpi eq, %arg0, %c0_i32 : i32
    %1 = arith.extui %0 : i1 to i32
    %c0_i32_0 = arith.constant 0 : i32
    %2 = arith.cmpi ne, %1, %c0_i32_0 : i32
    scf.if %2 {
      %cst_10 = arith.constant 0.000000e+00 : f32
      %12 = vector.broadcast %cst_10 : f32 to vector<8x1024xf32>
      %c0_11 = arith.constant 0 : index
      %c0_12 = arith.constant 0 : index
      %13 = vector.load %arg8[%c0_11, %c0_12] : memref<8x1024xf32, #tpu.memory_space<vmem>>, vector<8x1024xf32>
      tpu.vector_store %arg8[%c0_11, %c0_12], %12 {strides = array<i32>} : memref<8x1024xf32, #tpu.memory_space<vmem>>, vector<8x1024xf32>,
    } else {
    }
    %c0 = arith.constant 0 : index
    %c0_1 = arith.constant 0 : index
    %3 = vector.load %arg8[%c0, %c0_1] : memref<8x1024xf32, #tpu.memory_space<vmem>>, vector<8x1024xf32>
    %c0_2 = arith.constant 0 : index
    %c0_3 = arith.constant 0 : index
    %4 = vector.load %arg1[%c0_2, %c0_3] : memref<8x768xbf16, #tpu.memory_space<vmem>>, vector<8x768xbf16>
    %c0_4 = arith.constant 0 : index
    %c0_5 = arith.constant 0 : index
    %5 = vector.load %arg2[%c0_4, %c0_5] : memref<768x1024xbf16, #tpu.memory_space<vmem>>, vector<768x1024xbf16>
    %cst = arith.constant dense<0.000000e+00> : vector<8x1024xf32>
    %6 = tpu.matmul %4, %5, %cst {dimension_numbers = #tpu.dot_dimension_numbers<[1], [0], [0], [1], [0, 0, 1, 1], [], []>} : vector<8x768xbf16>, vector<768x1024xbf16>, vector<8x1024xf32> -> vector<8x1024xf32>
    %7 = arith.addf %3, %6 : vector<8x1024xf32>
    %c0_6 = arith.constant 0 : index
    %c0_7 = arith.constant 0 : index
    %8 = vector.load %arg8[%c0_6, %c0_7] : memref<8x1024xf32, #tpu.memory_space<vmem>>, vector<8x1024xf32>
    tpu.vector_store %arg8[%c0_6, %c0_7], %7 {strides = array<i32>} : memref<8x1024xf32, #tpu.memory_space<vmem>>, vector<8x1024xf32>,
    %c0_i32_8 = arith.constant 0 : i32
    %9 = arith.cmpi eq, %arg0, %c0_i32_8 : i32
    %10 = arith.extui %9 : i1 to i32
    %c0_i32_9 = arith.constant 0 : i32
    %11 = arith.cmpi ne, %10, %c0_i32_9 : i32
    scf.if %11 {
      %c0_10 = arith.constant 0 : index
      %c0_11 = arith.constant 0 : index
      %12 = vector.load %arg8[%c0_10, %c0_11] : memref<8x1024xf32, #tpu.memory_space<vmem>>, vector<8x1024xf32>
      %13 = arith.truncf %12 : vector<8x1024xf32> to vector<8x1024xbf16>
      %c0_12 = arith.constant 0 : index
      %c0_13 = arith.constant 0 : index
      %14 = vector.load %arg3[%c0_12, %c0_13] : memref<1024x128xbf16, #tpu.memory_space<vmem>>, vector<1024x128xbf16>
      %cst_14 = arith.constant dense<0.000000e+00> : vector<8x128xf32>
      %15 = tpu.matmul %13, %14, %cst_14 {dimension_numbers = #tpu.dot_dimension_numbers<[1], [0], [0], [1], [0, 0, 1, 1], [], []>} : vector<8x1024xbf16>, vector<1024x128xbf16>, vector<8x128xf32> -> vector<8x128xf32>
      %c0_15 = arith.constant 0 : index
      %c0_16 = arith.constant 0 : index
      %16 = vector.load %arg5[%c0_15, %c0_16] : memref<8x128xf32, #tpu.memory_space<vmem>>, vector<1x128xf32>
      %17 = vector.broadcast %16 : vector<1x128xf32> to vector<8x128xf32>
      %18 = arith.addf %15, %17 : vector<8x128xf32>
      %cst_17 = arith.constant 0.000000e+00 : f32
      %19 = vector.broadcast %cst_17 : f32 to vector<8x128xf32>
      %20 = arith.maximumf %18, %19 : vector<8x128xf32>
      %c0_18 = arith.constant 0 : index
      %c0_19 = arith.constant 0 : index
      %21 = vector.load %arg4[%c0_18, %c0_19] : memref<528x128xf32, #tpu.memory_space<vmem>>, vector<128x128xf32>
      %cst_20 = arith.constant dense<0.000000e+00> : vector<8x128xf32>
      %22 = tpu.matmul %20, %21, %cst_20 {dimension_numbers = #tpu.dot_dimension_numbers<[1], [0], [0], [1], [0, 0, 1, 1], [], []>} : vector<8x128xf32>, vector<128x128xf32>, vector<8x128xf32> -> vector<8x128xf32>
      %c0_21 = arith.constant 0 : index
      %c0_22 = arith.constant 0 : index
      %23 = vector.load %arg6[%c0_21, %c0_22] : memref<8x16xf32, #tpu.memory_space<vmem>>, vector<8x16xf32>
      %c128 = arith.constant 128 : index
      %c0_23 = arith.constant 0 : index
      %24 = vector.load %arg4[%c128, %c0_23] : memref<528x128xf32, #tpu.memory_space<vmem>>, vector<16x128xf32>
      %cst_24 = arith.constant dense<0.000000e+00> : vector<8x128xf32>
      %25 = tpu.matmul %23, %24, %cst_24 {dimension_numbers = #tpu.dot_dimension_numbers<[1], [0], [0], [1], [0, 0, 1, 1], [], []>} : vector<8x16xf32>, vector<16x128xf32>, vector<8x128xf32> -> vector<8x128xf32>
      %26 = arith.addf %22, %25 : vector<8x128xf32>
      %c1 = arith.constant 1 : index
      %c0_25 = arith.constant 0 : index
      %27 = vector.load %arg5[%c1, %c0_25] : memref<8x128xf32, #tpu.memory_space<vmem>>, vector<1x128xf32>
      %28 = vector.broadcast %27 : vector<1x128xf32> to vector<8x128xf32>
      %29 = arith.addf %26, %28 : vector<8x128xf32>
      %cst_26 = arith.constant 0.000000e+00 : f32
      %30 = vector.broadcast %cst_26 : f32 to vector<8x128xf32>
      %31 = arith.maximumf %29, %30 : vector<8x128xf32>
      %c144 = arith.constant 144 : index
      %c0_27 = arith.constant 0 : index
      %32 = vector.load %arg4[%c144, %c0_27] : memref<528x128xf32, #tpu.memory_space<vmem>>, vector<128x128xf32>
      %cst_28 = arith.constant dense<0.000000e+00> : vector<8x128xf32>
      %33 = tpu.matmul %31, %32, %cst_28 {dimension_numbers = #tpu.dot_dimension_numbers<[1], [0], [0], [1], [0, 0, 1, 1], [], []>} : vector<8x128xf32>, vector<128x128xf32>, vector<8x128xf32> -> vector<8x128xf32>
      %c2 = arith.constant 2 : index
      %c0_29 = arith.constant 0 : index
      %34 = vector.load %arg5[%c2, %c0_29] : memref<8x128xf32, #tpu.memory_space<vmem>>, vector<1x128xf32>
      %35 = vector.broadcast %34 : vector<1x128xf32> to vector<8x128xf32>
      %36 = arith.addf %33, %35 : vector<8x128xf32>
      %cst_30 = arith.constant 0.000000e+00 : f32
      %37 = vector.broadcast %cst_30 : f32 to vector<8x128xf32>
      %38 = arith.maximumf %36, %37 : vector<8x128xf32>
      %c272 = arith.constant 272 : index
      %c0_31 = arith.constant 0 : index
      %39 = vector.load %arg4[%c272, %c0_31] : memref<528x128xf32, #tpu.memory_space<vmem>>, vector<128x128xf32>
      %cst_32 = arith.constant dense<0.000000e+00> : vector<8x128xf32>
      %40 = tpu.matmul %38, %39, %cst_32 {dimension_numbers = #tpu.dot_dimension_numbers<[1], [0], [0], [1], [0, 0, 1, 1], [], []>} : vector<8x128xf32>, vector<128x128xf32>, vector<8x128xf32> -> vector<8x128xf32>
      %c3 = arith.constant 3 : index
      %c0_33 = arith.constant 0 : index
      %41 = vector.load %arg5[%c3, %c0_33] : memref<8x128xf32, #tpu.memory_space<vmem>>, vector<1x128xf32>
      %42 = vector.broadcast %41 : vector<1x128xf32> to vector<8x128xf32>
      %43 = arith.addf %40, %42 : vector<8x128xf32>
      %cst_34 = arith.constant 0.000000e+00 : f32
      %44 = vector.broadcast %cst_34 : f32 to vector<8x128xf32>
      %45 = arith.maximumf %43, %44 : vector<8x128xf32>
      %c400 = arith.constant 400 : index
      %c0_35 = arith.constant 0 : index
      %46 = vector.load %arg4[%c400, %c0_35] : memref<528x128xf32, #tpu.memory_space<vmem>>, vector<128x128xf32>
      %cst_36 = arith.constant dense<0.000000e+00> : vector<8x128xf32>
      %47 = tpu.matmul %45, %46, %cst_36 {dimension_numbers = #tpu.dot_dimension_numbers<[1], [0], [0], [1], [0, 0, 1, 1], [], []>} : vector<8x128xf32>, vector<128x128xf32>, vector<8x128xf32> -> vector<8x128xf32>
      %c4 = arith.constant 4 : index
      %c0_37 = arith.constant 0 : index
      %48 = vector.load %arg5[%c4, %c0_37] : memref<8x128xf32, #tpu.memory_space<vmem>>, vector<1x128xf32>
      %49 = vector.broadcast %48 : vector<1x128xf32> to vector<8x128xf32>
      %50 = arith.addf %47, %49 : vector<8x128xf32>
      %51 = vector.extract_strided_slice %50 {offsets = [0, 0], sizes = [8, 2], strides = [1, 1]} : vector<8x128xf32> to vector<8x2xf32>
      %c0_38 = arith.constant 0 : index
      %c0_39 = arith.constant 0 : index
      %52 = vector.load %arg7[%c0_38, %c0_39] : memref<8x2xf32, #tpu.memory_space<vmem>>, vector<8x2xf32>
      tpu.vector_store %arg7[%c0_38, %c0_39], %51 {strides = array<i32>} : memref<8x2xf32, #tpu.memory_space<vmem>>, vector<8x2xf32>,
    } else {
    }
    return
  }
  func.func @transform_0(%arg0: i32) -> (i32, i32) {
    %c0_i32 = arith.constant 0 : i32
    %c0_i32_0 = arith.constant 0 : i32
    return %c0_i32, %arg0 : i32, i32
  }
  func.func @transform_1(%arg0: i32) -> (i32, i32) {
    %c0_i32 = arith.constant 0 : i32
    %c0_i32_0 = arith.constant 0 : i32
    return %arg0, %c0_i32 : i32, i32
  }
  func.func @transform_2(%arg0: i32) -> (i32, i32) {
    %c0_i32 = arith.constant 0 : i32
    %c0_i32_0 = arith.constant 0 : i32
    %c0_i32_1 = arith.constant 0 : i32
    return %c0_i32, %c0_i32_0 : i32, i32
  }
  func.func @transform_3(%arg0: i32) -> (i32, i32) {
    %c0_i32 = arith.constant 0 : i32
    %c0_i32_0 = arith.constant 0 : i32
    %c0_i32_1 = arith.constant 0 : i32
    return %c0_i32, %c0_i32_0 : i32, i32
  }
  func.func @transform_4(%arg0: i32) -> (i32, i32) {
    %c0_i32 = arith.constant 0 : i32
    %c0_i32_0 = arith.constant 0 : i32
    %c0_i32_1 = arith.constant 0 : i32
    return %c0_i32, %c0_i32_0 : i32, i32
  }
  func.func @transform_5(%arg0: i32) -> (i32, i32) {
    %c0_i32 = arith.constant 0 : i32
    %c0_i32_0 = arith.constant 0 : i32
    %c0_i32_1 = arith.constant 0 : i32
    return %c0_i32, %c0_i32_0 : i32, i32
  }
  func.func @transform_6(%arg0: i32) -> (i32, i32) {
    %c0_i32 = arith.constant 0 : i32
    %c0_i32_0 = arith.constant 0 : i32
    %c0_i32_1 = arith.constant 0 : i32
    return %c0_i32, %c0_i32_0 : i32, i32
  }
}

</mosaic_0001>

<llo_original>
// kernel: tpu_custom_call.1
$region0: #{tpu_custom_call.1}
  #allocation0 [shape = 'u32[]', space=smem, size = 0x4, offset = 0x4, fixed_abs, tag = 'smem constant byte address 0x4 - core index']
  #allocation1 [shape = 'u32[144,128]{1,0:T(1,128)}', space=vmem, size = 0x12000, scoped, tag = 'internal scratch']
  #allocation2 [shape = 'f32[8,1024]{1,0:T(8,128)}', space=vmem, size = 0x8000, scoped, tag = 'scratch operand']
  %s0 = inlined_call_operand.hbm [shape: bf16[8,768], index: 0, kind: input, shape index: {}]
  %s1 = inlined_call_operand.hbm [shape: bf16[768,1024], index: 1, kind: input, shape index: {}]
  %s2 = inlined_call_operand.hbm [shape: bf16[1024,128], index: 2, kind: input, shape index: {}]
  %s3 = inlined_call_operand.hbm [shape: f32[528,128], index: 3, kind: input, shape index: {}]
  %s4 = inlined_call_operand.hbm [shape: f32[8,128], index: 4, kind: input, shape index: {}]
  %s5 = inlined_call_operand.hbm [shape: f32[8,16], index: 5, kind: input, shape index: {}]
  %s6 = inlined_call_operand.vmem [shape: f32[8,2], index: 6, kind: output, shape index: {}]
  %s7 = sld [smem:[#allocation0]]
  $region66: #{tpu_custom_call.1} parent=0
    _
  %s9 = ssub.s32 1, %s7
  %s10 = scalar_select 0, %s9, %s7
  $region1: #{tpu_custom_call.1} parent=0
    #allocation3 [shape = 'u8[12288]{0}', space=vmem, size = 0x3000, scoped, tag = 'input window, operand 0, single buffered']
    #allocation4 [shape = 's32[1]{0}', space=sflag, size = 0x4, scoped, tag = 'scoped memory for tpu_custom_call.1']
    #allocation5 [shape = 'u8[1572864]{0}', space=vmem, size = 0x180000, scoped, tag = 'input window, operand 1, single buffered']
    #allocation6 [shape = 's32[1]{0}', space=sflag, size = 0x4, scoped, tag = 'scoped memory for tpu_custom_call.1']
    #allocation7 [shape = 'u8[262144]{0}', space=vmem, size = 0x40000, scoped, tag = 'input window, operand 2, single buffered']
    #allocation8 [shape = 'u8[270336]{0}', space=vmem, size = 0x42000, scoped, tag = 'input window, operand 3, single buffered']
    #allocation9 [shape = 's32[1]{0}', space=sflag, size = 0x4, scoped, tag = 'scoped memory for tpu_custom_call.1']
    #allocation10 [shape = 'u8[4096]{0}', space=vmem, size = 0x1000, scoped, tag = 'input window, operand 4, single buffered']
    #allocation11 [shape = 'u8[4096]{0}', space=vmem, size = 0x1000, scoped, tag = 'input window, operand 5, single buffered']
    #allocation12 [shape = 's32[1]{0}', space=sflag, size = 0x4, scoped, tag = 'scoped memory for tpu_custom_call.1']
    %11 = vsyncpa [#allocation4], 0
    %12 = vsyncpa [#allocation6], 0
    %13 = vsyncpa [#allocation9], 0
    %14 = vsyncpa [#allocation12], 0
    // Predicated region
    $region2: #{tpu_custom_call.1} parent=1 // pred_check
      _
    $region3: #{tpu_custom_call.1} parent=1 // pred_check_branch
      %16 = sbr.rel (0) target = $region5
    $region4: #{tpu_custom_call.1} parent=1 // pred_region
      %s18 = ssub.s32 384, 384
      %19 = vsyncadd [#allocation4], %s18
      %s21 = sshll.u32 [#allocation3], 4
      %s22 = int_to_ptr.vmem [resolvable:$true] %s21
      %24 = dma.hbm_to_vmem [thread:$0]  %s0, 384, %s22, [#allocation4]
    $region5: #{tpu_custom_call.1} parent=1 // pred_fallthru
      _
    // Predicated region
    $region6: #{tpu_custom_call.1} parent=1 // pred_check
      _
    $region7: #{tpu_custom_call.1} parent=1 // pred_check_branch
      %26 = sbr.rel (0) target = $region9
    $region8: #{tpu_custom_call.1} parent=1 // pred_region
      %s28 = ssub.s32 49152, 49152
      %29 = vsyncadd [#allocation6], %s28
      %s30 = sshll.u32 [#allocation5], 4
      %s31 = int_to_ptr.vmem [resolvable:$true] %s30
      %36 = dma.hbm_to_vmem [thread:$0]  %s1, 49152, %s31, [#allocation6], 512, 512, 32
    $region9: #{tpu_custom_call.1} parent=1 // pred_fallthru
      _
    // Predicated region
    $region10: #{tpu_custom_call.1} parent=1 // pred_check
      _
    $region11: #{tpu_custom_call.1} parent=1 // pred_check_branch
      %38 = sbr.rel (0) target = $region13
    $region12: #{tpu_custom_call.1} parent=1 // pred_region
      %s40 = ssub.s32 8192, 8192
      %41 = vsyncadd [#allocation6], %s40
      %s42 = sshll.u32 [#allocation7], 4
      %s43 = int_to_ptr.vmem [resolvable:$true] %s42
      %48 = dma.hbm_to_vmem [thread:$0]  %s2, 8192, %s43, [#allocation6], 64, 64, 4
    $region13: #{tpu_custom_call.1} parent=1 // pred_fallthru
      _
    // Predicated region
    $region14: #{tpu_custom_call.1} parent=1 // pred_check
      _
    $region15: #{tpu_custom_call.1} parent=1 // pred_check_branch
      %50 = sbr.rel (0) target = $region17
    $region16: #{tpu_custom_call.1} parent=1 // pred_region
      %s52 = ssub.s32 8448, 8448
      %53 = vsyncadd [#allocation9], %s52
      %s54 = sshll.u32 [#allocation8], 4
      %s55 = int_to_ptr.vmem [resolvable:$true] %s54
      %60 = dma.hbm_to_vmem [thread:$0]  %s3, 8448, %s55, [#allocation9], 128, 128, 8
    $region17: #{tpu_custom_call.1} parent=1 // pred_fallthru
      _
    // Predicated region
    $region18: #{tpu_custom_call.1} parent=1 // pred_check
      _
    $region19: #{tpu_custom_call.1} parent=1 // pred_check_branch
      %62 = sbr.rel (0) target = $region21
    $region20: #{tpu_custom_call.1} parent=1 // pred_region
      %s64 = ssub.s32 128, 128
      %65 = vsyncadd [#allocation9], %s64
      %s67 = sshll.u32 [#allocation10], 4
      %s68 = int_to_ptr.vmem [resolvable:$true] %s67
      %70 = dma.hbm_to_vmem [thread:$0]  %s4, 128, %s68, [#allocation9]
    $region21: #{tpu_custom_call.1} parent=1 // pred_fallthru
      _
    // Predicated region
    $region22: #{tpu_custom_call.1} parent=1 // pred_check
      _
    $region23: #{tpu_custom_call.1} parent=1 // pred_check_branch
      %72 = sbr.rel (0) target = $region25
    $region24: #{tpu_custom_call.1} parent=1 // pred_region
      %s74 = ssub.s32 128, 128
      %75 = vsyncadd [#allocation12], %s74
      %s77 = sshll.u32 [#allocation11], 4
      %s78 = int_to_ptr.vmem [resolvable:$true] %s77
      %80 = dma.hbm_to_vmem [thread:$0]  %s5, 128, %s78, [#allocation12]
    $region25: #{tpu_custom_call.1} parent=1 // pred_fallthru
      _
    // Predicated region
    $region26: #{tpu_custom_call.1} parent=1 // pred_check
      _
    $region27: #{tpu_custom_call.1} parent=1 // pred_check_branch
      %82 = sbr.rel (0) target = $region29
    $region28: #{tpu_custom_call.1} parent=1 // pred_region
      %83 = dma.done [#allocation4], 384
    $region29: #{tpu_custom_call.1} parent=1 // pred_fallthru
      _
    // Predicated region
    $region30: #{tpu_custom_call.1} parent=1 // pred_check
      _
    $region31: #{tpu_custom_call.1} parent=1 // pred_check_branch
      %85 = sbr.rel (0) target = $region33
    $region32: #{tpu_custom_call.1} parent=1 // pred_region
      %86 = dma.done [#allocation6], 49152
    $region33: #{tpu_custom_call.1} parent=1 // pred_fallthru
      _
    // Predicated region
    $region34: #{tpu_custom_call.1} parent=1 // pred_check
      _
    $region35: #{tpu_custom_call.1} parent=1 // pred_check_branch
      %88 = sbr.rel (0) target = $region37
    $region36: #{tpu_custom_call.1} parent=1 // pred_region
      %89 = dma.done [#allocation6], 8192
    $region37: #{tpu_custom_call.1} parent=1 // pred_fallthru
      _
    // Predicated region
    $region38: #{tpu_custom_call.1} parent=1 // pred_check
      _
    $region39: #{tpu_custom_call.1} parent=1 // pred_check_branch
      %91 = sbr.rel (0) target = $region41
    $region40: #{tpu_custom_call.1} parent=1 // pred_region
      %92 = dma.done [#allocation9], 8448
    $region41: #{tpu_custom_call.1} parent=1 // pred_fallthru
      _
    // Predicated region
    $region42: #{tpu_custom_call.1} parent=1 // pred_check
      _
    $region43: #{tpu_custom_call.1} parent=1 // pred_check_branch
      %94 = sbr.rel (0) target = $region45
    $region44: #{tpu_custom_call.1} parent=1 // pred_region
      %95 = dma.done [#allocation9], 128
    $region45: #{tpu_custom_call.1} parent=1 // pred_fallthru
      _
    // Predicated region
    $region46: #{tpu_custom_call.1} parent=1 // pred_check
      _
    $region47: #{tpu_custom_call.1} parent=1 // pred_check_branch
      %97 = sbr.rel (0) target = $region49
    $region48: #{tpu_custom_call.1} parent=1 // pred_region
      %98 = dma.done [#allocation12], 128
    $region49: #{tpu_custom_call.1} parent=1 // pred_fallthru
      _
    %p100 = scmp.eq.s32.totalorder 0, 0
    // Predicated region
    $region50: #{tpu_custom_call.1} parent=1 // pred_check
      %p101 = pneg %p100
    $region51: #{tpu_custom_call.1} parent=1 // pred_check_branch
      %103 = sbr.rel (%p101) target = $region53
    $region52: #{tpu_custom_call.1} parent=1 // pred_region
      %104 = vst [vmem:[#allocation2] sm:$0xff] 0.0
      %105 = vst [vmem:[#allocation2 + $0x8] sm:$0xff] 0.0
      %106 = vst [vmem:[#allocation2 + $0x10] sm:$0xff] 0.0
      %107 = vst [vmem:[#allocation2 + $0x18] sm:$0xff] 0.0
      %108 = vst [vmem:[#allocation2 + $0x20] sm:$0xff] 0.0
      %109 = vst [vmem:[#allocation2 + $0x28] sm:$0xff] 0.0
      %110 = vst [vmem:[#allocation2 + $0x30] sm:$0xff] 0.0
      %111 = vst [vmem:[#allocation2 + $0x38] sm:$0xff] 0.0
    $region53: #{tpu_custom_call.1} parent=1 // pred_fallthru
      _
    %v112 = vld [vmem:[#allocation2] sm:$0xff]
    %v113 = vld [vmem:[#allocation2 + $0x8] sm:$0xff]
    %v114 = vld [vmem:[#allocation2 + $0x10] sm:$0xff]
    %v115 = vld [vmem:[#allocation2 + $0x18] sm:$0xff]
    %v116 = vld [vmem:[#allocation2 + $0x20] sm:$0xff]
    %v117 = vld [vmem:[#allocation2 + $0x28] sm:$0xff]
    %v118 = vld [vmem:[#allocation2 + $0x30] sm:$0xff]
    %v119 = vld [vmem:[#allocation2 + $0x38] sm:$0xff]
    %v120 = vld [vmem:[#allocation3] sm:$0xff]
    %v121 = vld [vmem:[#allocation3 + $0x8] sm:$0xff]
    %v122 = vld [vmem:[#allocation3 + $0x10] sm:$0xff]
    %v123 = vld [vmem:[#allocation5] sm:$0xff]
    %v124 = vld [vmem:[#allocation5 + $0x8] sm:$0xff]
    %v125 = vld [vmem:[#allocation5 + $0x10] sm:$0xff]
    %v126 = vld [vmem:[#allocation5 + $0x18] sm:$0xff]
    %v127 = vld [vmem:[#allocation5 + $0x20] sm:$0xff]
    %v128 = vld [vmem:[#allocation5 + $0x28] sm:$0xff]
    %v129 = vld [vmem:[#allocation5 + $0x30] sm:$0xff]
    %v130 = vld [vmem:[#allocation5 + $0x38] sm:$0xff]
    %v131 = vld [vmem:[#allocation5 + $0x40] sm:$0xff]
    %v132 = vld [vmem:[#allocation5 + $0x48] sm:$0xff]
    %v133 = vld [vmem:[#allocation5 + $0x50] sm:$0xff]
    %v134 = vld [vmem:[#allocation5 + $0x58] sm:$0xff]
    %v135 = vld [vmem:[#allocation5 + $0x60] sm:$0xff]
    %v136 = vld [vmem:[#allocation5 + $0x68] sm:$0xff]
    %v137 = vld [vmem:[#allocation5 + $0x70] sm:$0xff]
    %v138 = vld [vmem:[#allocation5 + $0x78] sm:$0xff]
    %v139 = vld [vmem:[#allocation5 + $0x80] sm:$0xff]
    %v140 = vld [vmem:[#allocation5 + $0x88] sm:$0xff]
    %v141 = vld [vmem:[#allocation5 + $0x90] sm:$0xff]
    %v142 = vld [vmem:[#allocation5 + $0x98] sm:$0xff]
    %v143 = vld [vmem:[#allocation5 + $0xa0] sm:$0xff]
    %v144 = vld [vmem:[#allocation5 + $0xa8] sm:$0xff]
    %v145 = vld [vmem:[#allocation5 + $0xb0] sm:$0xff]
    %v146 = vld [vmem:[#allocation5 + $0xb8] sm:$0xff]
    %v147 = vld [vmem:[#allocation5 + $0xc0] sm:$0xff]
    %v148 = vld [vmem:[#allocation5 + $0xc8] sm:$0xff]
    %v149 = vld [vmem:[#allocation5 + $0xd0] sm:$0xff]
    %v150 = vld [vmem:[#allocation5 + $0xd8] sm:$0xff]
    %v151 = vld [vmem:[#allocation5 + $0xe0] sm:$0xff]
    %v152 = vld [vmem:[#allocation5 + $0xe8] sm:$0xff]
    %v153 = vld [vmem:[#allocation5 + $0xf0] sm:$0xff]
    %v154 = vld [vmem:[#allocation5 + $0xf8] sm:$0xff]
    %v155 = vld [vmem:[#allocation5 + $0x100] sm:$0xff]
    %v156 = vld [vmem:[#allocation5 + $0x108] sm:$0xff]
    %v157 = vld [vmem:[#allocation5 + $0x110] sm:$0xff]
    %v158 = vld [vmem:[#allocation5 + $0x118] sm:$0xff]
    %v159 = vld [vmem:[#allocation5 + $0x120] sm:$0xff]
    %v160 = vld [vmem:[#allocation5 + $0x128] sm:$0xff]
    %v161 = vld [vmem:[#allocation5 + $0x130] sm:$0xff]
    %v162 = vld [vmem:[#allocation5 + $0x138] sm:$0xff]
    %v163 = vld [vmem:[#allocation5 + $0x140] sm:$0xff]
    %v164 = vld [vmem:[#allocation5 + $0x148] sm:$0xff]
    %v165 = vld [vmem:[#allocation5 + $0x150] sm:$0xff]
    %v166 = vld [vmem:[#allocation5 + $0x158] sm:$0xff]
    %v167 = vld [vmem:[#allocation5 + $0x160] sm:$0xff]
    %v168 = vld [vmem:[#allocation5 + $0x168] sm:$0xff]
    %v169 = vld [vmem:[#allocation5 + $0x170] sm:$0xff]
    %v170 = vld [vmem:[#allocation5 + $0x178] sm:$0xff]
    %v171 = vld [vmem:[#allocation5 + $0x180] sm:$0xff]
    %v172 = vld [vmem:[#allocation5 + $0x188] sm:$0xff]
    %v173 = vld [vmem:[#allocation5 + $0x190] sm:$0xff]
    %v174 = vld [vmem:[#allocation5 + $0x198] sm:$0xff]
    %v175 = vld [vmem:[#allocation5 + $0x1a0] sm:$0xff]
    %v176 = vld [vmem:[#allocation5 + $0x1a8] sm:$0xff]
    %v177 = vld [vmem:[#allocation5 + $0x1b0] sm:$0xff]
    %v178 = vld [vmem:[#allocation5 + $0x1b8] sm:$0xff]
    %v179 = vld [vmem:[#allocation5 + $0x1c0] sm:$0xff]
    %v180 = vld [vmem:[#allocation5 + $0x1c8] sm:$0xff]
    %v181 = vld [vmem:[#allocation5 + $0x1d0] sm:$0xff]
    %v182 = vld [vmem:[#allocation5 + $0x1d8] sm:$0xff]
    %v183 = vld [vmem:[#allocation5 + $0x1e0] sm:$0xff]
    %v184 = vld [vmem:[#allocation5 + $0x1e8] sm:$0xff]
    %v185 = vld [vmem:[#allocation5 + $0x1f0] sm:$0xff]
    %v186 = vld [vmem:[#allocation5 + $0x1f8] sm:$0xff]
    %v187 = vld [vmem:[#allocation5 + $0x200] sm:$0xff]
    %v188 = vld [vmem:[#allocation5 + $0x208] sm:$0xff]
    %v189 = vld [vmem:[#allocation5 + $0x210] sm:$0xff]
    %v190 = vld [vmem:[#allocation5 + $0x218] sm:$0xff]
    %v191 = vld [vmem:[#allocation5 + $0x220] sm:$0xff]
    %v192 = vld [vmem:[#allocation5 + $0x228] sm:$0xff]
    %v193 = vld [vmem:[#allocation5 + $0x230] sm:$0xff]
    %v194 = vld [vmem:[#allocation5 + $0x238] sm:$0xff]
    %v195 = vld [vmem:[#allocation5 + $0x240] sm:$0xff]
    %v196 = vld [vmem:[#allocation5 + $0x248] sm:$0xff]
    %v197 = vld [vmem:[#allocation5 + $0x250] sm:$0xff]
    %v198 = vld [vmem:[#allocation5 + $0x258] sm:$0xff]
    %v199 = vld [vmem:[#allocation5 + $0x260] sm:$0xff]
    %v200 = vld [vmem:[#allocation5 + $0x268] sm:$0xff]
    %v201 = vld [vmem:[#allocation5 + $0x270] sm:$0xff]
    %v202 = vld [vmem:[#allocation5 + $0x278] sm:$0xff]
    %v203 = vld [vmem:[#allocation5 + $0x280] sm:$0xff]
    %v204 = vld [vmem:[#allocation5 + $0x288] sm:$0xff]
    %v205 = vld [vmem:[#allocation5 + $0x290] sm:$0xff]
    %v206 = vld [vmem:[#allocation5 + $0x298] sm:$0xff]
    %v207 = vld [vmem:[#allocation5 + $0x2a0] sm:$0xff]
    %v208 = vld [vmem:[#allocation5 + $0x2a8] sm:$0xff]
    %v209 = vld [vmem:[#allocation5 + $0x2b0] sm:$0xff]
    %v210 = vld [vmem:[#allocation5 + $0x2b8] sm:$0xff]
    %v211 = vld [vmem:[#allocation5 + $0x2c0] sm:$0xff]
    %v212 = vld [vmem:[#allocation5 + $0x2c8] sm:$0xff]
    %v213 = vld [vmem:[#allocation5 + $0x2d0] sm:$0xff]
    %v214 = vld [vmem:[#allocation5 + $0x2d8] sm:$0xff]
    %v215 = vld [vmem:[#allocation5 + $0x2e0] sm:$0xff]
    %v216 = vld [vmem:[#allocation5 + $0x2e8] sm:$0xff]
    %v217 = vld [vmem:[#allocation5 + $0x2f0] sm:$0xff]
    %v218 = vld [vmem:[#allocation5 + $0x2f8] sm:$0xff]
    %v219 = vld [vmem:[#allocation5 + $0x300] sm:$0xff]
    %v220 = vld [vmem:[#allocation5 + $0x308] sm:$0xff]
    %v221 = vld [vmem:[#allocation5 + $0x310] sm:$0xff]
    %v222 = vld [vmem:[#allocation5 + $0x318] sm:$0xff]
    %v223 = vld [vmem:[#allocation5 + $0x320] sm:$0xff]
    %v224 = vld [vmem:[#allocation5 + $0x328] sm:$0xff]
    %v225 = vld [vmem:[#allocation5 + $0x330] sm:$0xff]
    %v226 = vld [vmem:[#allocation5 + $0x338] sm:$0xff]
    %v227 = vld [vmem:[#allocation5 + $0x340] sm:$0xff]
    %v228 = vld [vmem:[#allocation5 + $0x348] sm:$0xff]
    %v229 = vld [vmem:[#allocation5 + $0x350] sm:$0xff]
    %v230 = vld [vmem:[#allocation5 + $0x358] sm:$0xff]
    %v231 = vld [vmem:[#allocation5 + $0x360] sm:$0xff]
    %v232 = vld [vmem:[#allocation5 + $0x368] sm:$0xff]
    %v233 = vld [vmem:[#allocation5 + $0x370] sm:$0xff]
    %v234 = vld [vmem:[#allocation5 + $0x378] sm:$0xff]
    %v235 = vld [vmem:[#allocation5 + $0x380] sm:$0xff]
    %v236 = vld [vmem:[#allocation5 + $0x388] sm:$0xff]
    %v237 = vld [vmem:[#allocation5 + $0x390] sm:$0xff]
    %v238 = vld [vmem:[#allocation5 + $0x398] sm:$0xff]
    %v239 = vld [vmem:[#allocation5 + $0x3a0] sm:$0xff]
    %v240 = vld [vmem:[#allocation5 + $0x3a8] sm:$0xff]
    %v241 = vld [vmem:[#allocation5 + $0x3b0] sm:$0xff]
    %v242 = vld [vmem:[#allocation5 + $0x3b8] sm:$0xff]
    %v243 = vld [vmem:[#allocation5 + $0x3c0] sm:$0xff]
    %v244 = vld [vmem:[#allocation5 + $0x3c8] sm:$0xff]
    %v245 = vld [vmem:[#allocation5 + $0x3d0] sm:$0xff]
    %v246 = vld [vmem:[#allocation5 + $0x3d8] sm:$0xff]
    %v247 = vld [vmem:[#allocation5 + $0x3e0] sm:$0xff]
    %v248 = vld [vmem:[#allocation5 + $0x3e8] sm:$0xff]
    %v249 = vld [vmem:[#allocation5 + $0x3f0] sm:$0xff]
    %v250 = vld [vmem:[#allocation5 + $0x3f8] sm:$0xff]
    %v251 = vld [vmem:[#allocation5 + $0x400] sm:$0xff]
    %v252 = vld [vmem:[#allocation5 + $0x408] sm:$0xff]
    %v253 = vld [vmem:[#allocation5 + $0x410] sm:$0xff]
    %v254 = vld [vmem:[#allocation5 + $0x418] sm:$0xff]
    %v255 = vld [vmem:[#allocation5 + $0x420] sm:$0xff]
    %v256 = vld [vmem:[#allocation5 + $0x428] sm:$0xff]
    %v257 = vld [vmem:[#allocation5 + $0x430] sm:$0xff]
    %v258 = vld [vmem:[#allocation5 + $0x438] sm:$0xff]
    %v259 = vld [vmem:[#allocation5 + $0x440] sm:$0xff]
    %v260 = vld [vmem:[#allocation5 + $0x448] sm:$0xff]
    %v261 = vld [vmem:[#allocation5 + $0x450] sm:$0xff]
    %v262 = vld [vmem:[#allocation5 + $0x458] sm:$0xff]
    %v263 = vld [vmem:[#allocation5 + $0x460] sm:$0xff]
    %v264 = vld [vmem:[#allocation5 + $0x468] sm:$0xff]
    %v265 = vld [vmem:[#allocation5 + $0x470] sm:$0xff]
    %v266 = vld [vmem:[#allocation5 + $0x478] sm:$0xff]
    %v267 = vld [vmem:[#allocation5 + $0x480] sm:$0xff]
    %v268 = vld [vmem:[#allocation5 + $0x488] sm:$0xff]
    %v269 = vld [vmem:[#allocation5 + $0x490] sm:$0xff]
    %v270 = vld [vmem:[#allocation5 + $0x498] sm:$0xff]
    %v271 = vld [vmem:[#allocation5 + $0x4a0] sm:$0xff]
    %v272 = vld [vmem:[#allocation5 + $0x4a8] sm:$0xff]
    %v273 = vld [vmem:[#allocation5 + $0x4b0] sm:$0xff]
    %v274 = vld [vmem:[#allocation5 + $0x4b8] sm:$0xff]
    %v275 = vld [vmem:[#allocation5 + $0x4c0] sm:$0xff]
    %v276 = vld [vmem:[#allocation5 + $0x4c8] sm:$0xff]
    %v277 = vld [vmem:[#allocation5 + $0x4d0] sm:$0xff]
    %v278 = vld [vmem:[#allocation5 + $0x4d8] sm:$0xff]
    %v279 = vld [vmem:[#allocation5 + $0x4e0] sm:$0xff]
    %v280 = vld [vmem:[#allocation5 + $0x4e8] sm:$0xff]
    %v281 = vld [vmem:[#allocation5 + $0x4f0] sm:$0xff]
    %v282 = vld [vmem:[#allocation5 + $0x4f8] sm:$0xff]
    %v283 = vld [vmem:[#allocation5 + $0x500] sm:$0xff]
    %v284 = vld [vmem:[#allocation5 + $0x508] sm:$0xff]
    %v285 = vld [vmem:[#allocation5 + $0x510] sm:$0xff]
    %v286 = vld [vmem:[#allocation5 + $0x518] sm:$0xff]
    %v287 = vld [vmem:[#allocation5 + $0x520] sm:$0xff]
    %v288 = vld [vmem:[#allocation5 + $0x528] sm:$0xff]
    %v289 = vld [vmem:[#allocation5 + $0x530] sm:$0xff]
    %v290 = vld [vmem:[#allocation5 + $0x538] sm:$0xff]
    %v291 = vld [vmem:[#allocation5 + $0x540] sm:$0xff]
    %v292 = vld [vmem:[#allocation5 + $0x548] sm:$0xff]
    %v293 = vld [vmem:[#allocation5 + $0x550] sm:$0xff]
    %v294 = vld [vmem:[#allocation5 + $0x558] sm:$0xff]
    %v295 = vld [vmem:[#allocation5 + $0x560] sm:$0xff]
    %v296 = vld [vmem:[#allocation5 + $0x568] sm:$0xff]
    %v297 = vld [vmem:[#allocation5 + $0x570] sm:$0xff]
    %v298 = vld [vmem:[#allocation5 + $0x578] sm:$0xff]
    %v299 = vld [vmem:[#allocation5 + $0x580] sm:$0xff]
    %v300 = vld [vmem:[#allocation5 + $0x588] sm:$0xff]
    %v301 = vld [vmem:[#allocation5 + $0x590] sm:$0xff]
    %v302 = vld [vmem:[#allocation5 + $0x598] sm:$0xff]
    %v303 = vld [vmem:[#allocation5 + $0x5a0] sm:$0xff]
    %v304 = vld [vmem:[#allocation5 + $0x5a8] sm:$0xff]
    %v305 = vld [vmem:[#allocation5 + $0x5b0] sm:$0xff]
    %v306 = vld [vmem:[#allocation5 + $0x5b8] sm:$0xff]
    %v307 = vld [vmem:[#allocation5 + $0x5c0] sm:$0xff]
    %v308 = vld [vmem:[#allocation5 + $0x5c8] sm:$0xff]
    %v309 = vld [vmem:[#allocation5 + $0x5d0] sm:$0xff]
    %v310 = vld [vmem:[#allocation5 + $0x5d8] sm:$0xff]
    %v311 = vld [vmem:[#allocation5 + $0x5e0] sm:$0xff]
    %v312 = vld [vmem:[#allocation5 + $0x5e8] sm:$0xff]
    %v313 = vld [vmem:[#allocation5 + $0x5f0] sm:$0xff]
    %v314 = vld [vmem:[#allocation5 + $0x5f8] sm:$0xff]
    %v315 = vld [vmem:[#allocation5 + $0x600] sm:$0xff]
    %v316 = vld [vmem:[#allocation5 + $0x608] sm:$0xff]
    %v317 = vld [vmem:[#allocation5 + $0x610] sm:$0xff]
    %v318 = vld [vmem:[#allocation5 + $0x618] sm:$0xff]
    %v319 = vld [vmem:[#allocation5 + $0x620] sm:$0xff]
    %v320 = vld [vmem:[#allocation5 + $0x628] sm:$0xff]
    %v321 = vld [vmem:[#allocation5 + $0x630] sm:$0xff]
    %v322 = vld [vmem:[#allocation5 + $0x638] sm:$0xff]
    %v323 = vld [vmem:[#allocation5 + $0x640] sm:$0xff]
    %v324 = vld [vmem:[#allocation5 + $0x648] sm:$0xff]
    %v325 = vld [vmem:[#allocation5 + $0x650] sm:$0xff]
    %v326 = vld [vmem:[#allocation5 + $0x658] sm:$0xff]
    %v327 = vld [vmem:[#allocation5 + $0x660] sm:$0xff]
    %v328 = vld [vmem:[#allocation5 + $0x668] sm:$0xff]
    %v329 = vld [vmem:[#allocation5 + $0x670] sm:$0xff]
    %v330 = vld [vmem:[#allocation5 + $0x678] sm:$0xff]
    %v331 = vld [vmem:[#allocation5 + $0x680] sm:$0xff]
    %v332 = vld [vmem:[#allocation5 + $0x688] sm:$0xff]
    %v333 = vld [vmem:[#allocation5 + $0x690] sm:$0xff]
    %v334 = vld [vmem:[#allocation5 + $0x698] sm:$0xff]
    %v335 = vld [vmem:[#allocation5 + $0x6a0] sm:$0xff]
    %v336 = vld [vmem:[#allocation5 + $0x6a8] sm:$0xff]
    %v337 = vld [vmem:[#allocation5 + $0x6b0] sm:$0xff]
    %v338 = vld [vmem:[#allocation5 + $0x6b8] sm:$0xff]
    %v339 = vld [vmem:[#allocation5 + $0x6c0] sm:$0xff]
    %v340 = vld [vmem:[#allocation5 + $0x6c8] sm:$0xff]
    %v341 = vld [vmem:[#allocation5 + $0x6d0] sm:$0xff]
    %v342 = vld [vmem:[#allocation5 + $0x6d8] sm:$0xff]
    %v343 = vld [vmem:[#allocation5 + $0x6e0] sm:$0xff]
    %v344 = vld [vmem:[#allocation5 + $0x6e8] sm:$0xff]
    %v345 = vld [vmem:[#allocation5 + $0x6f0] sm:$0xff]
    %v346 = vld [vmem:[#allocation5 + $0x6f8] sm:$0xff]
    %v347 = vld [vmem:[#allocation5 + $0x700] sm:$0xff]
    %v348 = vld [vmem:[#allocation5 + $0x708] sm:$0xff]
    %v349 = vld [vmem:[#allocation5 + $0x710] sm:$0xff]
    %v350 = vld [vmem:[#allocation5 + $0x718] sm:$0xff]
    %v351 = vld [vmem:[#allocation5 + $0x720] sm:$0xff]
    %v352 = vld [vmem:[#allocation5 + $0x728] sm:$0xff]
    %v353 = vld [vmem:[#allocation5 + $0x730] sm:$0xff]
    %v354 = vld [vmem:[#allocation5 + $0x738] sm:$0xff]
    %v355 = vld [vmem:[#allocation5 + $0x740] sm:$0xff]
    %v356 = vld [vmem:[#allocation5 + $0x748] sm:$0xff]
    %v357 = vld [vmem:[#allocation5 + $0x750] sm:$0xff]
    %v358 = vld [vmem:[#allocation5 + $0x758] sm:$0xff]
    %v359 = vld [vmem:[#allocation5 + $0x760] sm:$0xff]
    %v360 = vld [vmem:[#allocation5 + $0x768] sm:$0xff]
    %v361 = vld [vmem:[#allocation5 + $0x770] sm:$0xff]
    %v362 = vld [vmem:[#allocation5 + $0x778] sm:$0xff]
    %v363 = vld [vmem:[#allocation5 + $0x780] sm:$0xff]
    %v364 = vld [vmem:[#allocation5 + $0x788] sm:$0xff]
    %v365 = vld [vmem:[#allocation5 + $0x790] sm:$0xff]
    %v366 = vld [vmem:[#allocation5 + $0x798] sm:$0xff]
    %v367 = vld [vmem:[#allocation5 + $0x7a0] sm:$0xff]
    %v368 = vld [vmem:[#allocation5 + $0x7a8] sm:$0xff]
    %v369 = vld [vmem:[#allocation5 + $0x7b0] sm:$0xff]
    %v370 = vld [vmem:[#allocation5 + $0x7b8] sm:$0xff]
    %v371 = vld [vmem:[#allocation5 + $0x7c0] sm:$0xff]
    %v372 = vld [vmem:[#allocation5 + $0x7c8] sm:$0xff]
    %v373 = vld [vmem:[#allocation5 + $0x7d0] sm:$0xff]
    %v374 = vld [vmem:[#allocation5 + $0x7d8] sm:$0xff]
    %v375 = vld [vmem:[#allocation5 + $0x7e0] sm:$0xff]
    %v376 = vld [vmem:[#allocation5 + $0x7e8] sm:$0xff]
    %v377 = vld [vmem:[#allocation5 + $0x7f0] sm:$0xff]
    %v378 = vld [vmem:[#allocation5 + $0x7f8] sm:$0xff]
    %v379 = vld [vmem:[#allocation5 + $0x800] sm:$0xff]
    %v380 = vld [vmem:[#allocation5 + $0x808] sm:$0xff]
    %v381 = vld [vmem:[#allocation5 + $0x810] sm:$0xff]
    %v382 = vld [vmem:[#allocation5 + $0x818] sm:$0xff]
    %v383 = vld [vmem:[#allocation5 + $0x820] sm:$0xff]
    %v384 = vld [vmem:[#allocation5 + $0x828] sm:$0xff]
    %v385 = vld [vmem:[#allocation5 + $0x830] sm:$0xff]
    %v386 = vld [vmem:[#allocation5 + $0x838] sm:$0xff]
    %v387 = vld [vmem:[#allocation5 + $0x840] sm:$0xff]
    %v388 = vld [vmem:[#allocation5 + $0x848] sm:$0xff]
    %v389 = vld [vmem:[#allocation5 + $0x850] sm:$0xff]
    %v390 = vld [vmem:[#allocation5 + $0x858] sm:$0xff]
    %v391 = vld [vmem:[#allocation5 + $0x860] sm:$0xff]
    %v392 = vld [vmem:[#allocation5 + $0x868] sm:$0xff]
    %v393 = vld [vmem:[#allocation5 + $0x870] sm:$0xff]
    %v394 = vld [vmem:[#allocation5 + $0x878] sm:$0xff]
    %v395 = vld [vmem:[#allocation5 + $0x880] sm:$0xff]
    %v396 = vld [vmem:[#allocation5 + $0x888] sm:$0xff]
    %v397 = vld [vmem:[#allocation5 + $0x890] sm:$0xff]
    %v398 = vld [vmem:[#allocation5 + $0x898] sm:$0xff]
    %v399 = vld [vmem:[#allocation5 + $0x8a0] sm:$0xff]
    %v400 = vld [vmem:[#allocation5 + $0x8a8] sm:$0xff]
    %v401 = vld [vmem:[#allocation5 + $0x8b0] sm:$0xff]
    %v402 = vld [vmem:[#allocation5 + $0x8b8] sm:$0xff]
    %v403 = vld [vmem:[#allocation5 + $0x8c0] sm:$0xff]
    %v404 = vld [vmem:[#allocation5 + $0x8c8] sm:$0xff]
    %v405 = vld [vmem:[#allocation5 + $0x8d0] sm:$0xff]
    %v406 = vld [vmem:[#allocation5 + $0x8d8] sm:$0xff]
    %v407 = vld [vmem:[#allocation5 + $0x8e0] sm:$0xff]
    %v408 = vld [vmem:[#allocation5 + $0x8e8] sm:$0xff]
    %v409 = vld [vmem:[#allocation5 + $0x8f0] sm:$0xff]
    %v410 = vld [vmem:[#allocation5 + $0x8f8] sm:$0xff]
    %v411 = vld [vmem:[#allocation5 + $0x900] sm:$0xff]
    %v412 = vld [vmem:[#allocation5 + $0x908] sm:$0xff]
    %v413 = vld [vmem:[#allocation5 + $0x910] sm:$0xff]
    %v414 = vld [vmem:[#allocation5 + $0x918] sm:$0xff]
    %v415 = vld [vmem:[#allocation5 + $0x920] sm:$0xff]
    %v416 = vld [vmem:[#allocation5 + $0x928] sm:$0xff]
    %v417 = vld [vmem:[#allocation5 + $0x930] sm:$0xff]
    %v418 = vld [vmem:[#allocation5 + $0x938] sm:$0xff]
    %v419 = vld [vmem:[#allocation5 + $0x940] sm:$0xff]
    %v420 = vld [vmem:[#allocation5 + $0x948] sm:$0xff]
    %v421 = vld [vmem:[#allocation5 + $0x950] sm:$0xff]
    %v422 = vld [vmem:[#allocation5 + $0x958] sm:$0xff]
    %v423 = vld [vmem:[#allocation5 + $0x960] sm:$0xff]
    %v424 = vld [vmem:[#allocation5 + $0x968] sm:$0xff]
    %v425 = vld [vmem:[#allocation5 + $0x970] sm:$0xff]
    %v426 = vld [vmem:[#allocation5 + $0x978] sm:$0xff]
    %v427 = vld [vmem:[#allocation5 + $0x980] sm:$0xff]
    %v428 = vld [vmem:[#allocation5 + $0x988] sm:$0xff]
    %v429 = vld [vmem:[#allocation5 + $0x990] sm:$0xff]
    %v430 = vld [vmem:[#allocation5 + $0x998] sm:$0xff]
    %v431 = vld [vmem:[#allocation5 + $0x9a0] sm:$0xff]
    %v432 = vld [vmem:[#allocation5 + $0x9a8] sm:$0xff]
    %v433 = vld [vmem:[#allocation5 + $0x9b0] sm:$0xff]
    %v434 = vld [vmem:[#allocation5 + $0x9b8] sm:$0xff]
    %v435 = vld [vmem:[#allocation5 + $0x9c0] sm:$0xff]
    %v436 = vld [vmem:[#allocation5 + $0x9c8] sm:$0xff]
    %v437 = vld [vmem:[#allocation5 + $0x9d0] sm:$0xff]
    %v438 = vld [vmem:[#allocation5 + $0x9d8] sm:$0xff]
    %v439 = vld [vmem:[#allocation5 + $0x9e0] sm:$0xff]
    %v440 = vld [vmem:[#allocation5 + $0x9e8] sm:$0xff]
    %v441 = vld [vmem:[#allocation5 + $0x9f0] sm:$0xff]
    %v442 = vld [vmem:[#allocation5 + $0x9f8] sm:$0xff]
    %v443 = vld [vmem:[#allocation5 + $0xa00] sm:$0xff]
    %v444 = vld [vmem:[#allocation5 + $0xa08] sm:$0xff]
    %v445 = vld [vmem:[#allocation5 + $0xa10] sm:$0xff]
    %v446 = vld [vmem:[#allocation5 + $0xa18] sm:$0xff]
    %v447 = vld [vmem:[#allocation5 + $0xa20] sm:$0xff]
    %v448 = vld [vmem:[#allocation5 + $0xa28] sm:$0xff]
    %v449 = vld [vmem:[#allocation5 + $0xa30] sm:$0xff]
    %v450 = vld [vmem:[#allocation5 + $0xa38] sm:$0xff]
    %v451 = vld [vmem:[#allocation5 + $0xa40] sm:$0xff]
    %v452 = vld [vmem:[#allocation5 + $0xa48] sm:$0xff]
    %v453 = vld [vmem:[#allocation5 + $0xa50] sm:$0xff]
    %v454 = vld [vmem:[#allocation5 + $0xa58] sm:$0xff]
    %v455 = vld [vmem:[#allocation5 + $0xa60] sm:$0xff]
    %v456 = vld [vmem:[#allocation5 + $0xa68] sm:$0xff]
    %v457 = vld [vmem:[#allocation5 + $0xa70] sm:$0xff]
    %v458 = vld [vmem:[#allocation5 + $0xa78] sm:$0xff]
    %v459 = vld [vmem:[#allocation5 + $0xa80] sm:$0xff]
    %v460 = vld [vmem:[#allocation5 + $0xa88] sm:$0xff]
    %v461 = vld [vmem:[#allocation5 + $0xa90] sm:$0xff]
    %v462 = vld [vmem:[#allocation5 + $0xa98] sm:$0xff]
    %v463 = vld [vmem:[#allocation5 + $0xaa0] sm:$0xff]
    %v464 = vld [vmem:[#allocation5 + $0xaa8] sm:$0xff]
    %v465 = vld [vmem:[#allocation5 + $0xab0] sm:$0xff]
    %v466 = vld [vmem:[#allocation5 + $0xab8] sm:$0xff]
    %v467 = vld [vmem:[#allocation5 + $0xac0] sm:$0xff]
    %v468 = vld [vmem:[#allocation5 + $0xac8] sm:$0xff]
    %v469 = vld [vmem:[#allocation5 + $0xad0] sm:$0xff]
    %v470 = vld [vmem:[#allocation5 + $0xad8] sm:$0xff]
    %v471 = vld [vmem:[#allocation5 + $0xae0] sm:$0xff]
    %v472 = vld [vmem:[#allocation5 + $0xae8] sm:$0xff]
    %v473 = vld [vmem:[#allocation5 + $0xaf0] sm:$0xff]
    %v474 = vld [vmem:[#allocation5 + $0xaf8] sm:$0xff]
    %v475 = vld [vmem:[#allocation5 + $0xb00] sm:$0xff]
    %v476 = vld [vmem:[#allocation5 + $0xb08] sm:$0xff]
    %v477 = vld [vmem:[#allocation5 + $0xb10] sm:$0xff]
    %v478 = vld [vmem:[#allocation5 + $0xb18] sm:$0xff]
    %v479 = vld [vmem:[#allocation5 + $0xb20] sm:$0xff]
    %v480 = vld [vmem:[#allocation5 + $0xb28] sm:$0xff]
    %v481 = vld [vmem:[#allocation5 + $0xb30] sm:$0xff]
    %v482 = vld [vmem:[#allocation5 + $0xb38] sm:$0xff]
    %v483 = vld [vmem:[#allocation5 + $0xb40] sm:$0xff]
    %v484 = vld [vmem:[#allocation5 + $0xb48] sm:$0xff]
    %v485 = vld [vmem:[#allocation5 + $0xb50] sm:$0xff]
    %v486 = vld [vmem:[#allocation5 + $0xb58] sm:$0xff]
    %v487 = vld [vmem:[#allocation5 + $0xb60] sm:$0xff]
    %v488 = vld [vmem:[#allocation5 + $0xb68] sm:$0xff]
    %v489 = vld [vmem:[#allocation5 + $0xb70] sm:$0xff]
    %v490 = vld [vmem:[#allocation5 + $0xb78] sm:$0xff]
    %v491 = vld [vmem:[#allocation5 + $0xb80] sm:$0xff]
    %v492 = vld [vmem:[#allocation5 + $0xb88] sm:$0xff]
    %v493 = vld [vmem:[#allocation5 + $0xb90] sm:$0xff]
    %v494 = vld [vmem:[#allocation5 + $0xb98] sm:$0xff]
    %v495 = vld [vmem:[#allocation5 + $0xba0] sm:$0xff]
    %v496 = vld [vmem:[#allocation5 + $0xba8] sm:$0xff]
    %v497 = vld [vmem:[#allocation5 + $0xbb0] sm:$0xff]
    %v498 = vld [vmem:[#allocation5 + $0xbb8] sm:$0xff]
    %v499 = vld [vmem:[#allocation5 + $0xbc0] sm:$0xff]
    %v500 = vld [vmem:[#allocation5 + $0xbc8] sm:$0xff]
    %v501 = vld [vmem:[#allocation5 + $0xbd0] sm:$0xff]
    %v502 = vld [vmem:[#allocation5 + $0xbd8] sm:$0xff]
    %v503 = vld [vmem:[#allocation5 + $0xbe0] sm:$0xff]
    %v504 = vld [vmem:[#allocation5 + $0xbe8] sm:$0xff]
    %v505 = vld [vmem:[#allocation5 + $0xbf0] sm:$0xff]
    %v506 = vld [vmem:[#allocation5 + $0xbf8] sm:$0xff]
    %v510 = vunpack.c.l.b16 %v120
    %v511 = vunpack.c.h.b16 %v120
    %v512 = vunpack.c.l.b16 %v121
    %v513 = vunpack.c.h.b16 %v121
    %v514 = vunpack.c.l.b16 %v122
    %v515 = vunpack.c.h.b16 %v122
    %v516 = vpack.c.b16 %v510, %v510
    %v517 = vpack.c.b16 %v511, %v511
    %v518 = vpack.c.b16 %v512, %v512
    %v519 = vpack.c.b16 %v513, %v513
    %v520 = vpack.c.b16 %v514, %v514
    %v521 = vpack.c.b16 %v515, %v515
    %v912 = vunpack.c.l.b16 %v123
    %v913 = vunpack.c.h.b16 %v123
    %v914 = vunpack.c.l.b16 %v124
    %v915 = vunpack.c.h.b16 %v124
    %v916 = vunpack.c.l.b16 %v125
    %v917 = vunpack.c.h.b16 %v125
    %v918 = vunpack.c.l.b16 %v126
    %v919 = vunpack.c.h.b16 %v126
    %v920 = vunpack.c.l.b16 %v127
    %v921 = vunpack.c.h.b16 %v127
    %v922 = vunpack.c.l.b16 %v128
    %v923 = vunpack.c.h.b16 %v128
    %v924 = vunpack.c.l.b16 %v129
    %v925 = vunpack.c.h.b16 %v129
    %v926 = vunpack.c.l.b16 %v130
    %v927 = vunpack.c.h.b16 %v130
    %v928 = vunpack.c.l.b16 %v131
    %v929 = vunpack.c.h.b16 %v131
    %v930 = vunpack.c.l.b16 %v132
    %v931 = vunpack.c.h.b16 %v132
    %v932 = vunpack.c.l.b16 %v133
    %v933 = vunpack.c.h.b16 %v133
    %v934 = vunpack.c.l.b16 %v134
    %v935 = vunpack.c.h.b16 %v134
    %v936 = vunpack.c.l.b16 %v135
    %v937 = vunpack.c.h.b16 %v135
    %v938 = vunpack.c.l.b16 %v136
    %v939 = vunpack.c.h.b16 %v136
    %v940 = vunpack.c.l.b16 %v137
    %v941 = vunpack.c.h.b16 %v137
    %v942 = vunpack.c.l.b16 %v138
    %v943 = vunpack.c.h.b16 %v138
    %v944 = vunpack.c.l.b16 %v139
    %v945 = vunpack.c.h.b16 %v139
    %v946 = vunpack.c.l.b16 %v140
    %v947 = vunpack.c.h.b16 %v140
    %v948 = vunpack.c.l.b16 %v141
    %v949 = vunpack.c.h.b16 %v141
    %v950 = vunpack.c.l.b16 %v142
    %v951 = vunpack.c.h.b16 %v142
    %v952 = vunpack.c.l.b16 %v143
    %v953 = vunpack.c.h.b16 %v143
    %v954 = vunpack.c.l.b16 %v144
    %v955 = vunpack.c.h.b16 %v144
    %v956 = vunpack.c.l.b16 %v145
    %v957 = vunpack.c.h.b16 %v145
    %v958 = vunpack.c.l.b16 %v146
    %v959 = vunpack.c.h.b16 %v146
    %v960 = vunpack.c.l.b16 %v147
    %v961 = vunpack.c.h.b16 %v147
    %v962 = vunpack.c.l.b16 %v148
    %v963 = vunpack.c.h.b16 %v148
    %v964 = vunpack.c.l.b16 %v149
    %v965 = vunpack.c.h.b16 %v149
    %v966 = vunpack.c.l.b16 %v150
    %v967 = vunpack.c.h.b16 %v150
    %v968 = vunpack.c.l.b16 %v151
    %v969 = vunpack.c.h.b16 %v151
    %v970 = vunpack.c.l.b16 %v152
    %v971 = vunpack.c.h.b16 %v152
    %v972 = vunpack.c.l.b16 %v153
    %v973 = vunpack.c.h.b16 %v153
    %v974 = vunpack.c.l.b16 %v154
    %v975 = vunpack.c.h.b16 %v154
    %v976 = vunpack.c.l.b16 %v155
    %v977 = vunpack.c.h.b16 %v155
    %v978 = vunpack.c.l.b16 %v156
    %v979 = vunpack.c.h.b16 %v156
    %v980 = vunpack.c.l.b16 %v157
    %v981 = vunpack.c.h.b16 %v157
    %v982 = vunpack.c.l.b16 %v158
    %v983 = vunpack.c.h.b16 %v158
    %v984 = vunpack.c.l.b16 %v159
    %v985 = vunpack.c.h.b16 %v159
    %v986 = vunpack.c.l.b16 %v160
    %v987 = vunpack.c.h.b16 %v160
    %v988 = vunpack.c.l.b16 %v161
    %v989 = vunpack.c.h.b16 %v161
    %v990 = vunpack.c.l.b16 %v162
    %v991 = vunpack.c.h.b16 %v162
    %v992 = vunpack.c.l.b16 %v163
    %v993 = vunpack.c.h.b16 %v163
    %v994 = vunpack.c.l.b16 %v164
    %v995 = vunpack.c.h.b16 %v164
    %v996 = vunpack.c.l.b16 %v165
    %v997 = vunpack.c.h.b16 %v165
    %v998 = vunpack.c.l.b16 %v166
    %v999 = vunpack.c.h.b16 %v166
    %v1000 = vunpack.c.l.b16 %v167
    %v1001 = vunpack.c.h.b16 %v167
    %v1002 = vunpack.c.l.b16 %v168
    %v1003 = vunpack.c.h.b16 %v168
    %v1004 = vunpack.c.l.b16 %v169
    %v1005 = vunpack.c.h.b16 %v169
    %v1006 = vunpack.c.l.b16 %v170
    %v1007 = vunpack.c.h.b16 %v170
    %v1008 = vunpack.c.l.b16 %v171
    %v1009 = vunpack.c.h.b16 %v171
    %v1010 = vunpack.c.l.b16 %v172
    %v1011 = vunpack.c.h.b16 %v172
    %v1012 = vunpack.c.l.b16 %v173
    %v1013 = vunpack.c.h.b16 %v173
    %v1014 = vunpack.c.l.b16 %v174
    %v1015 = vunpack.c.h.b16 %v174
    %v1016 = vunpack.c.l.b16 %v175
    %v1017 = vunpack.c.h.b16 %v175
    %v1018 = vunpack.c.l.b16 %v176
    %v1019 = vunpack.c.h.b16 %v176
    %v1020 = vunpack.c.l.b16 %v177
    %v1021 = vunpack.c.h.b16 %v177
    %v1022 = vunpack.c.l.b16 %v178
    %v1023 = vunpack.c.h.b16 %v178
    %v1024 = vunpack.c.l.b16 %v179
    %v1025 = vunpack.c.h.b16 %v179
    %v1026 = vunpack.c.l.b16 %v180
    %v1027 = vunpack.c.h.b16 %v180
    %v1028 = vunpack.c.l.b16 %v181
    %v1029 = vunpack.c.h.b16 %v181
    %v1030 = vunpack.c.l.b16 %v182
    %v1031 = vunpack.c.h.b16 %v182
    %v1032 = vunpack.c.l.b16 %v183
    %v1033 = vunpack.c.h.b16 %v183
    %v1034 = vunpack.c.l.b16 %v184
    %v1035 = vunpack.c.h.b16 %v184
    %v1036 = vunpack.c.l.b16 %v185
    %v1037 = vunpack.c.h.b16 %v185
    %v1038 = vunpack.c.l.b16 %v186
    %v1039 = vunpack.c.h.b16 %v186
    %v1040 = vunpack.c.l.b16 %v187
    %v1041 = vunpack.c.h.b16 %v187
    %v1042 = vunpack.c.l.b16 %v188
    %v1043 = vunpack.c.h.b16 %v188
    %v1044 = vunpack.c.l.b16 %v189
    %v1045 = vunpack.c.h.b16 %v189
    %v1046 = vunpack.c.l.b16 %v190
    %v1047 = vunpack.c.h.b16 %v190
    %v1048 = vunpack.c.l.b16 %v191
    %v1049 = vunpack.c.h.b16 %v191
    %v1050 = vunpack.c.l.b16 %v192
    %v1051 = vunpack.c.h.b16 %v192
    %v1052 = vunpack.c.l.b16 %v193
    %v1053 = vunpack.c.h.b16 %v193
    %v1054 = vunpack.c.l.b16 %v194
    %v1055 = vunpack.c.h.b16 %v194
    %v1056 = vunpack.c.l.b16 %v195
    %v1057 = vunpack.c.h.b16 %v195
    %v1058 = vunpack.c.l.b16 %v196
    %v1059 = vunpack.c.h.b16 %v196
    %v1060 = vunpack.c.l.b16 %v197
    %v1061 = vunpack.c.h.b16 %v197
    %v1062 = vunpack.c.l.b16 %v198
    %v1063 = vunpack.c.h.b16 %v198
    %v1064 = vunpack.c.l.b16 %v199
    %v1065 = vunpack.c.h.b16 %v199
    %v1066 = vunpack.c.l.b16 %v200
    %v1067 = vunpack.c.h.b16 %v200
    %v1068 = vunpack.c.l.b16 %v201
    %v1069 = vunpack.c.h.b16 %v201
    %v1070 = vunpack.c.l.b16 %v202
    %v1071 = vunpack.c.h.b16 %v202
    %v1072 = vunpack.c.l.b16 %v203
    %v1073 = vunpack.c.h.b16 %v203
    %v1074 = vunpack.c.l.b16 %v204
    %v1075 = vunpack.c.h.b16 %v204
    %v1076 = vunpack.c.l.b16 %v205
    %v1077 = vunpack.c.h.b16 %v205
    %v1078 = vunpack.c.l.b16 %v206
    %v1079 = vunpack.c.h.b16 %v206
    %v1080 = vunpack.c.l.b16 %v207
    %v1081 = vunpack.c.h.b16 %v207
    %v1082 = vunpack.c.l.b16 %v208
    %v1083 = vunpack.c.h.b16 %v208
    %v1084 = vunpack.c.l.b16 %v209
    %v1085 = vunpack.c.h.b16 %v209
    %v1086 = vunpack.c.l.b16 %v210
    %v1087 = vunpack.c.h.b16 %v210
    %v1088 = vunpack.c.l.b16 %v211
    %v1089 = vunpack.c.h.b16 %v211
    %v1090 = vunpack.c.l.b16 %v212
    %v1091 = vunpack.c.h.b16 %v212
    %v1092 = vunpack.c.l.b16 %v213
    %v1093 = vunpack.c.h.b16 %v213
    %v1094 = vunpack.c.l.b16 %v214
    %v1095 = vunpack.c.h.b16 %v214
    %v1096 = vunpack.c.l.b16 %v215
    %v1097 = vunpack.c.h.b16 %v215
    %v1098 = vunpack.c.l.b16 %v216
    %v1099 = vunpack.c.h.b16 %v216
    %v1100 = vunpack.c.l.b16 %v217
    %v1101 = vunpack.c.h.b16 %v217
    %v1102 = vunpack.c.l.b16 %v218
    %v1103 = vunpack.c.h.b16 %v218
    %v1104 = vunpack.c.l.b16 %v219
    %v1105 = vunpack.c.h.b16 %v219
    %v1106 = vunpack.c.l.b16 %v220
    %v1107 = vunpack.c.h.b16 %v220
    %v1108 = vunpack.c.l.b16 %v221
    %v1109 = vunpack.c.h.b16 %v221
    %v1110 = vunpack.c.l.b16 %v222
    %v1111 = vunpack.c.h.b16 %v222
    %v1112 = vunpack.c.l.b16 %v223
    %v1113 = vunpack.c.h.b16 %v223
    %v1114 = vunpack.c.l.b16 %v224
    %v1115 = vunpack.c.h.b16 %v224
    %v1116 = vunpack.c.l.b16 %v225
    %v1117 = vunpack.c.h.b16 %v225
    %v1118 = vunpack.c.l.b16 %v226
    %v1119 = vunpack.c.h.b16 %v226
    %v1120 = vunpack.c.l.b16 %v227
    %v1121 = vunpack.c.h.b16 %v227
    %v1122 = vunpack.c.l.b16 %v228
    %v1123 = vunpack.c.h.b16 %v228
    %v1124 = vunpack.c.l.b16 %v229
    %v1125 = vunpack.c.h.b16 %v229
    %v1126 = vunpack.c.l.b16 %v230
    %v1127 = vunpack.c.h.b16 %v230
    %v1128 = vunpack.c.l.b16 %v231
    %v1129 = vunpack.c.h.b16 %v231
    %v1130 = vunpack.c.l.b16 %v232
    %v1131 = vunpack.c.h.b16 %v232
    %v1132 = vunpack.c.l.b16 %v233
    %v1133 = vunpack.c.h.b16 %v233
    %v1134 = vunpack.c.l.b16 %v234
    %v1135 = vunpack.c.h.b16 %v234
    %v1136 = vunpack.c.l.b16 %v235
    %v1137 = vunpack.c.h.b16 %v235
    %v1138 = vunpack.c.l.b16 %v236
    %v1139 = vunpack.c.h.b16 %v236
    %v1140 = vunpack.c.l.b16 %v237
    %v1141 = vunpack.c.h.b16 %v237
    %v1142 = vunpack.c.l.b16 %v238
    %v1143 = vunpack.c.h.b16 %v238
    %v1144 = vunpack.c.l.b16 %v239
    %v1145 = vunpack.c.h.b16 %v239
    %v1146 = vunpack.c.l.b16 %v240
    %v1147 = vunpack.c.h.b16 %v240
    %v1148 = vunpack.c.l.b16 %v241
    %v1149 = vunpack.c.h.b16 %v241
    %v1150 = vunpack.c.l.b16 %v242
    %v1151 = vunpack.c.h.b16 %v242
    %v1152 = vunpack.c.l.b16 %v243
    %v1153 = vunpack.c.h.b16 %v243
    %v1154 = vunpack.c.l.b16 %v244
    %v1155 = vunpack.c.h.b16 %v244
    %v1156 = vunpack.c.l.b16 %v245
    %v1157 = vunpack.c.h.b16 %v245
    %v1158 = vunpack.c.l.b16 %v246
    %v1159 = vunpack.c.h.b16 %v246
    %v1160 = vunpack.c.l.b16 %v247
    %v1161 = vunpack.c.h.b16 %v247
    %v1162 = vunpack.c.l.b16 %v248
    %v1163 = vunpack.c.h.b16 %v248
    %v1164 = vunpack.c.l.b16 %v249
    %v1165 = vunpack.c.h.b16 %v249
    %v1166 = vunpack.c.l.b16 %v250
    %v1167 = vunpack.c.h.b16 %v250
    %v1168 = vunpack.c.l.b16 %v251
    %v1169 = vunpack.c.h.b16 %v251
    %v1170 = vunpack.c.l.b16 %v252
    %v1171 = vunpack.c.h.b16 %v252
    %v1172 = vunpack.c.l.b16 %v253
    %v1173 = vunpack.c.h.b16 %v253
    %v1174 = vunpack.c.l.b16 %v254
    %v1175 = vunpack.c.h.b16 %v254
    %v1176 = vunpack.c.l.b16 %v255
    %v1177 = vunpack.c.h.b16 %v255
    %v1178 = vunpack.c.l.b16 %v256
    %v1179 = vunpack.c.h.b16 %v256
    %v1180 = vunpack.c.l.b16 %v257
    %v1181 = vunpack.c.h.b16 %v257
    %v1182 = vunpack.c.l.b16 %v258
    %v1183 = vunpack.c.h.b16 %v258
    %v1184 = vunpack.c.l.b16 %v259
    %v1185 = vunpack.c.h.b16 %v259
    %v1186 = vunpack.c.l.b16 %v260
    %v1187 = vunpack.c.h.b16 %v260
    %v1188 = vunpack.c.l.b16 %v261
    %v1189 = vunpack.c.h.b16 %v261
    %v1190 = vunpack.c.l.b16 %v262
    %v1191 = vunpack.c.h.b16 %v262
    %v1192 = vunpack.c.l.b16 %v263
    %v1193 = vunpack.c.h.b16 %v263
    %v1194 = vunpack.c.l.b16 %v264
    %v1195 = vunpack.c.h.b16 %v264
    %v1196 = vunpack.c.l.b16 %v265
    %v1197 = vunpack.c.h.b16 %v265
    %v1198 = vunpack.c.l.b16 %v266
    %v1199 = vunpack.c.h.b16 %v266
    %v1200 = vunpack.c.l.b16 %v267
    %v1201 = vunpack.c.h.b16 %v267
    %v1202 = vunpack.c.l.b16 %v268
    %v1203 = vunpack.c.h.b16 %v268
    %v1204 = vunpack.c.l.b16 %v269
    %v1205 = vunpack.c.h.b16 %v269
    %v1206 = vunpack.c.l.b16 %v270
    %v1207 = vunpack.c.h.b16 %v270
    %v1208 = vunpack.c.l.b16 %v271
    %v1209 = vunpack.c.h.b16 %v271
    %v1210 = vunpack.c.l.b16 %v272
    %v1211 = vunpack.c.h.b16 %v272
    %v1212 = vunpack.c.l.b16 %v273
    %v1213 = vunpack.c.h.b16 %v273
    %v1214 = vunpack.c.l.b16 %v274
    %v1215 = vunpack.c.h.b16 %v274
    %v1216 = vunpack.c.l.b16 %v275
    %v1217 = vunpack.c.h.b16 %v275
    %v1218 = vunpack.c.l.b16 %v276
    %v1219 = vunpack.c.h.b16 %v276
    %v1220 = vunpack.c.l.b16 %v277
    %v1221 = vunpack.c.h.b16 %v277
    %v1222 = vunpack.c.l.b16 %v278
    %v1223 = vunpack.c.h.b16 %v278
    %v1224 = vunpack.c.l.b16 %v279
    %v1225 = vunpack.c.h.b16 %v279
    %v1226 = vunpack.c.l.b16 %v280
    %v1227 = vunpack.c.h.b16 %v280
    %v1228 = vunpack.c.l.b16 %v281
    %v1229 = vunpack.c.h.b16 %v281
    %v1230 = vunpack.c.l.b16 %v282
    %v1231 = vunpack.c.h.b16 %v282
    %v1232 = vunpack.c.l.b16 %v283
    %v1233 = vunpack.c.h.b16 %v283
    %v1234 = vunpack.c.l.b16 %v284
    %v1235 = vunpack.c.h.b16 %v284
    %v1236 = vunpack.c.l.b16 %v285
    %v1237 = vunpack.c.h.b16 %v285
    %v1238 = vunpack.c.l.b16 %v286
    %v1239 = vunpack.c.h.b16 %v286
    %v1240 = vunpack.c.l.b16 %v287
    %v1241 = vunpack.c.h.b16 %v287
    %v1242 = vunpack.c.l.b16 %v288
    %v1243 = vunpack.c.h.b16 %v288
    %v1244 = vunpack.c.l.b16 %v289
    %v1245 = vunpack.c.h.b16 %v289
    %v1246 = vunpack.c.l.b16 %v290
    %v1247 = vunpack.c.h.b16 %v290
    %v1248 = vunpack.c.l.b16 %v291
    %v1249 = vunpack.c.h.b16 %v291
    %v1250 = vunpack.c.l.b16 %v292
    %v1251 = vunpack.c.h.b16 %v292
    %v1252 = vunpack.c.l.b16 %v293
    %v1253 = vunpack.c.h.b16 %v293
    %v1254 = vunpack.c.l.b16 %v294
    %v1255 = vunpack.c.h.b16 %v294
    %v1256 = vunpack.c.l.b16 %v295
    %v1257 = vunpack.c.h.b16 %v295
    %v1258 = vunpack.c.l.b16 %v296
    %v1259 = vunpack.c.h.b16 %v296
    %v1260 = vunpack.c.l.b16 %v297
    %v1261 = vunpack.c.h.b16 %v297
    %v1262 = vunpack.c.l.b16 %v298
    %v1263 = vunpack.c.h.b16 %v298
    %v1264 = vunpack.c.l.b16 %v299
    %v1265 = vunpack.c.h.b16 %v299
    %v1266 = vunpack.c.l.b16 %v300
    %v1267 = vunpack.c.h.b16 %v300
    %v1268 = vunpack.c.l.b16 %v301
    %v1269 = vunpack.c.h.b16 %v301
    %v1270 = vunpack.c.l.b16 %v302
    %v1271 = vunpack.c.h.b16 %v302
    %v1272 = vunpack.c.l.b16 %v303
    %v1273 = vunpack.c.h.b16 %v303
    %v1274 = vunpack.c.l.b16 %v304
    %v1275 = vunpack.c.h.b16 %v304
    %v1276 = vunpack.c.l.b16 %v305
    %v1277 = vunpack.c.h.b16 %v305
    %v1278 = vunpack.c.l.b16 %v306
    %v1279 = vunpack.c.h.b16 %v306
    %v1280 = vunpack.c.l.b16 %v307
    %v1281 = vunpack.c.h.b16 %v307
    %v1282 = vunpack.c.l.b16 %v308
    %v1283 = vunpack.c.h.b16 %v308
    %v1284 = vunpack.c.l.b16 %v309
    %v1285 = vunpack.c.h.b16 %v309
    %v1286 = vunpack.c.l.b16 %v310
    %v1287 = vunpack.c.h.b16 %v310
    %v1288 = vunpack.c.l.b16 %v311
    %v1289 = vunpack.c.h.b16 %v311
    %v1290 = vunpack.c.l.b16 %v312
    %v1291 = vunpack.c.h.b16 %v312
    %v1292 = vunpack.c.l.b16 %v313
    %v1293 = vunpack.c.h.b16 %v313
    %v1294 = vunpack.c.l.b16 %v314
    %v1295 = vunpack.c.h.b16 %v314
    %v1296 = vunpack.c.l.b16 %v315
    %v1297 = vunpack.c.h.b16 %v315
    %v1298 = vunpack.c.l.b16 %v316
    %v1299 = vunpack.c.h.b16 %v316
    %v1300 = vunpack.c.l.b16 %v317
    %v1301 = vunpack.c.h.b16 %v317
    %v1302 = vunpack.c.l.b16 %v318
    %v1303 = vunpack.c.h.b16 %v318
    %v1304 = vunpack.c.l.b16 %v319
    %v1305 = vunpack.c.h.b16 %v319
    %v1306 = vunpack.c.l.b16 %v320
    %v1307 = vunpack.c.h.b16 %v320
    %v1308 = vunpack.c.l.b16 %v321
    %v1309 = vunpack.c.h.b16 %v321
    %v1310 = vunpack.c.l.b16 %v322
    %v1311 = vunpack.c.h.b16 %v322
    %v1312 = vunpack.c.l.b16 %v323
    %v1313 = vunpack.c.h.b16 %v323
    %v1314 = vunpack.c.l.b16 %v324
    %v1315 = vunpack.c.h.b16 %v324
    %v1316 = vunpack.c.l.b16 %v325
    %v1317 = vunpack.c.h.b16 %v325
    %v1318 = vunpack.c.l.b16 %v326
    %v1319 = vunpack.c.h.b16 %v326
    %v1320 = vunpack.c.l.b16 %v327
    %v1321 = vunpack.c.h.b16 %v327
    %v1322 = vunpack.c.l.b16 %v328
    %v1323 = vunpack.c.h.b16 %v328
    %v1324 = vunpack.c.l.b16 %v329
    %v1325 = vunpack.c.h.b16 %v329
    %v1326 = vunpack.c.l.b16 %v330
    %v1327 = vunpack.c.h.b16 %v330
    %v1328 = vunpack.c.l.b16 %v331
    %v1329 = vunpack.c.h.b16 %v331
    %v1330 = vunpack.c.l.b16 %v332
    %v1331 = vunpack.c.h.b16 %v332
    %v1332 = vunpack.c.l.b16 %v333
    %v1333 = vunpack.c.h.b16 %v333
    %v1334 = vunpack.c.l.b16 %v334
    %v1335 = vunpack.c.h.b16 %v334
    %v1336 = vunpack.c.l.b16 %v335
    %v1337 = vunpack.c.h.b16 %v335
    %v1338 = vunpack.c.l.b16 %v336
    %v1339 = vunpack.c.h.b16 %v336
    %v1340 = vunpack.c.l.b16 %v337
    %v1341 = vunpack.c.h.b16 %v337
    %v1342 = vunpack.c.l.b16 %v338
    %v1343 = vunpack.c.h.b16 %v338
    %v1344 = vunpack.c.l.b16 %v339
    %v1345 = vunpack.c.h.b16 %v339
    %v1346 = vunpack.c.l.b16 %v340
    %v1347 = vunpack.c.h.b16 %v340
    %v1348 = vunpack.c.l.b16 %v341
    %v1349 = vunpack.c.h.b16 %v341
    %v1350 = vunpack.c.l.b16 %v342
    %v1351 = vunpack.c.h.b16 %v342
    %v1352 = vunpack.c.l.b16 %v343
    %v1353 = vunpack.c.h.b16 %v343
    %v1354 = vunpack.c.l.b16 %v344
    %v1355 = vunpack.c.h.b16 %v344
    %v1356 = vunpack.c.l.b16 %v345
    %v1357 = vunpack.c.h.b16 %v345
    %v1358 = vunpack.c.l.b16 %v346
    %v1359 = vunpack.c.h.b16 %v346
    %v1360 = vunpack.c.l.b16 %v347
    %v1361 = vunpack.c.h.b16 %v347
    %v1362 = vunpack.c.l.b16 %v348
    %v1363 = vunpack.c.h.b16 %v348
    %v1364 = vunpack.c.l.b16 %v349
    %v1365 = vunpack.c.h.b16 %v349
    %v1366 = vunpack.c.l.b16 %v350
    %v1367 = vunpack.c.h.b16 %v350
    %v1368 = vunpack.c.l.b16 %v351
    %v1369 = vunpack.c.h.b16 %v351
    %v1370 = vunpack.c.l.b16 %v352
    %v1371 = vunpack.c.h.b16 %v352
    %v1372 = vunpack.c.l.b16 %v353
    %v1373 = vunpack.c.h.b16 %v353
    %v1374 = vunpack.c.l.b16 %v354
    %v1375 = vunpack.c.h.b16 %v354
    %v1376 = vunpack.c.l.b16 %v355
    %v1377 = vunpack.c.h.b16 %v355
    %v1378 = vunpack.c.l.b16 %v356
    %v1379 = vunpack.c.h.b16 %v356
    %v1380 = vunpack.c.l.b16 %v357
    %v1381 = vunpack.c.h.b16 %v357
    %v1382 = vunpack.c.l.b16 %v358
    %v1383 = vunpack.c.h.b16 %v358
    %v1384 = vunpack.c.l.b16 %v359
    %v1385 = vunpack.c.h.b16 %v359
    %v1386 = vunpack.c.l.b16 %v360
    %v1387 = vunpack.c.h.b16 %v360
    %v1388 = vunpack.c.l.b16 %v361
    %v1389 = vunpack.c.h.b16 %v361
    %v1390 = vunpack.c.l.b16 %v362
    %v1391 = vunpack.c.h.b16 %v362
    %v1392 = vunpack.c.l.b16 %v363
    %v1393 = vunpack.c.h.b16 %v363
    %v1394 = vunpack.c.l.b16 %v364
    %v1395 = vunpack.c.h.b16 %v364
    %v1396 = vunpack.c.l.b16 %v365
    %v1397 = vunpack.c.h.b16 %v365
    %v1398 = vunpack.c.l.b16 %v366
    %v1399 = vunpack.c.h.b16 %v366
    %v1400 = vunpack.c.l.b16 %v367
    %v1401 = vunpack.c.h.b16 %v367
    %v1402 = vunpack.c.l.b16 %v368
    %v1403 = vunpack.c.h.b16 %v368
    %v1404 = vunpack.c.l.b16 %v369
    %v1405 = vunpack.c.h.b16 %v369
    %v1406 = vunpack.c.l.b16 %v370
    %v1407 = vunpack.c.h.b16 %v370
    %v1408 = vunpack.c.l.b16 %v371
    %v1409 = vunpack.c.h.b16 %v371
    %v1410 = vunpack.c.l.b16 %v372
    %v1411 = vunpack.c.h.b16 %v372
    %v1412 = vunpack.c.l.b16 %v373
    %v1413 = vunpack.c.h.b16 %v373
    %v1414 = vunpack.c.l.b16 %v374
    %v1415 = vunpack.c.h.b16 %v374
    %v1416 = vunpack.c.l.b16 %v375
    %v1417 = vunpack.c.h.b16 %v375
    %v1418 = vunpack.c.l.b16 %v376
    %v1419 = vunpack.c.h.b16 %v376
    %v1420 = vunpack.c.l.b16 %v377
    %v1421 = vunpack.c.h.b16 %v377
    %v1422 = vunpack.c.l.b16 %v378
    %v1423 = vunpack.c.h.b16 %v378
    %v1424 = vunpack.c.l.b16 %v379
    %v1425 = vunpack.c.h.b16 %v379
    %v1426 = vunpack.c.l.b16 %v380
    %v1427 = vunpack.c.h.b16 %v380
    %v1428 = vunpack.c.l.b16 %v381
    %v1429 = vunpack.c.h.b16 %v381
    %v1430 = vunpack.c.l.b16 %v382
    %v1431 = vunpack.c.h.b16 %v382
    %v1432 = vunpack.c.l.b16 %v383
    %v1433 = vunpack.c.h.b16 %v383
    %v1434 = vunpack.c.l.b16 %v384
    %v1435 = vunpack.c.h.b16 %v384
    %v1436 = vunpack.c.l.b16 %v385
    %v1437 = vunpack.c.h.b16 %v385
    %v1438 = vunpack.c.l.b16 %v386
    %v1439 = vunpack.c.h.b16 %v386
    %v1440 = vunpack.c.l.b16 %v387
    %v1441 = vunpack.c.h.b16 %v387
    %v1442 = vunpack.c.l.b16 %v388
    %v1443 = vunpack.c.h.b16 %v388
    %v1444 = vunpack.c.l.b16 %v389
    %v1445 = vunpack.c.h.b16 %v389
    %v1446 = vunpack.c.l.b16 %v390
    %v1447 = vunpack.c.h.b16 %v390
    %v1448 = vunpack.c.l.b16 %v391
    %v1449 = vunpack.c.h.b16 %v391
    %v1450 = vunpack.c.l.b16 %v392
    %v1451 = vunpack.c.h.b16 %v392
    %v1452 = vunpack.c.l.b16 %v393
    %v1453 = vunpack.c.h.b16 %v393
    %v1454 = vunpack.c.l.b16 %v394
    %v1455 = vunpack.c.h.b16 %v394
    %v1456 = vunpack.c.l.b16 %v395
    %v1457 = vunpack.c.h.b16 %v395
    %v1458 = vunpack.c.l.b16 %v396
    %v1459 = vunpack.c.h.b16 %v396
    %v1460 = vunpack.c.l.b16 %v397
    %v1461 = vunpack.c.h.b16 %v397
    %v1462 = vunpack.c.l.b16 %v398
    %v1463 = vunpack.c.h.b16 %v398
    %v1464 = vunpack.c.l.b16 %v399
    %v1465 = vunpack.c.h.b16 %v399
    %v1466 = vunpack.c.l.b16 %v400
    %v1467 = vunpack.c.h.b16 %v400
    %v1468 = vunpack.c.l.b16 %v401
    %v1469 = vunpack.c.h.b16 %v401
    %v1470 = vunpack.c.l.b16 %v402
    %v1471 = vunpack.c.h.b16 %v402
    %v1472 = vunpack.c.l.b16 %v403
    %v1473 = vunpack.c.h.b16 %v403
    %v1474 = vunpack.c.l.b16 %v404
    %v1475 = vunpack.c.h.b16 %v404
    %v1476 = vunpack.c.l.b16 %v405
    %v1477 = vunpack.c.h.b16 %v405
    %v1478 = vunpack.c.l.b16 %v406
    %v1479 = vunpack.c.h.b16 %v406
    %v1480 = vunpack.c.l.b16 %v407
    %v1481 = vunpack.c.h.b16 %v407
    %v1482 = vunpack.c.l.b16 %v408
    %v1483 = vunpack.c.h.b16 %v408
    %v1484 = vunpack.c.l.b16 %v409
    %v1485 = vunpack.c.h.b16 %v409
    %v1486 = vunpack.c.l.b16 %v410
    %v1487 = vunpack.c.h.b16 %v410
    %v1488 = vunpack.c.l.b16 %v411
    %v1489 = vunpack.c.h.b16 %v411
    %v1490 = vunpack.c.l.b16 %v412
    %v1491 = vunpack.c.h.b16 %v412
    %v1492 = vunpack.c.l.b16 %v413
    %v1493 = vunpack.c.h.b16 %v413
    %v1494 = vunpack.c.l.b16 %v414
    %v1495 = vunpack.c.h.b16 %v414
    %v1496 = vunpack.c.l.b16 %v415
    %v1497 = vunpack.c.h.b16 %v415
    %v1498 = vunpack.c.l.b16 %v416
    %v1499 = vunpack.c.h.b16 %v416
    %v1500 = vunpack.c.l.b16 %v417
    %v1501 = vunpack.c.h.b16 %v417
    %v1502 = vunpack.c.l.b16 %v418
    %v1503 = vunpack.c.h.b16 %v418
    %v1504 = vunpack.c.l.b16 %v419
    %v1505 = vunpack.c.h.b16 %v419
    %v1506 = vunpack.c.l.b16 %v420
    %v1507 = vunpack.c.h.b16 %v420
    %v1508 = vunpack.c.l.b16 %v421
    %v1509 = vunpack.c.h.b16 %v421
    %v1510 = vunpack.c.l.b16 %v422
    %v1511 = vunpack.c.h.b16 %v422
    %v1512 = vunpack.c.l.b16 %v423
    %v1513 = vunpack.c.h.b16 %v423
    %v1514 = vunpack.c.l.b16 %v424
    %v1515 = vunpack.c.h.b16 %v424
    %v1516 = vunpack.c.l.b16 %v425
    %v1517 = vunpack.c.h.b16 %v425
    %v1518 = vunpack.c.l.b16 %v426
    %v1519 = vunpack.c.h.b16 %v426
    %v1520 = vunpack.c.l.b16 %v427
    %v1521 = vunpack.c.h.b16 %v427
    %v1522 = vunpack.c.l.b16 %v428
    %v1523 = vunpack.c.h.b16 %v428
    %v1524 = vunpack.c.l.b16 %v429
    %v1525 = vunpack.c.h.b16 %v429
    %v1526 = vunpack.c.l.b16 %v430
    %v1527 = vunpack.c.h.b16 %v430
    %v1528 = vunpack.c.l.b16 %v431
    %v1529 = vunpack.c.h.b16 %v431
    %v1530 = vunpack.c.l.b16 %v432
    %v1531 = vunpack.c.h.b16 %v432
    %v1532 = vunpack.c.l.b16 %v433
    %v1533 = vunpack.c.h.b16 %v433
    %v1534 = vunpack.c.l.b16 %v434
    %v1535 = vunpack.c.h.b16 %v434
    %v1536 = vunpack.c.l.b16 %v435
    %v1537 = vunpack.c.h.b16 %v435
    %v1538 = vunpack.c.l.b16 %v436
    %v1539 = vunpack.c.h.b16 %v436
    %v1540 = vunpack.c.l.b16 %v437
    %v1541 = vunpack.c.h.b16 %v437
    %v1542 = vunpack.c.l.b16 %v438
    %v1543 = vunpack.c.h.b16 %v438
    %v1544 = vunpack.c.l.b16 %v439
    %v1545 = vunpack.c.h.b16 %v439
    %v1546 = vunpack.c.l.b16 %v440
    %v1547 = vunpack.c.h.b16 %v440
    %v1548 = vunpack.c.l.b16 %v441
    %v1549 = vunpack.c.h.b16 %v441
    %v1550 = vunpack.c.l.b16 %v442
    %v1551 = vunpack.c.h.b16 %v442
    %v1552 = vunpack.c.l.b16 %v443
    %v1553 = vunpack.c.h.b16 %v443
    %v1554 = vunpack.c.l.b16 %v444
    %v1555 = vunpack.c.h.b16 %v444
    %v1556 = vunpack.c.l.b16 %v445
    %v1557 = vunpack.c.h.b16 %v445
    %v1558 = vunpack.c.l.b16 %v446
    %v1559 = vunpack.c.h.b16 %v446
    %v1560 = vunpack.c.l.b16 %v447
    %v1561 = vunpack.c.h.b16 %v447
    %v1562 = vunpack.c.l.b16 %v448
    %v1563 = vunpack.c.h.b16 %v448
    %v1564 = vunpack.c.l.b16 %v449
    %v1565 = vunpack.c.h.b16 %v449
    %v1566 = vunpack.c.l.b16 %v450
    %v1567 = vunpack.c.h.b16 %v450
    %v1568 = vunpack.c.l.b16 %v451
    %v1569 = vunpack.c.h.b16 %v451
    %v1570 = vunpack.c.l.b16 %v452
    %v1571 = vunpack.c.h.b16 %v452
    %v1572 = vunpack.c.l.b16 %v453
    %v1573 = vunpack.c.h.b16 %v453
    %v1574 = vunpack.c.l.b16 %v454
    %v1575 = vunpack.c.h.b16 %v454
    %v1576 = vunpack.c.l.b16 %v455
    %v1577 = vunpack.c.h.b16 %v455
    %v1578 = vunpack.c.l.b16 %v456
    %v1579 = vunpack.c.h.b16 %v456
    %v1580 = vunpack.c.l.b16 %v457
    %v1581 = vunpack.c.h.b16 %v457
    %v1582 = vunpack.c.l.b16 %v458
    %v1583 = vunpack.c.h.b16 %v458
    %v1584 = vunpack.c.l.b16 %v459
    %v1585 = vunpack.c.h.b16 %v459
    %v1586 = vunpack.c.l.b16 %v460
    %v1587 = vunpack.c.h.b16 %v460
    %v1588 = vunpack.c.l.b16 %v461
    %v1589 = vunpack.c.h.b16 %v461
    %v1590 = vunpack.c.l.b16 %v462
    %v1591 = vunpack.c.h.b16 %v462
    %v1592 = vunpack.c.l.b16 %v463
    %v1593 = vunpack.c.h.b16 %v463
    %v1594 = vunpack.c.l.b16 %v464
    %v1595 = vunpack.c.h.b16 %v464
    %v1596 = vunpack.c.l.b16 %v465
    %v1597 = vunpack.c.h.b16 %v465
    %v1598 = vunpack.c.l.b16 %v466
    %v1599 = vunpack.c.h.b16 %v466
    %v1600 = vunpack.c.l.b16 %v467
    %v1601 = vunpack.c.h.b16 %v467
    %v1602 = vunpack.c.l.b16 %v468
    %v1603 = vunpack.c.h.b16 %v468
    %v1604 = vunpack.c.l.b16 %v469
    %v1605 = vunpack.c.h.b16 %v469
    %v1606 = vunpack.c.l.b16 %v470
    %v1607 = vunpack.c.h.b16 %v470
    %v1608 = vunpack.c.l.b16 %v471
    %v1609 = vunpack.c.h.b16 %v471
    %v1610 = vunpack.c.l.b16 %v472
    %v1611 = vunpack.c.h.b16 %v472
    %v1612 = vunpack.c.l.b16 %v473
    %v1613 = vunpack.c.h.b16 %v473
    %v1614 = vunpack.c.l.b16 %v474
    %v1615 = vunpack.c.h.b16 %v474
    %v1616 = vunpack.c.l.b16 %v475
    %v1617 = vunpack.c.h.b16 %v475
    %v1618 = vunpack.c.l.b16 %v476
    %v1619 = vunpack.c.h.b16 %v476
    %v1620 = vunpack.c.l.b16 %v477
    %v1621 = vunpack.c.h.b16 %v477
    %v1622 = vunpack.c.l.b16 %v478
    %v1623 = vunpack.c.h.b16 %v478
    %v1624 = vunpack.c.l.b16 %v479
    %v1625 = vunpack.c.h.b16 %v479
    %v1626 = vunpack.c.l.b16 %v480
    %v1627 = vunpack.c.h.b16 %v480
    %v1628 = vunpack.c.l.b16 %v481
    %v1629 = vunpack.c.h.b16 %v481
    %v1630 = vunpack.c.l.b16 %v482
    %v1631 = vunpack.c.h.b16 %v482
    %v1632 = vunpack.c.l.b16 %v483
    %v1633 = vunpack.c.h.b16 %v483
    %v1634 = vunpack.c.l.b16 %v484
    %v1635 = vunpack.c.h.b16 %v484
    %v1636 = vunpack.c.l.b16 %v485
    %v1637 = vunpack.c.h.b16 %v485
    %v1638 = vunpack.c.l.b16 %v486
    %v1639 = vunpack.c.h.b16 %v486
    %v1640 = vunpack.c.l.b16 %v487
    %v1641 = vunpack.c.h.b16 %v487
    %v1642 = vunpack.c.l.b16 %v488
    %v1643 = vunpack.c.h.b16 %v488
    %v1644 = vunpack.c.l.b16 %v489
    %v1645 = vunpack.c.h.b16 %v489
    %v1646 = vunpack.c.l.b16 %v490
    %v1647 = vunpack.c.h.b16 %v490
    %v1648 = vunpack.c.l.b16 %v491
    %v1649 = vunpack.c.h.b16 %v491
    %v1650 = vunpack.c.l.b16 %v492
    %v1651 = vunpack.c.h.b16 %v492
    %v1652 = vunpack.c.l.b16 %v493
    %v1653 = vunpack.c.h.b16 %v493
    %v1654 = vunpack.c.l.b16 %v494
    %v1655 = vunpack.c.h.b16 %v494
    %v1656 = vunpack.c.l.b16 %v495
    %v1657 = vunpack.c.h.b16 %v495
    %v1658 = vunpack.c.l.b16 %v496
    %v1659 = vunpack.c.h.b16 %v496
    %v1660 = vunpack.c.l.b16 %v497
    %v1661 = vunpack.c.h.b16 %v497
    %v1662 = vunpack.c.l.b16 %v498
    %v1663 = vunpack.c.h.b16 %v498
    %v1664 = vunpack.c.l.b16 %v499
    %v1665 = vunpack.c.h.b16 %v499
    %v1666 = vunpack.c.l.b16 %v500
    %v1667 = vunpack.c.h.b16 %v500
    %v1668 = vunpack.c.l.b16 %v501
    %v1669 = vunpack.c.h.b16 %v501
    %v1670 = vunpack.c.l.b16 %v502
    %v1671 = vunpack.c.h.b16 %v502
    %v1672 = vunpack.c.l.b16 %v503
    %v1673 = vunpack.c.h.b16 %v503
    %v1674 = vunpack.c.l.b16 %v504
    %v1675 = vunpack.c.h.b16 %v504
    %v1676 = vunpack.c.l.b16 %v505
    %v1677 = vunpack.c.h.b16 %v505
    %v1678 = vunpack.c.l.b16 %v506
    %v1679 = vunpack.c.h.b16 %v506
    %v1680 = vpack.c.b16 %v920, %v912
    %v1681 = vpack.c.b16 %v921, %v913
    %v1682 = vpack.c.b16 %v922, %v914
    %v1683 = vpack.c.b16 %v923, %v915
    %v1684 = vpack.c.b16 %v924, %v916
    %v1685 = vpack.c.b16 %v925, %v917
    %v1686 = vpack.c.b16 %v926, %v918
    %v1687 = vpack.c.b16 %v927, %v919
    %v1688 = vpack.c.b16 %v936, %v928
    %v1689 = vpack.c.b16 %v937, %v929
    %v1690 = vpack.c.b16 %v938, %v930
    %v1691 = vpack.c.b16 %v939, %v931
    %v1692 = vpack.c.b16 %v940, %v932
    %v1693 = vpack.c.b16 %v941, %v933
    %v1694 = vpack.c.b16 %v942, %v934
    %v1695 = vpack.c.b16 %v943, %v935
    %v1696 = vpack.c.b16 %v952, %v944
    %v1697 = vpack.c.b16 %v953, %v945
    %v1698 = vpack.c.b16 %v954, %v946
    %v1699 = vpack.c.b16 %v955, %v947
    %v1700 = vpack.c.b16 %v956, %v948
    %v1701 = vpack.c.b16 %v957, %v949
    %v1702 = vpack.c.b16 %v958, %v950
    %v1703 = vpack.c.b16 %v959, %v951
    %v1704 = vpack.c.b16 %v968, %v960
    %v1705 = vpack.c.b16 %v969, %v961
    %v1706 = vpack.c.b16 %v970, %v962
    %v1707 = vpack.c.b16 %v971, %v963
    %v1708 = vpack.c.b16 %v972, %v964
    %v1709 = vpack.c.b16 %v973, %v965
    %v1710 = vpack.c.b16 %v974, %v966
    %v1711 = vpack.c.b16 %v975, %v967
    %v1712 = vpack.c.b16 %v984, %v976
    %v1713 = vpack.c.b16 %v985, %v977
    %v1714 = vpack.c.b16 %v986, %v978
    %v1715 = vpack.c.b16 %v987, %v979
    %v1716 = vpack.c.b16 %v988, %v980
    %v1717 = vpack.c.b16 %v989, %v981
    %v1718 = vpack.c.b16 %v990, %v982
    %v1719 = vpack.c.b16 %v991, %v983
    %v1720 = vpack.c.b16 %v1000, %v992
    %v1721 = vpack.c.b16 %v1001, %v993
    %v1722 = vpack.c.b16 %v1002, %v994
    %v1723 = vpack.c.b16 %v1003, %v995
    %v1724 = vpack.c.b16 %v1004, %v996
    %v1725 = vpack.c.b16 %v1005, %v997
    %v1726 = vpack.c.b16 %v1006, %v998
    %v1727 = vpack.c.b16 %v1007, %v999
    %v1728 = vpack.c.b16 %v1016, %v1008
    %v1729 = vpack.c.b16 %v1017, %v1009
    %v1730 = vpack.c.b16 %v1018, %v1010
    %v1731 = vpack.c.b16 %v1019, %v1011
    %v1732 = vpack.c.b16 %v1020, %v1012
    %v1733 = vpack.c.b16 %v1021, %v1013
    %v1734 = vpack.c.b16 %v1022, %v1014
    %v1735 = vpack.c.b16 %v1023, %v1015
    %v1736 = vpack.c.b16 %v1032, %v1024
    %v1737 = vpack.c.b16 %v1033, %v1025
    %v1738 = vpack.c.b16 %v1034, %v1026
    %v1739 = vpack.c.b16 %v1035, %v1027
    %v1740 = vpack.c.b16 %v1036, %v1028
    %v1741 = vpack.c.b16 %v1037, %v1029
    %v1742 = vpack.c.b16 %v1038, %v1030
    %v1743 = vpack.c.b16 %v1039, %v1031
    %v1744 = vpack.c.b16 %v1048, %v1040
    %v1745 = vpack.c.b16 %v1049, %v1041
    %v1746 = vpack.c.b16 %v1050, %v1042
    %v1747 = vpack.c.b16 %v1051, %v1043
    %v1748 = vpack.c.b16 %v1052, %v1044
    %v1749 = vpack.c.b16 %v1053, %v1045
    %v1750 = vpack.c.b16 %v1054, %v1046
    %v1751 = vpack.c.b16 %v1055, %v1047
    %v1752 = vpack.c.b16 %v1064, %v1056
    %v1753 = vpack.c.b16 %v1065, %v1057
    %v1754 = vpack.c.b16 %v1066, %v1058
    %v1755 = vpack.c.b16 %v1067, %v1059
    %v1756 = vpack.c.b16 %v1068, %v1060
    %v1757 = vpack.c.b16 %v1069, %v1061
    %v1758 = vpack.c.b16 %v1070, %v1062
    %v1759 = vpack.c.b16 %v1071, %v1063
    %v1760 = vpack.c.b16 %v1080, %v1072
    %v1761 = vpack.c.b16 %v1081, %v1073
    %v1762 = vpack.c.b16 %v1082, %v1074
    %v1763 = vpack.c.b16 %v1083, %v1075
    %v1764 = vpack.c.b16 %v1084, %v1076
    %v1765 = vpack.c.b16 %v1085, %v1077
    %v1766 = vpack.c.b16 %v1086, %v1078
    %v1767 = vpack.c.b16 %v1087, %v1079
    %v1768 = vpack.c.b16 %v1096, %v1088
    %v1769 = vpack.c.b16 %v1097, %v1089
    %v1770 = vpack.c.b16 %v1098, %v1090
    %v1771 = vpack.c.b16 %v1099, %v1091
    %v1772 = vpack.c.b16 %v1100, %v1092
    %v1773 = vpack.c.b16 %v1101, %v1093
    %v1774 = vpack.c.b16 %v1102, %v1094
    %v1775 = vpack.c.b16 %v1103, %v1095
    %v1776 = vpack.c.b16 %v1112, %v1104
    %v1777 = vpack.c.b16 %v1113, %v1105
    %v1778 = vpack.c.b16 %v1114, %v1106
    %v1779 = vpack.c.b16 %v1115, %v1107
    %v1780 = vpack.c.b16 %v1116, %v1108
    %v1781 = vpack.c.b16 %v1117, %v1109
    %v1782 = vpack.c.b16 %v1118, %v1110
    %v1783 = vpack.c.b16 %v1119, %v1111
    %v1784 = vpack.c.b16 %v1128, %v1120
    %v1785 = vpack.c.b16 %v1129, %v1121
    %v1786 = vpack.c.b16 %v1130, %v1122
    %v1787 = vpack.c.b16 %v1131, %v1123
    %v1788 = vpack.c.b16 %v1132, %v1124
    %v1789 = vpack.c.b16 %v1133, %v1125
    %v1790 = vpack.c.b16 %v1134, %v1126
    %v1791 = vpack.c.b16 %v1135, %v1127
    %v1792 = vpack.c.b16 %v1144, %v1136
    %v1793 = vpack.c.b16 %v1145, %v1137
    %v1794 = vpack.c.b16 %v1146, %v1138
    %v1795 = vpack.c.b16 %v1147, %v1139
    %v1796 = vpack.c.b16 %v1148, %v1140
    %v1797 = vpack.c.b16 %v1149, %v1141
    %v1798 = vpack.c.b16 %v1150, %v1142
    %v1799 = vpack.c.b16 %v1151, %v1143
    %v1800 = vpack.c.b16 %v1160, %v1152
    %v1801 = vpack.c.b16 %v1161, %v1153
    %v1802 = vpack.c.b16 %v1162, %v1154
    %v1803 = vpack.c.b16 %v1163, %v1155
    %v1804 = vpack.c.b16 %v1164, %v1156
    %v1805 = vpack.c.b16 %v1165, %v1157
    %v1806 = vpack.c.b16 %v1166, %v1158
    %v1807 = vpack.c.b16 %v1167, %v1159
    %v1808 = vpack.c.b16 %v1176, %v1168
    %v1809 = vpack.c.b16 %v1177, %v1169
    %v1810 = vpack.c.b16 %v1178, %v1170
    %v1811 = vpack.c.b16 %v1179, %v1171
    %v1812 = vpack.c.b16 %v1180, %v1172
    %v1813 = vpack.c.b16 %v1181, %v1173
    %v1814 = vpack.c.b16 %v1182, %v1174
    %v1815 = vpack.c.b16 %v1183, %v1175
    %v1816 = vpack.c.b16 %v1192, %v1184
    %v1817 = vpack.c.b16 %v1193, %v1185
    %v1818 = vpack.c.b16 %v1194, %v1186
    %v1819 = vpack.c.b16 %v1195, %v1187
    %v1820 = vpack.c.b16 %v1196, %v1188
    %v1821 = vpack.c.b16 %v1197, %v1189
    %v1822 = vpack.c.b16 %v1198, %v1190
    %v1823 = vpack.c.b16 %v1199, %v1191
    %v1824 = vpack.c.b16 %v1208, %v1200
    %v1825 = vpack.c.b16 %v1209, %v1201
    %v1826 = vpack.c.b16 %v1210, %v1202
    %v1827 = vpack.c.b16 %v1211, %v1203
    %v1828 = vpack.c.b16 %v1212, %v1204
    %v1829 = vpack.c.b16 %v1213, %v1205
    %v1830 = vpack.c.b16 %v1214, %v1206
    %v1831 = vpack.c.b16 %v1215, %v1207
    %v1832 = vpack.c.b16 %v1224, %v1216
    %v1833 = vpack.c.b16 %v1225, %v1217
    %v1834 = vpack.c.b16 %v1226, %v1218
    %v1835 = vpack.c.b16 %v1227, %v1219
    %v1836 = vpack.c.b16 %v1228, %v1220
    %v1837 = vpack.c.b16 %v1229, %v1221
    %v1838 = vpack.c.b16 %v1230, %v1222
    %v1839 = vpack.c.b16 %v1231, %v1223
    %v1840 = vpack.c.b16 %v1240, %v1232
    %v1841 = vpack.c.b16 %v1241, %v1233
    %v1842 = vpack.c.b16 %v1242, %v1234
    %v1843 = vpack.c.b16 %v1243, %v1235
    %v1844 = vpack.c.b16 %v1244, %v1236
    %v1845 = vpack.c.b16 %v1245, %v1237
    %v1846 = vpack.c.b16 %v1246, %v1238
    %v1847 = vpack.c.b16 %v1247, %v1239
    %v1848 = vpack.c.b16 %v1256, %v1248
    %v1849 = vpack.c.b16 %v1257, %v1249
    %v1850 = vpack.c.b16 %v1258, %v1250
    %v1851 = vpack.c.b16 %v1259, %v1251
    %v1852 = vpack.c.b16 %v1260, %v1252
    %v1853 = vpack.c.b16 %v1261, %v1253
    %v1854 = vpack.c.b16 %v1262, %v1254
    %v1855 = vpack.c.b16 %v1263, %v1255
    %v1856 = vpack.c.b16 %v1272, %v1264
    %v1857 = vpack.c.b16 %v1273, %v1265
    %v1858 = vpack.c.b16 %v1274, %v1266
    %v1859 = vpack.c.b16 %v1275, %v1267
    %v1860 = vpack.c.b16 %v1276, %v1268
    %v1861 = vpack.c.b16 %v1277, %v1269
    %v1862 = vpack.c.b16 %v1278, %v1270
    %v1863 = vpack.c.b16 %v1279, %v1271
    %v1864 = vpack.c.b16 %v1288, %v1280
    %v1865 = vpack.c.b16 %v1289, %v1281
    %v1866 = vpack.c.b16 %v1290, %v1282
    %v1867 = vpack.c.b16 %v1291, %v1283
    %v1868 = vpack.c.b16 %v1292, %v1284
    %v1869 = vpack.c.b16 %v1293, %v1285
    %v1870 = vpack.c.b16 %v1294, %v1286
    %v1871 = vpack.c.b16 %v1295, %v1287
    %v1872 = vpack.c.b16 %v1304, %v1296
    %v1873 = vpack.c.b16 %v1305, %v1297
    %v1874 = vpack.c.b16 %v1306, %v1298
    %v1875 = vpack.c.b16 %v1307, %v1299
    %v1876 = vpack.c.b16 %v1308, %v1300
    %v1877 = vpack.c.b16 %v1309, %v1301
    %v1878 = vpack.c.b16 %v1310, %v1302
    %v1879 = vpack.c.b16 %v1311, %v1303
    %v1880 = vpack.c.b16 %v1320, %v1312
    %v1881 = vpack.c.b16 %v1321, %v1313
    %v1882 = vpack.c.b16 %v1322, %v1314
    %v1883 = vpack.c.b16 %v1323, %v1315
    %v1884 = vpack.c.b16 %v1324, %v1316
    %v1885 = vpack.c.b16 %v1325, %v1317
    %v1886 = vpack.c.b16 %v1326, %v1318
    %v1887 = vpack.c.b16 %v1327, %v1319
    %v1888 = vpack.c.b16 %v1336, %v1328
    %v1889 = vpack.c.b16 %v1337, %v1329
    %v1890 = vpack.c.b16 %v1338, %v1330
    %v1891 = vpack.c.b16 %v1339, %v1331
    %v1892 = vpack.c.b16 %v1340, %v1332
    %v1893 = vpack.c.b16 %v1341, %v1333
    %v1894 = vpack.c.b16 %v1342, %v1334
    %v1895 = vpack.c.b16 %v1343, %v1335
    %v1896 = vpack.c.b16 %v1352, %v1344
    %v1897 = vpack.c.b16 %v1353, %v1345
    %v1898 = vpack.c.b16 %v1354, %v1346
    %v1899 = vpack.c.b16 %v1355, %v1347
    %v1900 = vpack.c.b16 %v1356, %v1348
    %v1901 = vpack.c.b16 %v1357, %v1349
    %v1902 = vpack.c.b16 %v1358, %v1350
    %v1903 = vpack.c.b16 %v1359, %v1351
    %v1904 = vpack.c.b16 %v1368, %v1360
    %v1905 = vpack.c.b16 %v1369, %v1361
    %v1906 = vpack.c.b16 %v1370, %v1362
    %v1907 = vpack.c.b16 %v1371, %v1363
    %v1908 = vpack.c.b16 %v1372, %v1364
    %v1909 = vpack.c.b16 %v1373, %v1365
    %v1910 = vpack.c.b16 %v1374, %v1366
    %v1911 = vpack.c.b16 %v1375, %v1367
    %v1912 = vpack.c.b16 %v1384, %v1376
    %v1913 = vpack.c.b16 %v1385, %v1377
    %v1914 = vpack.c.b16 %v1386, %v1378
    %v1915 = vpack.c.b16 %v1387, %v1379
    %v1916 = vpack.c.b16 %v1388, %v1380
    %v1917 = vpack.c.b16 %v1389, %v1381
    %v1918 = vpack.c.b16 %v1390, %v1382
    %v1919 = vpack.c.b16 %v1391, %v1383
    %v1920 = vpack.c.b16 %v1400, %v1392
    %v1921 = vpack.c.b16 %v1401, %v1393
    %v1922 = vpack.c.b16 %v1402, %v1394
    %v1923 = vpack.c.b16 %v1403, %v1395
    %v1924 = vpack.c.b16 %v1404, %v1396
    %v1925 = vpack.c.b16 %v1405, %v1397
    %v1926 = vpack.c.b16 %v1406, %v1398
    %v1927 = vpack.c.b16 %v1407, %v1399
    %v1928 = vpack.c.b16 %v1416, %v1408
    %v1929 = vpack.c.b16 %v1417, %v1409
    %v1930 = vpack.c.b16 %v1418, %v1410
    %v1931 = vpack.c.b16 %v1419, %v1411
    %v1932 = vpack.c.b16 %v1420, %v1412
    %v1933 = vpack.c.b16 %v1421, %v1413
    %v1934 = vpack.c.b16 %v1422, %v1414
    %v1935 = vpack.c.b16 %v1423, %v1415
    %v1936 = vpack.c.b16 %v1432, %v1424
    %v1937 = vpack.c.b16 %v1433, %v1425
    %v1938 = vpack.c.b16 %v1434, %v1426
    %v1939 = vpack.c.b16 %v1435, %v1427
    %v1940 = vpack.c.b16 %v1436, %v1428
    %v1941 = vpack.c.b16 %v1437, %v1429
    %v1942 = vpack.c.b16 %v1438, %v1430
    %v1943 = vpack.c.b16 %v1439, %v1431
    %v1944 = vpack.c.b16 %v1448, %v1440
    %v1945 = vpack.c.b16 %v1449, %v1441
    %v1946 = vpack.c.b16 %v1450, %v1442
    %v1947 = vpack.c.b16 %v1451, %v1443
    %v1948 = vpack.c.b16 %v1452, %v1444
    %v1949 = vpack.c.b16 %v1453, %v1445
    %v1950 = vpack.c.b16 %v1454, %v1446
    %v1951 = vpack.c.b16 %v1455, %v1447
    %v1952 = vpack.c.b16 %v1464, %v1456
    %v1953 = vpack.c.b16 %v1465, %v1457
    %v1954 = vpack.c.b16 %v1466, %v1458
    %v1955 = vpack.c.b16 %v1467, %v1459
    %v1956 = vpack.c.b16 %v1468, %v1460
    %v1957 = vpack.c.b16 %v1469, %v1461
    %v1958 = vpack.c.b16 %v1470, %v1462
    %v1959 = vpack.c.b16 %v1471, %v1463
    %v1960 = vpack.c.b16 %v1480, %v1472
    %v1961 = vpack.c.b16 %v1481, %v1473
    %v1962 = vpack.c.b16 %v1482, %v1474
    %v1963 = vpack.c.b16 %v1483, %v1475
    %v1964 = vpack.c.b16 %v1484, %v1476
    %v1965 = vpack.c.b16 %v1485, %v1477
    %v1966 = vpack.c.b16 %v1486, %v1478
    %v1967 = vpack.c.b16 %v1487, %v1479
    %v1968 = vpack.c.b16 %v1496, %v1488
    %v1969 = vpack.c.b16 %v1497, %v1489
    %v1970 = vpack.c.b16 %v1498, %v1490
    %v1971 = vpack.c.b16 %v1499, %v1491
    %v1972 = vpack.c.b16 %v1500, %v1492
    %v1973 = vpack.c.b16 %v1501, %v1493
    %v1974 = vpack.c.b16 %v1502, %v1494
    %v1975 = vpack.c.b16 %v1503, %v1495
    %v1976 = vpack.c.b16 %v1512, %v1504
    %v1977 = vpack.c.b16 %v1513, %v1505
    %v1978 = vpack.c.b16 %v1514, %v1506
    %v1979 = vpack.c.b16 %v1515, %v1507
    %v1980 = vpack.c.b16 %v1516, %v1508
    %v1981 = vpack.c.b16 %v1517, %v1509
    %v1982 = vpack.c.b16 %v1518, %v1510
    %v1983 = vpack.c.b16 %v1519, %v1511
    %v1984 = vpack.c.b16 %v1528, %v1520
    %v1985 = vpack.c.b16 %v1529, %v1521
    %v1986 = vpack.c.b16 %v1530, %v1522
    %v1987 = vpack.c.b16 %v1531, %v1523
    %v1988 = vpack.c.b16 %v1532, %v1524
    %v1989 = vpack.c.b16 %v1533, %v1525
    %v1990 = vpack.c.b16 %v1534, %v1526
    %v1991 = vpack.c.b16 %v1535, %v1527
    %v1992 = vpack.c.b16 %v1544, %v1536
    %v1993 = vpack.c.b16 %v1545, %v1537
    %v1994 = vpack.c.b16 %v1546, %v1538
    %v1995 = vpack.c.b16 %v1547, %v1539
    %v1996 = vpack.c.b16 %v1548, %v1540
    %v1997 = vpack.c.b16 %v1549, %v1541
    %v1998 = vpack.c.b16 %v1550, %v1542
    %v1999 = vpack.c.b16 %v1551, %v1543
    %v2000 = vpack.c.b16 %v1560, %v1552
    %v2001 = vpack.c.b16 %v1561, %v1553
    %v2002 = vpack.c.b16 %v1562, %v1554
    %v2003 = vpack.c.b16 %v1563, %v1555
    %v2004 = vpack.c.b16 %v1564, %v1556
    %v2005 = vpack.c.b16 %v1565, %v1557
    %v2006 = vpack.c.b16 %v1566, %v1558
    %v2007 = vpack.c.b16 %v1567, %v1559
    %v2008 = vpack.c.b16 %v1576, %v1568
    %v2009 = vpack.c.b16 %v1577, %v1569
    %v2010 = vpack.c.b16 %v1578, %v1570
    %v2011 = vpack.c.b16 %v1579, %v1571
    %v2012 = vpack.c.b16 %v1580, %v1572
    %v2013 = vpack.c.b16 %v1581, %v1573
    %v2014 = vpack.c.b16 %v1582, %v1574
    %v2015 = vpack.c.b16 %v1583, %v1575
    %v2016 = vpack.c.b16 %v1592, %v1584
    %v2017 = vpack.c.b16 %v1593, %v1585
    %v2018 = vpack.c.b16 %v1594, %v1586
    %v2019 = vpack.c.b16 %v1595, %v1587
    %v2020 = vpack.c.b16 %v1596, %v1588
    %v2021 = vpack.c.b16 %v1597, %v1589
    %v2022 = vpack.c.b16 %v1598, %v1590
    %v2023 = vpack.c.b16 %v1599, %v1591
    %v2024 = vpack.c.b16 %v1608, %v1600
    %v2025 = vpack.c.b16 %v1609, %v1601
    %v2026 = vpack.c.b16 %v1610, %v1602
    %v2027 = vpack.c.b16 %v1611, %v1603
    %v2028 = vpack.c.b16 %v1612, %v1604
    %v2029 = vpack.c.b16 %v1613, %v1605
    %v2030 = vpack.c.b16 %v1614, %v1606
    %v2031 = vpack.c.b16 %v1615, %v1607
    %v2032 = vpack.c.b16 %v1624, %v1616
    %v2033 = vpack.c.b16 %v1625, %v1617
    %v2034 = vpack.c.b16 %v1626, %v1618
    %v2035 = vpack.c.b16 %v1627, %v1619
    %v2036 = vpack.c.b16 %v1628, %v1620
    %v2037 = vpack.c.b16 %v1629, %v1621
    %v2038 = vpack.c.b16 %v1630, %v1622
    %v2039 = vpack.c.b16 %v1631, %v1623
    %v2040 = vpack.c.b16 %v1640, %v1632
    %v2041 = vpack.c.b16 %v1641, %v1633
    %v2042 = vpack.c.b16 %v1642, %v1634
    %v2043 = vpack.c.b16 %v1643, %v1635
    %v2044 = vpack.c.b16 %v1644, %v1636
    %v2045 = vpack.c.b16 %v1645, %v1637
    %v2046 = vpack.c.b16 %v1646, %v1638
    %v2047 = vpack.c.b16 %v1647, %v1639
    %v2048 = vpack.c.b16 %v1656, %v1648
    %v2049 = vpack.c.b16 %v1657, %v1649
    %v2050 = vpack.c.b16 %v1658, %v1650
    %v2051 = vpack.c.b16 %v1659, %v1651
    %v2052 = vpack.c.b16 %v1660, %v1652
    %v2053 = vpack.c.b16 %v1661, %v1653
    %v2054 = vpack.c.b16 %v1662, %v1654
    %v2055 = vpack.c.b16 %v1663, %v1655
    %v2056 = vpack.c.b16 %v1672, %v1664
    %v2057 = vpack.c.b16 %v1673, %v1665
    %v2058 = vpack.c.b16 %v1674, %v1666
    %v2059 = vpack.c.b16 %v1675, %v1667
    %v2060 = vpack.c.b16 %v1676, %v1668
    %v2061 = vpack.c.b16 %v1677, %v1669
    %v2062 = vpack.c.b16 %v1678, %v1670
    %v2063 = vpack.c.b16 %v1679, %v1671
    %2448 = vmatprep.subr.bf16.mxu0 %v1681
    %2449 = vmatpush1.bf16.msra.mxu0 %v1680
    %2450 = vmatprep.subr.bf16.mxu0 %v1689
    %2451 = vmatpush1.bf16.msra.mxu0 %v1688
    %2452 = vmatprep.subr.bf16.mxu0 %v1697
    %2453 = vmatpush1.bf16.msra.mxu0 %v1696
    %2454 = vmatprep.subr.bf16.mxu0 %v1705
    %2455 = vmatpush1.bf16.msra.mxu0 %v1704
    %2456 = vmatprep.subr.bf16.mxu0 %v1713
    %2457 = vmatpush1.bf16.msra.mxu0 %v1712
    %2458 = vmatprep.subr.bf16.mxu0 %v1721
    %2459 = vmatpush1.bf16.msra.mxu0 %v1720
    %2460 = vmatprep.subr.bf16.mxu0 %v1729
    %2461 = vmatpush1.bf16.msra.mxu0 %v1728
    %2462 = vmatprep.subr.bf16.mxu0 %v1737
    %2463 = vmatpush1.bf16.msra.mxu0 %v1736
    %2464 = vmatprep.subr.bf16.mxu0 %v1745
    %2465 = vmatpush1.bf16.msra.mxu0 %v1744
    %2466 = vmatprep.subr.bf16.mxu0 %v1753
    %2467 = vmatpush1.bf16.msra.mxu0 %v1752
    %2468 = vmatprep.subr.bf16.mxu0 %v1761
    %2469 = vmatpush1.bf16.msra.mxu0 %v1760
    %2470 = vmatprep.subr.bf16.mxu0 %v1769
    %2471 = vmatpush1.bf16.msra.mxu0 %v1768
    %2472 = vmatprep.subr.bf16.mxu0 %v1777
    %2473 = vmatpush1.bf16.msra.mxu0 %v1776
    %2474 = vmatprep.subr.bf16.mxu0 %v1785
    %2475 = vmatpush1.bf16.msra.mxu0 %v1784
    %2476 = vmatprep.subr.bf16.mxu0 %v1793
    %2477 = vmatpush1.bf16.msra.mxu0 %v1792
    %2478 = vmatprep.subr.bf16.mxu0 %v1801
    %2479 = vmatpush1.bf16.msra.mxu0 %v1800
    %2480 = vmatprep.mubr.bf16.mxu0 %v517
    %2481 = vmatmul.mubr.bf16.gmra.mrb[0].mxu0 %v516
    %v2482 = vpop.f32.mrb[0].mxu0
    %v2483 = vadd.f32 0.0, %v2482
    %v2484 = vpop.f32.mrb[0].mxu0
    %v2485 = vadd.f32 0.0, %v2484
    %v2486 = vpop.f32.mrb[0].mxu0
    %v2487 = vpop.f32.mrb[0].mxu0
    %2488 = vdwg.mxu0
    %2489 = vmatprep.subr.bf16.mxu0 %v1809
    %2490 = vmatpush1.bf16.msra.mxu0 %v1808
    %2491 = vmatprep.subr.bf16.mxu0 %v1817
    %2492 = vmatpush1.bf16.msra.mxu0 %v1816
    %2493 = vmatprep.subr.bf16.mxu0 %v1825
    %2494 = vmatpush1.bf16.msra.mxu0 %v1824
    %2495 = vmatprep.subr.bf16.mxu0 %v1833
    %2496 = vmatpush1.bf16.msra.mxu0 %v1832
    %2497 = vmatprep.subr.bf16.mxu0 %v1841
    %2498 = vmatpush1.bf16.msra.mxu0 %v1840
    %2499 = vmatprep.subr.bf16.mxu0 %v1849
    %2500 = vmatpush1.bf16.msra.mxu0 %v1848
    %2501 = vmatprep.subr.bf16.mxu0 %v1857
    %2502 = vmatpush1.bf16.msra.mxu0 %v1856
    %2503 = vmatprep.subr.bf16.mxu0 %v1865
    %2504 = vmatpush1.bf16.msra.mxu0 %v1864
    %2505 = vmatprep.subr.bf16.mxu0 %v1873
    %2506 = vmatpush1.bf16.msra.mxu0 %v1872
    %2507 = vmatprep.subr.bf16.mxu0 %v1881
    %2508 = vmatpush1.bf16.msra.mxu0 %v1880
    %2509 = vmatprep.subr.bf16.mxu0 %v1889
    %2510 = vmatpush1.bf16.msra.mxu0 %v1888
    %2511 = vmatprep.subr.bf16.mxu0 %v1897
    %2512 = vmatpush1.bf16.msra.mxu0 %v1896
    %2513 = vmatprep.subr.bf16.mxu0 %v1905
    %2514 = vmatpush1.bf16.msra.mxu0 %v1904
    %2515 = vmatprep.subr.bf16.mxu0 %v1913
    %2516 = vmatpush1.bf16.msra.mxu0 %v1912
    %2517 = vmatprep.subr.bf16.mxu0 %v1921
    %2518 = vmatpush1.bf16.msra.mxu0 %v1920
    %2519 = vmatprep.subr.bf16.mxu0 %v1929
    %2520 = vmatpush1.bf16.msra.mxu0 %v1928
    %2521 = vmatprep.mubr.bf16.mxu0 %v519
    %2522 = vmatmul.mubr.bf16.gmra.mrb[0].mxu0 %v518
    %v2523 = vpop.f32.mrb[0].mxu0
    %v2524 = vadd.f32 %v2483, %v2523
    %v2525 = vpop.f32.mrb[0].mxu0
    %v2526 = vadd.f32 %v2485, %v2525
    %v2527 = vpop.f32.mrb[0].mxu0
    %v2528 = vpop.f32.mrb[0].mxu0
    %2529 = vdwg.mxu0
    %2530 = vmatprep.subr.bf16.mxu0 %v1937
    %2531 = vmatpush1.bf16.msra.mxu0 %v1936
    %2532 = vmatprep.subr.bf16.mxu0 %v1945
    %2533 = vmatpush1.bf16.msra.mxu0 %v1944
    %2534 = vmatprep.subr.bf16.mxu0 %v1953
    %2535 = vmatpush1.bf16.msra.mxu0 %v1952
    %2536 = vmatprep.subr.bf16.mxu0 %v1961
    %2537 = vmatpush1.bf16.msra.mxu0 %v1960
    %2538 = vmatprep.subr.bf16.mxu0 %v1969
    %2539 = vmatpush1.bf16.msra.mxu0 %v1968
    %2540 = vmatprep.subr.bf16.mxu0 %v1977
    %2541 = vmatpush1.bf16.msra.mxu0 %v1976
    %2542 = vmatprep.subr.bf16.mxu0 %v1985
    %2543 = vmatpush1.bf16.msra.mxu0 %v1984
    %2544 = vmatprep.subr.bf16.mxu0 %v1993
    %2545 = vmatpush1.bf16.msra.mxu0 %v1992
    %2546 = vmatprep.subr.bf16.mxu0 %v2001
    %2547 = vmatpush1.bf16.msra.mxu0 %v2000
    %2548 = vmatprep.subr.bf16.mxu0 %v2009
    %2549 = vmatpush1.bf16.msra.mxu0 %v2008
    %2550 = vmatprep.subr.bf16.mxu0 %v2017
    %2551 = vmatpush1.bf16.msra.mxu0 %v2016
    %2552 = vmatprep.subr.bf16.mxu0 %v2025
    %2553 = vmatpush1.bf16.msra.mxu0 %v2024
    %2554 = vmatprep.subr.bf16.mxu0 %v2033
    %2555 = vmatpush1.bf16.msra.mxu0 %v2032
    %2556 = vmatprep.subr.bf16.mxu0 %v2041
    %2557 = vmatpush1.bf16.msra.mxu0 %v2040
    %2558 = vmatprep.subr.bf16.mxu0 %v2049
    %2559 = vmatpush1.bf16.msra.mxu0 %v2048
    %2560 = vmatprep.subr.bf16.mxu0 %v2057
    %2561 = vmatpush1.bf16.msra.mxu0 %v2056
    %2562 = vmatprep.mubr.bf16.mxu0 %v521
    %2563 = vmatmul.mubr.bf16.gmra.mrb[0].mxu0 %v520
    %v2564 = vpop.f32.mrb[0].mxu0
    %v2565 = vadd.f32 %v2524, %v2564
    %v2566 = vpop.f32.mrb[0].mxu0
    %v2567 = vadd.f32 %v2526, %v2566
    %v2568 = vpop.f32.mrb[0].mxu0
    %v2569 = vpop.f32.mrb[0].mxu0
    %2570 = vdwg.mxu0
    %2571 = vmatprep.subr.bf16.mxu0 %v1683
    %2572 = vmatpush1.bf16.msra.mxu0 %v1682
    %2573 = vmatprep.subr.bf16.mxu0 %v1691
    %2574 = vmatpush1.bf16.msra.mxu0 %v1690
    %2575 = vmatprep.subr.bf16.mxu0 %v1699
    %2576 = vmatpush1.bf16.msra.mxu0 %v1698
    %2577 = vmatprep.subr.bf16.mxu0 %v1707
    %2578 = vmatpush1.bf16.msra.mxu0 %v1706
    %2579 = vmatprep.subr.bf16.mxu0 %v1715
    %2580 = vmatpush1.bf16.msra.mxu0 %v1714
    %2581 = vmatprep.subr.bf16.mxu0 %v1723
    %2582 = vmatpush1.bf16.msra.mxu0 %v1722
    %2583 = vmatprep.subr.bf16.mxu0 %v1731
    %2584 = vmatpush1.bf16.msra.mxu0 %v1730
    %2585 = vmatprep.subr.bf16.mxu0 %v1739
    %2586 = vmatpush1.bf16.msra.mxu0 %v1738
    %2587 = vmatprep.subr.bf16.mxu0 %v1747
    %2588 = vmatpush1.bf16.msra.mxu0 %v1746
    %2589 = vmatprep.subr.bf16.mxu0 %v1755
    %2590 = vmatpush1.bf16.msra.mxu0 %v1754
    %2591 = vmatprep.subr.bf16.mxu0 %v1763
    %2592 = vmatpush1.bf16.msra.mxu0 %v1762
    %2593 = vmatprep.subr.bf16.mxu0 %v1771
    %2594 = vmatpush1.bf16.msra.mxu0 %v1770
    %2595 = vmatprep.subr.bf16.mxu0 %v1779
    %2596 = vmatpush1.bf16.msra.mxu0 %v1778
    %2597 = vmatprep.subr.bf16.mxu0 %v1787
    %2598 = vmatpush1.bf16.msra.mxu0 %v1786
    %2599 = vmatprep.subr.bf16.mxu0 %v1795
    %2600 = vmatpush1.bf16.msra.mxu0 %v1794
    %2601 = vmatprep.subr.bf16.mxu0 %v1803
    %2602 = vmatpush1.bf16.msra.mxu0 %v1802
    %2603 = vmatprep.mubr.bf16.mxu0 %v517
    %2604 = vmatmul.mubr.bf16.gmra.mrb[0].mxu0 %v516
    %v2605 = vpop.f32.mrb[0].mxu0
    %v2606 = vadd.f32 0.0, %v2605
    %v2607 = vpop.f32.mrb[0].mxu0
    %v2608 = vadd.f32 0.0, %v2607
    %v2609 = vpop.f32.mrb[0].mxu0
    %v2610 = vpop.f32.mrb[0].mxu0
    %2611 = vdwg.mxu0
    %2612 = vmatprep.subr.bf16.mxu0 %v1811
    %2613 = vmatpush1.bf16.msra.mxu0 %v1810
    %2614 = vmatprep.subr.bf16.mxu0 %v1819
    %2615 = vmatpush1.bf16.msra.mxu0 %v1818
    %2616 = vmatprep.subr.bf16.mxu0 %v1827
    %2617 = vmatpush1.bf16.msra.mxu0 %v1826
    %2618 = vmatprep.subr.bf16.mxu0 %v1835
    %2619 = vmatpush1.bf16.msra.mxu0 %v1834
    %2620 = vmatprep.subr.bf16.mxu0 %v1843
    %2621 = vmatpush1.bf16.msra.mxu0 %v1842
    %2622 = vmatprep.subr.bf16.mxu0 %v1851
    %2623 = vmatpush1.bf16.msra.mxu0 %v1850
    %2624 = vmatprep.subr.bf16.mxu0 %v1859
    %2625 = vmatpush1.bf16.msra.mxu0 %v1858
    %2626 = vmatprep.subr.bf16.mxu0 %v1867
    %2627 = vmatpush1.bf16.msra.mxu0 %v1866
    %2628 = vmatprep.subr.bf16.mxu0 %v1875
    %2629 = vmatpush1.bf16.msra.mxu0 %v1874
    %2630 = vmatprep.subr.bf16.mxu0 %v1883
    %2631 = vmatpush1.bf16.msra.mxu0 %v1882
    %2632 = vmatprep.subr.bf16.mxu0 %v1891
    %2633 = vmatpush1.bf16.msra.mxu0 %v1890
    %2634 = vmatprep.subr.bf16.mxu0 %v1899
    %2635 = vmatpush1.bf16.msra.mxu0 %v1898
    %2636 = vmatprep.subr.bf16.mxu0 %v1907
    %2637 = vmatpush1.bf16.msra.mxu0 %v1906
    %2638 = vmatprep.subr.bf16.mxu0 %v1915
    %2639 = vmatpush1.bf16.msra.mxu0 %v1914
    %2640 = vmatprep.subr.bf16.mxu0 %v1923
    %2641 = vmatpush1.bf16.msra.mxu0 %v1922
    %2642 = vmatprep.subr.bf16.mxu0 %v1931
    %2643 = vmatpush1.bf16.msra.mxu0 %v1930
    %2644 = vmatprep.mubr.bf16.mxu0 %v519
    %2645 = vmatmul.mubr.bf16.gmra.mrb[0].mxu0 %v518
    %v2646 = vpop.f32.mrb[0].mxu0
    %v2647 = vadd.f32 %v2606, %v2646
    %v2648 = vpop.f32.mrb[0].mxu0
    %v2649 = vadd.f32 %v2608, %v2648
    %v2650 = vpop.f32.mrb[0].mxu0
    %v2651 = vpop.f32.mrb[0].mxu0
    %2652 = vdwg.mxu0
    %2653 = vmatprep.subr.bf16.mxu0 %v1939
    %2654 = vmatpush1.bf16.msra.mxu0 %v1938
    %2655 = vmatprep.subr.bf16.mxu0 %v1947
    %2656 = vmatpush1.bf16.msra.mxu0 %v1946
    %2657 = vmatprep.subr.bf16.mxu0 %v1955
    %2658 = vmatpush1.bf16.msra.mxu0 %v1954
    %2659 = vmatprep.subr.bf16.mxu0 %v1963
    %2660 = vmatpush1.bf16.msra.mxu0 %v1962
    %2661 = vmatprep.subr.bf16.mxu0 %v1971
    %2662 = vmatpush1.bf16.msra.mxu0 %v1970
    %2663 = vmatprep.subr.bf16.mxu0 %v1979
    %2664 = vmatpush1.bf16.msra.mxu0 %v1978
    %2665 = vmatprep.subr.bf16.mxu0 %v1987
    %2666 = vmatpush1.bf16.msra.mxu0 %v1986
    %2667 = vmatprep.subr.bf16.mxu0 %v1995
    %2668 = vmatpush1.bf16.msra.mxu0 %v1994
    %2669 = vmatprep.subr.bf16.mxu0 %v2003
    %2670 = vmatpush1.bf16.msra.mxu0 %v2002
    %2671 = vmatprep.subr.bf16.mxu0 %v2011
    %2672 = vmatpush1.bf16.msra.mxu0 %v2010
    %2673 = vmatprep.subr.bf16.mxu0 %v2019
    %2674 = vmatpush1.bf16.msra.mxu0 %v2018
    %2675 = vmatprep.subr.bf16.mxu0 %v2027
    %2676 = vmatpush1.bf16.msra.mxu0 %v2026
    %2677 = vmatprep.subr.bf16.mxu0 %v2035
    %2678 = vmatpush1.bf16.msra.mxu0 %v2034
    %2679 = vmatprep.subr.bf16.mxu0 %v2043
    %2680 = vmatpush1.bf16.msra.mxu0 %v2042
    %2681 = vmatprep.subr.bf16.mxu0 %v2051
    %2682 = vmatpush1.bf16.msra.mxu0 %v2050
    %2683 = vmatprep.subr.bf16.mxu0 %v2059
    %2684 = vmatpush1.bf16.msra.mxu0 %v2058
    %2685 = vmatprep.mubr.bf16.mxu0 %v521
    %2686 = vmatmul.mubr.bf16.gmra.mrb[0].mxu0 %v520
    %v2687 = vpop.f32.mrb[0].mxu0
    %v2688 = vadd.f32 %v2647, %v2687
    %v2689 = vpop.f32.mrb[0].mxu0
    %v2690 = vadd.f32 %v2649, %v2689
    %v2691 = vpop.f32.mrb[0].mxu0
    %v2692 = vpop.f32.mrb[0].mxu0
    %2693 = vdwg.mxu0
    %2694 = vmatprep.subr.bf16.mxu0 %v1685
    %2695 = vmatpush1.bf16.msra.mxu0 %v1684
    %2696 = vmatprep.subr.bf16.mxu0 %v1693
    %2697 = vmatpush1.bf16.msra.mxu0 %v1692
    %2698 = vmatprep.subr.bf16.mxu0 %v1701
    %2699 = vmatpush1.bf16.msra.mxu0 %v1700
    %2700 = vmatprep.subr.bf16.mxu0 %v1709
    %2701 = vmatpush1.bf16.msra.mxu0 %v1708
    %2702 = vmatprep.subr.bf16.mxu0 %v1717
    %2703 = vmatpush1.bf16.msra.mxu0 %v1716
    %2704 = vmatprep.subr.bf16.mxu0 %v1725
    %2705 = vmatpush1.bf16.msra.mxu0 %v1724
    %2706 = vmatprep.subr.bf16.mxu0 %v1733
    %2707 = vmatpush1.bf16.msra.mxu0 %v1732
    %2708 = vmatprep.subr.bf16.mxu0 %v1741
    %2709 = vmatpush1.bf16.msra.mxu0 %v1740
    %2710 = vmatprep.subr.bf16.mxu0 %v1749
    %2711 = vmatpush1.bf16.msra.mxu0 %v1748
    %2712 = vmatprep.subr.bf16.mxu0 %v1757
    %2713 = vmatpush1.bf16.msra.mxu0 %v1756
    %2714 = vmatprep.subr.bf16.mxu0 %v1765
    %2715 = vmatpush1.bf16.msra.mxu0 %v1764
    %2716 = vmatprep.subr.bf16.mxu0 %v1773
    %2717 = vmatpush1.bf16.msra.mxu0 %v1772
    %2718 = vmatprep.subr.bf16.mxu0 %v1781
    %2719 = vmatpush1.bf16.msra.mxu0 %v1780
    %2720 = vmatprep.subr.bf16.mxu0 %v1789
    %2721 = vmatpush1.bf16.msra.mxu0 %v1788
    %2722 = vmatprep.subr.bf16.mxu0 %v1797
    %2723 = vmatpush1.bf16.msra.mxu0 %v1796
    %2724 = vmatprep.subr.bf16.mxu0 %v1805
    %2725 = vmatpush1.bf16.msra.mxu0 %v1804
    %2726 = vmatprep.mubr.bf16.mxu0 %v517
    %2727 = vmatmul.mubr.bf16.gmra.mrb[0].mxu0 %v516
    %v2728 = vpop.f32.mrb[0].mxu0
    %v2729 = vadd.f32 0.0, %v2728
    %v2730 = vpop.f32.mrb[0].mxu0
    %v2731 = vadd.f32 0.0, %v2730
    %v2732 = vpop.f32.mrb[0].mxu0
    %v2733 = vpop.f32.mrb[0].mxu0
    %2734 = vdwg.mxu0
    %2735 = vmatprep.subr.bf16.mxu0 %v1813
    %2736 = vmatpush1.bf16.msra.mxu0 %v1812
    %2737 = vmatprep.subr.bf16.mxu0 %v1821
    %2738 = vmatpush1.bf16.msra.mxu0 %v1820
    %2739 = vmatprep.subr.bf16.mxu0 %v1829
    %2740 = vmatpush1.bf16.msra.mxu0 %v1828
    %2741 = vmatprep.subr.bf16.mxu0 %v1837
    %2742 = vmatpush1.bf16.msra.mxu0 %v1836
    %2743 = vmatprep.subr.bf16.mxu0 %v1845
    %2744 = vmatpush1.bf16.msra.mxu0 %v1844
    %2745 = vmatprep.subr.bf16.mxu0 %v1853
    %2746 = vmatpush1.bf16.msra.mxu0 %v1852
    %2747 = vmatprep.subr.bf16.mxu0 %v1861
    %2748 = vmatpush1.bf16.msra.mxu0 %v1860
    %2749 = vmatprep.subr.bf16.mxu0 %v1869
    %2750 = vmatpush1.bf16.msra.mxu0 %v1868
    %2751 = vmatprep.subr.bf16.mxu0 %v1877
    %2752 = vmatpush1.bf16.msra.mxu0 %v1876
    %2753 = vmatprep.subr.bf16.mxu0 %v1885
    %2754 = vmatpush1.bf16.msra.mxu0 %v1884
    %2755 = vmatprep.subr.bf16.mxu0 %v1893
    %2756 = vmatpush1.bf16.msra.mxu0 %v1892
    %2757 = vmatprep.subr.bf16.mxu0 %v1901
    %2758 = vmatpush1.bf16.msra.mxu0 %v1900
    %2759 = vmatprep.subr.bf16.mxu0 %v1909
    %2760 = vmatpush1.bf16.msra.mxu0 %v1908
    %2761 = vmatprep.subr.bf16.mxu0 %v1917
    %2762 = vmatpush1.bf16.msra.mxu0 %v1916
    %2763 = vmatprep.subr.bf16.mxu0 %v1925
    %2764 = vmatpush1.bf16.msra.mxu0 %v1924
    %2765 = vmatprep.subr.bf16.mxu0 %v1933
    %2766 = vmatpush1.bf16.msra.mxu0 %v1932
    %2767 = vmatprep.mubr.bf16.mxu0 %v519
    %2768 = vmatmul.mubr.bf16.gmra.mrb[0].mxu0 %v518
    %v2769 = vpop.f32.mrb[0].mxu0
    %v2770 = vadd.f32 %v2729, %v2769
    %v2771 = vpop.f32.mrb[0].mxu0
    %v2772 = vadd.f32 %v2731, %v2771
    %v2773 = vpop.f32.mrb[0].mxu0
    %v2774 = vpop.f32.mrb[0].mxu0
    %2775 = vdwg.mxu0
    %2776 = vmatprep.subr.bf16.mxu0 %v1941
    %2777 = vmatpush1.bf16.msra.mxu0 %v1940
    %2778 = vmatprep.subr.bf16.mxu0 %v1949
    %2779 = vmatpush1.bf16.msra.mxu0 %v1948
    %2780 = vmatprep.subr.bf16.mxu0 %v1957
    %2781 = vmatpush1.bf16.msra.mxu0 %v1956
    %2782 = vmatprep.subr.bf16.mxu0 %v1965
    %2783 = vmatpush1.bf16.msra.mxu0 %v1964
    %2784 = vmatprep.subr.bf16.mxu0 %v1973
    %2785 = vmatpush1.bf16.msra.mxu0 %v1972
    %2786 = vmatprep.subr.bf16.mxu0 %v1981
    %2787 = vmatpush1.bf16.msra.mxu0 %v1980
    %2788 = vmatprep.subr.bf16.mxu0 %v1989
    %2789 = vmatpush1.bf16.msra.mxu0 %v1988
    %2790 = vmatprep.subr.bf16.mxu0 %v1997
    %2791 = vmatpush1.bf16.msra.mxu0 %v1996
    %2792 = vmatprep.subr.bf16.mxu0 %v2005
    %2793 = vmatpush1.bf16.msra.mxu0 %v2004
    %2794 = vmatprep.subr.bf16.mxu0 %v2013
    %2795 = vmatpush1.bf16.msra.mxu0 %v2012
    %2796 = vmatprep.subr.bf16.mxu0 %v2021
    %2797 = vmatpush1.bf16.msra.mxu0 %v2020
    %2798 = vmatprep.subr.bf16.mxu0 %v2029
    %2799 = vmatpush1.bf16.msra.mxu0 %v2028
    %2800 = vmatprep.subr.bf16.mxu0 %v2037
    %2801 = vmatpush1.bf16.msra.mxu0 %v2036
    %2802 = vmatprep.subr.bf16.mxu0 %v2045
    %2803 = vmatpush1.bf16.msra.mxu0 %v2044
    %2804 = vmatprep.subr.bf16.mxu0 %v2053
    %2805 = vmatpush1.bf16.msra.mxu0 %v2052
    %2806 = vmatprep.subr.bf16.mxu0 %v2061
    %2807 = vmatpush1.bf16.msra.mxu0 %v2060
    %2808 = vmatprep.mubr.bf16.mxu0 %v521
    %2809 = vmatmul.mubr.bf16.gmra.mrb[0].mxu0 %v520
    %v2810 = vpop.f32.mrb[0].mxu0
    %v2811 = vadd.f32 %v2770, %v2810
    %v2812 = vpop.f32.mrb[0].mxu0
    %v2813 = vadd.f32 %v2772, %v2812
    %v2814 = vpop.f32.mrb[0].mxu0
    %v2815 = vpop.f32.mrb[0].mxu0
    %2816 = vdwg.mxu0
    %2817 = vmatprep.subr.bf16.mxu0 %v1687
    %2818 = vmatpush1.bf16.msra.mxu0 %v1686
    %2819 = vmatprep.subr.bf16.mxu0 %v1695
    %2820 = vmatpush1.bf16.msra.mxu0 %v1694
    %2821 = vmatprep.subr.bf16.mxu0 %v1703
    %2822 = vmatpush1.bf16.msra.mxu0 %v1702
    %2823 = vmatprep.subr.bf16.mxu0 %v1711
    %2824 = vmatpush1.bf16.msra.mxu0 %v1710
    %2825 = vmatprep.subr.bf16.mxu0 %v1719
    %2826 = vmatpush1.bf16.msra.mxu0 %v1718
    %2827 = vmatprep.subr.bf16.mxu0 %v1727
    %2828 = vmatpush1.bf16.msra.mxu0 %v1726
    %2829 = vmatprep.subr.bf16.mxu0 %v1735
    %2830 = vmatpush1.bf16.msra.mxu0 %v1734
    %2831 = vmatprep.subr.bf16.mxu0 %v1743
    %2832 = vmatpush1.bf16.msra.mxu0 %v1742
    %2833 = vmatprep.subr.bf16.mxu0 %v1751
    %2834 = vmatpush1.bf16.msra.mxu0 %v1750
    %2835 = vmatprep.subr.bf16.mxu0 %v1759
    %2836 = vmatpush1.bf16.msra.mxu0 %v1758
    %2837 = vmatprep.subr.bf16.mxu0 %v1767
    %2838 = vmatpush1.bf16.msra.mxu0 %v1766
    %2839 = vmatprep.subr.bf16.mxu0 %v1775
    %2840 = vmatpush1.bf16.msra.mxu0 %v1774
    %2841 = vmatprep.subr.bf16.mxu0 %v1783
    %2842 = vmatpush1.bf16.msra.mxu0 %v1782
    %2843 = vmatprep.subr.bf16.mxu0 %v1791
    %2844 = vmatpush1.bf16.msra.mxu0 %v1790
    %2845 = vmatprep.subr.bf16.mxu0 %v1799
    %2846 = vmatpush1.bf16.msra.mxu0 %v1798
    %2847 = vmatprep.subr.bf16.mxu0 %v1807
    %2848 = vmatpush1.bf16.msra.mxu0 %v1806
    %2849 = vmatprep.mubr.bf16.mxu0 %v517
    %2850 = vmatmul.mubr.bf16.gmra.mrb[0].mxu0 %v516
    %v2851 = vpop.f32.mrb[0].mxu0
    %v2852 = vadd.f32 0.0, %v2851
    %v2853 = vpop.f32.mrb[0].mxu0
    %v2854 = vadd.f32 0.0, %v2853
    %v2855 = vpop.f32.mrb[0].mxu0
    %v2856 = vpop.f32.mrb[0].mxu0
    %2857 = vdwg.mxu0
    %2858 = vmatprep.subr.bf16.mxu0 %v1815
    %2859 = vmatpush1.bf16.msra.mxu0 %v1814
    %2860 = vmatprep.subr.bf16.mxu0 %v1823
    %2861 = vmatpush1.bf16.msra.mxu0 %v1822
    %2862 = vmatprep.subr.bf16.mxu0 %v1831
    %2863 = vmatpush1.bf16.msra.mxu0 %v1830
    %2864 = vmatprep.subr.bf16.mxu0 %v1839
    %2865 = vmatpush1.bf16.msra.mxu0 %v1838
    %2866 = vmatprep.subr.bf16.mxu0 %v1847
    %2867 = vmatpush1.bf16.msra.mxu0 %v1846
    %2868 = vmatprep.subr.bf16.mxu0 %v1855
    %2869 = vmatpush1.bf16.msra.mxu0 %v1854
    %2870 = vmatprep.subr.bf16.mxu0 %v1863
    %2871 = vmatpush1.bf16.msra.mxu0 %v1862
    %2872 = vmatprep.subr.bf16.mxu0 %v1871
    %2873 = vmatpush1.bf16.msra.mxu0 %v1870
    %2874 = vmatprep.subr.bf16.mxu0 %v1879
    %2875 = vmatpush1.bf16.msra.mxu0 %v1878
    %2876 = vmatprep.subr.bf16.mxu0 %v1887
    %2877 = vmatpush1.bf16.msra.mxu0 %v1886
    %2878 = vmatprep.subr.bf16.mxu0 %v1895
    %2879 = vmatpush1.bf16.msra.mxu0 %v1894
    %2880 = vmatprep.subr.bf16.mxu0 %v1903
    %2881 = vmatpush1.bf16.msra.mxu0 %v1902
    %2882 = vmatprep.subr.bf16.mxu0 %v1911
    %2883 = vmatpush1.bf16.msra.mxu0 %v1910
    %2884 = vmatprep.subr.bf16.mxu0 %v1919
    %2885 = vmatpush1.bf16.msra.mxu0 %v1918
    %2886 = vmatprep.subr.bf16.mxu0 %v1927
    %2887 = vmatpush1.bf16.msra.mxu0 %v1926
    %2888 = vmatprep.subr.bf16.mxu0 %v1935
    %2889 = vmatpush1.bf16.msra.mxu0 %v1934
    %2890 = vmatprep.mubr.bf16.mxu0 %v519
    %2891 = vmatmul.mubr.bf16.gmra.mrb[0].mxu0 %v518
    %v2892 = vpop.f32.mrb[0].mxu0
    %v2893 = vadd.f32 %v2852, %v2892
    %v2894 = vpop.f32.mrb[0].mxu0
    %v2895 = vadd.f32 %v2854, %v2894
    %v2896 = vpop.f32.mrb[0].mxu0
    %v2897 = vpop.f32.mrb[0].mxu0
    %2898 = vdwg.mxu0
    %2899 = vmatprep.subr.bf16.mxu0 %v1943
    %2900 = vmatpush1.bf16.msra.mxu0 %v1942
    %2901 = vmatprep.subr.bf16.mxu0 %v1951
    %2902 = vmatpush1.bf16.msra.mxu0 %v1950
    %2903 = vmatprep.subr.bf16.mxu0 %v1959
    %2904 = vmatpush1.bf16.msra.mxu0 %v1958
    %2905 = vmatprep.subr.bf16.mxu0 %v1967
    %2906 = vmatpush1.bf16.msra.mxu0 %v1966
    %2907 = vmatprep.subr.bf16.mxu0 %v1975
    %2908 = vmatpush1.bf16.msra.mxu0 %v1974
    %2909 = vmatprep.subr.bf16.mxu0 %v1983
    %2910 = vmatpush1.bf16.msra.mxu0 %v1982
    %2911 = vmatprep.subr.bf16.mxu0 %v1991
    %2912 = vmatpush1.bf16.msra.mxu0 %v1990
    %2913 = vmatprep.subr.bf16.mxu0 %v1999
    %2914 = vmatpush1.bf16.msra.mxu0 %v1998
    %2915 = vmatprep.subr.bf16.mxu0 %v2007
    %2916 = vmatpush1.bf16.msra.mxu0 %v2006
    %2917 = vmatprep.subr.bf16.mxu0 %v2015
    %2918 = vmatpush1.bf16.msra.mxu0 %v2014
    %2919 = vmatprep.subr.bf16.mxu0 %v2023
    %2920 = vmatpush1.bf16.msra.mxu0 %v2022
    %2921 = vmatprep.subr.bf16.mxu0 %v2031
    %2922 = vmatpush1.bf16.msra.mxu0 %v2030
    %2923 = vmatprep.subr.bf16.mxu0 %v2039
    %2924 = vmatpush1.bf16.msra.mxu0 %v2038
    %2925 = vmatprep.subr.bf16.mxu0 %v2047
    %2926 = vmatpush1.bf16.msra.mxu0 %v2046
    %2927 = vmatprep.subr.bf16.mxu0 %v2055
    %2928 = vmatpush1.bf16.msra.mxu0 %v2054
    %2929 = vmatprep.subr.bf16.mxu0 %v2063
    %2930 = vmatpush1.bf16.msra.mxu0 %v2062
    %2931 = vmatprep.mubr.bf16.mxu0 %v521
    %2932 = vmatmul.mubr.bf16.gmra.mrb[0].mxu0 %v520
    %v2933 = vpop.f32.mrb[0].mxu0
    %v2934 = vadd.f32 %v2893, %v2933
    %v2935 = vpop.f32.mrb[0].mxu0
    %v2936 = vadd.f32 %v2895, %v2935
    %v2937 = vpop.f32.mrb[0].mxu0
    %v2938 = vpop.f32.mrb[0].mxu0
    %2939 = vdwg.mxu0
    %v2940 = vadd.f32 %v112, %v2565
    %v2941 = vadd.f32 %v113, %v2567
    %v2942 = vadd.f32 %v114, %v2688
    %v2943 = vadd.f32 %v115, %v2690
    %v2944 = vadd.f32 %v116, %v2811
    %v2945 = vadd.f32 %v117, %v2813
    %v2946 = vadd.f32 %v118, %v2934
    %v2947 = vadd.f32 %v119, %v2936
    %2948 = vst [vmem:[#allocation2] sm:$0xff] %v2940
    %2949 = vst [vmem:[#allocation2 + $0x8] sm:$0xff] %v2941
    %2950 = vst [vmem:[#allocation2 + $0x10] sm:$0xff] %v2942
    %2951 = vst [vmem:[#allocation2 + $0x18] sm:$0xff] %v2943
    %2952 = vst [vmem:[#allocation2 + $0x20] sm:$0xff] %v2944
    %2953 = vst [vmem:[#allocation2 + $0x28] sm:$0xff] %v2945
    %2954 = vst [vmem:[#allocation2 + $0x30] sm:$0xff] %v2946
    %2955 = vst [vmem:[#allocation2 + $0x38] sm:$0xff] %v2947
    // Predicated region
    $region54: #{tpu_custom_call.1} parent=1 // pred_check
      %p2956 = pneg %p100
    $region55: #{tpu_custom_call.1} parent=1 // pred_check_branch
      %2958 = sbr.rel (%p2956) target = $region57
    $region56: #{tpu_custom_call.1} parent=1 // pred_region
      %v2959 = vld [vmem:[#allocation2] sm:$0xff]
      %v2960 = vld [vmem:[#allocation2 + $0x8] sm:$0xff]
      %v2961 = vld [vmem:[#allocation2 + $0x10] sm:$0xff]
      %v2962 = vld [vmem:[#allocation2 + $0x18] sm:$0xff]
      %v2963 = vld [vmem:[#allocation2 + $0x20] sm:$0xff]
      %v2964 = vld [vmem:[#allocation2 + $0x28] sm:$0xff]
      %v2965 = vld [vmem:[#allocation2 + $0x30] sm:$0xff]
      %v2966 = vld [vmem:[#allocation2 + $0x38] sm:$0xff]
      %v2967 = vpack.c.bf16 %v2959, %v2959
      %v2968 = vpack.c.bf16 %v2960, %v2960
      %v2969 = vpack.c.bf16 %v2961, %v2961
      %v2970 = vpack.c.bf16 %v2962, %v2962
      %v2971 = vpack.c.bf16 %v2963, %v2963
      %v2972 = vpack.c.bf16 %v2964, %v2964
      %v2973 = vpack.c.bf16 %v2965, %v2965
      %v2974 = vpack.c.bf16 %v2966, %v2966
      %v2975 = vld [vmem:[#allocation7] sm:$0xf]
      %v2976 = vld [vmem:[#allocation7 + $0x4] sm:$0xf]
      %v2977 = vld [vmem:[#allocation7 + $0x8] sm:$0xf]
      %v2978 = vld [vmem:[#allocation7 + $0xc] sm:$0xf]
      %v2979 = vld [vmem:[#allocation7 + $0x10] sm:$0xf]
      %v2980 = vld [vmem:[#allocation7 + $0x14] sm:$0xf]
      %v2981 = vld [vmem:[#allocation7 + $0x18] sm:$0xf]
      %v2982 = vld [vmem:[#allocation7 + $0x1c] sm:$0xf]
      %v2983 = vld [vmem:[#allocation7 + $0x20] sm:$0xf]
      %v2984 = vld [vmem:[#allocation7 + $0x24] sm:$0xf]
      %v2985 = vld [vmem:[#allocation7 + $0x28] sm:$0xf]
      %v2986 = vld [vmem:[#allocation7 + $0x2c] sm:$0xf]
      %v2987 = vld [vmem:[#allocation7 + $0x30] sm:$0xf]
      %v2988 = vld [vmem:[#allocation7 + $0x34] sm:$0xf]
      %v2989 = vld [vmem:[#allocation7 + $0x38] sm:$0xf]
      %v2990 = vld [vmem:[#allocation7 + $0x3c] sm:$0xf]
      %v2991 = vld [vmem:[#allocation7 + $0x40] sm:$0xf]
      %v2992 = vld [vmem:[#allocation7 + $0x44] sm:$0xf]
      %v2993 = vld [vmem:[#allocation7 + $0x48] sm:$0xf]
      %v2994 = vld [vmem:[#allocation7 + $0x4c] sm:$0xf]
      %v2995 = vld [vmem:[#allocation7 + $0x50] sm:$0xf]
      %v2996 = vld [vmem:[#allocation7 + $0x54] sm:$0xf]
      %v2997 = vld [vmem:[#allocation7 + $0x58] sm:$0xf]
      %v2998 = vld [vmem:[#allocation7 + $0x5c] sm:$0xf]
      %v2999 = vld [vmem:[#allocation7 + $0x60] sm:$0xf]
      %v3000 = vld [vmem:[#allocation7 + $0x64] sm:$0xf]
      %v3001 = vld [vmem:[#allocation7 + $0x68] sm:$0xf]
      %v3002 = vld [vmem:[#allocation7 + $0x6c] sm:$0xf]
      %v3003 = vld [vmem:[#allocation7 + $0x70] sm:$0xf]
      %v3004 = vld [vmem:[#allocation7 + $0x74] sm:$0xf]
      %v3005 = vld [vmem:[#allocation7 + $0x78] sm:$0xf]
      %v3006 = vld [vmem:[#allocation7 + $0x7c] sm:$0xf]
      %v3007 = vld [vmem:[#allocation7 + $0x80] sm:$0xf]
      %v3008 = vld [vmem:[#allocation7 + $0x84] sm:$0xf]
      %v3009 = vld [vmem:[#allocation7 + $0x88] sm:$0xf]
      %v3010 = vld [vmem:[#allocation7 + $0x8c] sm:$0xf]
      %v3011 = vld [vmem:[#allocation7 + $0x90] sm:$0xf]
      %v3012 = vld [vmem:[#allocation7 + $0x94] sm:$0xf]
      %v3013 = vld [vmem:[#allocation7 + $0x98] sm:$0xf]
      %v3014 = vld [vmem:[#allocation7 + $0x9c] sm:$0xf]
      %v3015 = vld [vmem:[#allocation7 + $0xa0] sm:$0xf]
      %v3016 = vld [vmem:[#allocation7 + $0xa4] sm:$0xf]
      %v3017 = vld [vmem:[#allocation7 + $0xa8] sm:$0xf]
      %v3018 = vld [vmem:[#allocation7 + $0xac] sm:$0xf]
      %v3019 = vld [vmem:[#allocation7 + $0xb0] sm:$0xf]
      %v3020 = vld [vmem:[#allocation7 + $0xb4] sm:$0xf]
      %v3021 = vld [vmem:[#allocation7 + $0xb8] sm:$0xf]
      %v3022 = vld [vmem:[#allocation7 + $0xbc] sm:$0xf]
      %v3023 = vld [vmem:[#allocation7 + $0xc0] sm:$0xf]
      %v3024 = vld [vmem:[#allocation7 + $0xc4] sm:$0xf]
      %v3025 = vld [vmem:[#allocation7 + $0xc8] sm:$0xf]
      %v3026 = vld [vmem:[#allocation7 + $0xcc] sm:$0xf]
      %v3027 = vld [vmem:[#allocation7 + $0xd0] sm:$0xf]
      %v3028 = vld [vmem:[#allocation7 + $0xd4] sm:$0xf]
      %v3029 = vld [vmem:[#allocation7 + $0xd8] sm:$0xf]
      %v3030 = vld [vmem:[#allocation7 + $0xdc] sm:$0xf]
      %v3031 = vld [vmem:[#allocation7 + $0xe0] sm:$0xf]
      %v3032 = vld [vmem:[#allocation7 + $0xe4] sm:$0xf]
      %v3033 = vld [vmem:[#allocation7 + $0xe8] sm:$0xf]
      %v3034 = vld [vmem:[#allocation7 + $0xec] sm:$0xf]
      %v3035 = vld [vmem:[#allocation7 + $0xf0] sm:$0xf]
      %v3036 = vld [vmem:[#allocation7 + $0xf4] sm:$0xf]
      %v3037 = vld [vmem:[#allocation7 + $0xf8] sm:$0xf]
      %v3038 = vld [vmem:[#allocation7 + $0xfc] sm:$0xf]
      %v3039 = vld [vmem:[#allocation7 + $0x100] sm:$0xf]
      %v3040 = vld [vmem:[#allocation7 + $0x104] sm:$0xf]
      %v3041 = vld [vmem:[#allocation7 + $0x108] sm:$0xf]
      %v3042 = vld [vmem:[#allocation7 + $0x10c] sm:$0xf]
      %v3043 = vld [vmem:[#allocation7 + $0x110] sm:$0xf]
      %v3044 = vld [vmem:[#allocation7 + $0x114] sm:$0xf]
      %v3045 = vld [vmem:[#allocation7 + $0x118] sm:$0xf]
      %v3046 = vld [vmem:[#allocation7 + $0x11c] sm:$0xf]
      %v3047 = vld [vmem:[#allocation7 + $0x120] sm:$0xf]
      %v3048 = vld [vmem:[#allocation7 + $0x124] sm:$0xf]
      %v3049 = vld [vmem:[#allocation7 + $0x128] sm:$0xf]
      %v3050 = vld [vmem:[#allocation7 + $0x12c] sm:$0xf]
      %v3051 = vld [vmem:[#allocation7 + $0x130] sm:$0xf]
      %v3052 = vld [vmem:[#allocation7 + $0x134] sm:$0xf]
      %v3053 = vld [vmem:[#allocation7 + $0x138] sm:$0xf]
      %v3054 = vld [vmem:[#allocation7 + $0x13c] sm:$0xf]
      %v3055 = vld [vmem:[#allocation7 + $0x140] sm:$0xf]
      %v3056 = vld [vmem:[#allocation7 + $0x144] sm:$0xf]
      %v3057 = vld [vmem:[#allocation7 + $0x148] sm:$0xf]
      %v3058 = vld [vmem:[#allocation7 + $0x14c] sm:$0xf]
      %v3059 = vld [vmem:[#allocation7 + $0x150] sm:$0xf]
      %v3060 = vld [vmem:[#allocation7 + $0x154] sm:$0xf]
      %v3061 = vld [vmem:[#allocation7 + $0x158] sm:$0xf]
      %v3062 = vld [vmem:[#allocation7 + $0x15c] sm:$0xf]
      %v3063 = vld [vmem:[#allocation7 + $0x160] sm:$0xf]
      %v3064 = vld [vmem:[#allocation7 + $0x164] sm:$0xf]
      %v3065 = vld [vmem:[#allocation7 + $0x168] sm:$0xf]
      %v3066 = vld [vmem:[#allocation7 + $0x16c] sm:$0xf]
      %v3067 = vld [vmem:[#allocation7 + $0x170] sm:$0xf]
      %v3068 = vld [vmem:[#allocation7 + $0x174] sm:$0xf]
      %v3069 = vld [vmem:[#allocation7 + $0x178] sm:$0xf]
      %v3070 = vld [vmem:[#allocation7 + $0x17c] sm:$0xf]
      %v3071 = vld [vmem:[#allocation7 + $0x180] sm:$0xf]
      %v3072 = vld [vmem:[#allocation7 + $0x184] sm:$0xf]
      %v3073 = vld [vmem:[#allocation7 + $0x188] sm:$0xf]
      %v3074 = vld [vmem:[#allocation7 + $0x18c] sm:$0xf]
      %v3075 = vld [vmem:[#allocation7 + $0x190] sm:$0xf]
      %v3076 = vld [vmem:[#allocation7 + $0x194] sm:$0xf]
      %v3077 = vld [vmem:[#allocation7 + $0x198] sm:$0xf]
      %v3078 = vld [vmem:[#allocation7 + $0x19c] sm:$0xf]
      %v3079 = vld [vmem:[#allocation7 + $0x1a0] sm:$0xf]
      %v3080 = vld [vmem:[#allocation7 + $0x1a4] sm:$0xf]
      %v3081 = vld [vmem:[#allocation7 + $0x1a8] sm:$0xf]
      %v3082 = vld [vmem:[#allocation7 + $0x1ac] sm:$0xf]
      %v3083 = vld [vmem:[#allocation7 + $0x1b0] sm:$0xf]
      %v3084 = vld [vmem:[#allocation7 + $0x1b4] sm:$0xf]
      %v3085 = vld [vmem:[#allocation7 + $0x1b8] sm:$0xf]
      %v3086 = vld [vmem:[#allocation7 + $0x1bc] sm:$0xf]
      %v3087 = vld [vmem:[#allocation7 + $0x1c0] sm:$0xf]
      %v3088 = vld [vmem:[#allocation7 + $0x1c4] sm:$0xf]
      %v3089 = vld [vmem:[#allocation7 + $0x1c8] sm:$0xf]
      %v3090 = vld [vmem:[#allocation7 + $0x1cc] sm:$0xf]
      %v3091 = vld [vmem:[#allocation7 + $0x1d0] sm:$0xf]
      %v3092 = vld [vmem:[#allocation7 + $0x1d4] sm:$0xf]
      %v3093 = vld [vmem:[#allocation7 + $0x1d8] sm:$0xf]
      %v3094 = vld [vmem:[#allocation7 + $0x1dc] sm:$0xf]
      %v3095 = vld [vmem:[#allocation7 + $0x1e0] sm:$0xf]
      %v3096 = vld [vmem:[#allocation7 + $0x1e4] sm:$0xf]
      %v3097 = vld [vmem:[#allocation7 + $0x1e8] sm:$0xf]
      %v3098 = vld [vmem:[#allocation7 + $0x1ec] sm:$0xf]
      %v3099 = vld [vmem:[#allocation7 + $0x1f0] sm:$0xf]
      %v3100 = vld [vmem:[#allocation7 + $0x1f4] sm:$0xf]
      %v3101 = vld [vmem:[#allocation7 + $0x1f8] sm:$0xf]
      %v3102 = vld [vmem:[#allocation7 + $0x1fc] sm:$0xf]
      %v3103 = vld [vmem:[#allocation10] sm:$0x1]
      %v3104 = vlaneseq
      %v3105 = vshrl.u32 %v3104, 7
      %v3106 = vsub.s32 0, %v3105
      %v3107 = vrot.slane %v3103, %v3106
      %v3236 = vunpack.c.l.b16 %v2975
      %v3237 = vunpack.c.l.b16 %v2976
      %v3238 = vunpack.c.l.b16 %v2977
      %v3239 = vunpack.c.l.b16 %v2978
      %v3240 = vunpack.c.l.b16 %v2979
      %v3241 = vunpack.c.l.b16 %v2980
      %v3242 = vunpack.c.l.b16 %v2981
      %v3243 = vunpack.c.l.b16 %v2982
      %v3244 = vunpack.c.l.b16 %v2983
      %v3245 = vunpack.c.l.b16 %v2984
      %v3246 = vunpack.c.l.b16 %v2985
      %v3247 = vunpack.c.l.b16 %v2986
      %v3248 = vunpack.c.l.b16 %v2987
      %v3249 = vunpack.c.l.b16 %v2988
      %v3250 = vunpack.c.l.b16 %v2989
      %v3251 = vunpack.c.l.b16 %v2990
      %v3252 = vunpack.c.l.b16 %v2991
      %v3253 = vunpack.c.l.b16 %v2992
      %v3254 = vunpack.c.l.b16 %v2993
      %v3255 = vunpack.c.l.b16 %v2994
      %v3256 = vunpack.c.l.b16 %v2995
      %v3257 = vunpack.c.l.b16 %v2996
      %v3258 = vunpack.c.l.b16 %v2997
      %v3259 = vunpack.c.l.b16 %v2998
      %v3260 = vunpack.c.l.b16 %v2999
      %v3261 = vunpack.c.l.b16 %v3000
      %v3262 = vunpack.c.l.b16 %v3001
      %v3263 = vunpack.c.l.b16 %v3002
      %v3264 = vunpack.c.l.b16 %v3003
      %v3265 = vunpack.c.l.b16 %v3004
      %v3266 = vunpack.c.l.b16 %v3005
      %v3267 = vunpack.c.l.b16 %v3006
      %v3268 = vunpack.c.l.b16 %v3007
      %v3269 = vunpack.c.l.b16 %v3008
      %v3270 = vunpack.c.l.b16 %v3009
      %v3271 = vunpack.c.l.b16 %v3010
      %v3272 = vunpack.c.l.b16 %v3011
      %v3273 = vunpack.c.l.b16 %v3012
      %v3274 = vunpack.c.l.b16 %v3013
      %v3275 = vunpack.c.l.b16 %v3014
      %v3276 = vunpack.c.l.b16 %v3015
      %v3277 = vunpack.c.l.b16 %v3016
      %v3278 = vunpack.c.l.b16 %v3017
      %v3279 = vunpack.c.l.b16 %v3018
      %v3280 = vunpack.c.l.b16 %v3019
      %v3281 = vunpack.c.l.b16 %v3020
      %v3282 = vunpack.c.l.b16 %v3021
      %v3283 = vunpack.c.l.b16 %v3022
      %v3284 = vunpack.c.l.b16 %v3023
      %v3285 = vunpack.c.l.b16 %v3024
      %v3286 = vunpack.c.l.b16 %v3025
      %v3287 = vunpack.c.l.b16 %v3026
      %v3288 = vunpack.c.l.b16 %v3027
      %v3289 = vunpack.c.l.b16 %v3028
      %v3290 = vunpack.c.l.b16 %v3029
      %v3291 = vunpack.c.l.b16 %v3030
      %v3292 = vunpack.c.l.b16 %v3031
      %v3293 = vunpack.c.l.b16 %v3032
      %v3294 = vunpack.c.l.b16 %v3033
      %v3295 = vunpack.c.l.b16 %v3034
      %v3296 = vunpack.c.l.b16 %v3035
      %v3297 = vunpack.c.l.b16 %v3036
      %v3298 = vunpack.c.l.b16 %v3037
      %v3299 = vunpack.c.l.b16 %v3038
      %v3300 = vunpack.c.l.b16 %v3039
      %v3301 = vunpack.c.l.b16 %v3040
      %v3302 = vunpack.c.l.b16 %v3041
      %v3303 = vunpack.c.l.b16 %v3042
      %v3304 = vunpack.c.l.b16 %v3043
      %v3305 = vunpack.c.l.b16 %v3044
      %v3306 = vunpack.c.l.b16 %v3045
      %v3307 = vunpack.c.l.b16 %v3046
      %v3308 = vunpack.c.l.b16 %v3047
      %v3309 = vunpack.c.l.b16 %v3048
      %v3310 = vunpack.c.l.b16 %v3049
      %v3311 = vunpack.c.l.b16 %v3050
      %v3312 = vunpack.c.l.b16 %v3051
      %v3313 = vunpack.c.l.b16 %v3052
      %v3314 = vunpack.c.l.b16 %v3053
      %v3315 = vunpack.c.l.b16 %v3054
      %v3316 = vunpack.c.l.b16 %v3055
      %v3317 = vunpack.c.l.b16 %v3056
      %v3318 = vunpack.c.l.b16 %v3057
      %v3319 = vunpack.c.l.b16 %v3058
      %v3320 = vunpack.c.l.b16 %v3059
      %v3321 = vunpack.c.l.b16 %v3060
      %v3322 = vunpack.c.l.b16 %v3061
      %v3323 = vunpack.c.l.b16 %v3062
      %v3324 = vunpack.c.l.b16 %v3063
      %v3325 = vunpack.c.l.b16 %v3064
      %v3326 = vunpack.c.l.b16 %v3065
      %v3327 = vunpack.c.l.b16 %v3066
      %v3328 = vunpack.c.l.b16 %v3067
      %v3329 = vunpack.c.l.b16 %v3068
      %v3330 = vunpack.c.l.b16 %v3069
      %v3331 = vunpack.c.l.b16 %v3070
      %v3332 = vunpack.c.l.b16 %v3071
      %v3333 = vunpack.c.l.b16 %v3072
      %v3334 = vunpack.c.l.b16 %v3073
      %v3335 = vunpack.c.l.b16 %v3074
      %v3336 = vunpack.c.l.b16 %v3075
      %v3337 = vunpack.c.l.b16 %v3076
      %v3338 = vunpack.c.l.b16 %v3077
      %v3339 = vunpack.c.l.b16 %v3078
      %v3340 = vunpack.c.l.b16 %v3079
      %v3341 = vunpack.c.l.b16 %v3080
      %v3342 = vunpack.c.l.b16 %v3081
      %v3343 = vunpack.c.l.b16 %v3082
      %v3344 = vunpack.c.l.b16 %v3083
      %v3345 = vunpack.c.l.b16 %v3084
      %v3346 = vunpack.c.l.b16 %v3085
      %v3347 = vunpack.c.l.b16 %v3086
      %v3348 = vunpack.c.l.b16 %v3087
      %v3349 = vunpack.c.l.b16 %v3088
      %v3350 = vunpack.c.l.b16 %v3089
      %v3351 = vunpack.c.l.b16 %v3090
      %v3352 = vunpack.c.l.b16 %v3091
      %v3353 = vunpack.c.l.b16 %v3092
      %v3354 = vunpack.c.l.b16 %v3093
      %v3355 = vunpack.c.l.b16 %v3094
      %v3356 = vunpack.c.l.b16 %v3095
      %v3357 = vunpack.c.l.b16 %v3096
      %v3358 = vunpack.c.l.b16 %v3097
      %v3359 = vunpack.c.l.b16 %v3098
      %v3360 = vunpack.c.l.b16 %v3099
      %v3361 = vunpack.c.l.b16 %v3100
      %v3362 = vunpack.c.l.b16 %v3101
      %v3363 = vunpack.c.l.b16 %v3102
      %v3364 = vpack.c.b16 %v3237, %v3236
      %v3365 = vpack.c.b16 %v3239, %v3238
      %v3366 = vpack.c.b16 %v3241, %v3240
      %v3367 = vpack.c.b16 %v3243, %v3242
      %v3368 = vpack.c.b16 %v3245, %v3244
      %v3369 = vpack.c.b16 %v3247, %v3246
      %v3370 = vpack.c.b16 %v3249, %v3248
      %v3371 = vpack.c.b16 %v3251, %v3250
      %v3372 = vpack.c.b16 %v3253, %v3252
      %v3373 = vpack.c.b16 %v3255, %v3254
      %v3374 = vpack.c.b16 %v3257, %v3256
      %v3375 = vpack.c.b16 %v3259, %v3258
      %v3376 = vpack.c.b16 %v3261, %v3260
      %v3377 = vpack.c.b16 %v3263, %v3262
      %v3378 = vpack.c.b16 %v3265, %v3264
      %v3379 = vpack.c.b16 %v3267, %v3266
      %v3380 = vpack.c.b16 %v3269, %v3268
      %v3381 = vpack.c.b16 %v3271, %v3270
      %v3382 = vpack.c.b16 %v3273, %v3272
      %v3383 = vpack.c.b16 %v3275, %v3274
      %v3384 = vpack.c.b16 %v3277, %v3276
      %v3385 = vpack.c.b16 %v3279, %v3278
      %v3386 = vpack.c.b16 %v3281, %v3280
      %v3387 = vpack.c.b16 %v3283, %v3282
      %v3388 = vpack.c.b16 %v3285, %v3284
      %v3389 = vpack.c.b16 %v3287, %v3286
      %v3390 = vpack.c.b16 %v3289, %v3288
      %v3391 = vpack.c.b16 %v3291, %v3290
      %v3392 = vpack.c.b16 %v3293, %v3292
      %v3393 = vpack.c.b16 %v3295, %v3294
      %v3394 = vpack.c.b16 %v3297, %v3296
      %v3395 = vpack.c.b16 %v3299, %v3298
      %v3396 = vpack.c.b16 %v3301, %v3300
      %v3397 = vpack.c.b16 %v3303, %v3302
      %v3398 = vpack.c.b16 %v3305, %v3304
      %v3399 = vpack.c.b16 %v3307, %v3306
      %v3400 = vpack.c.b16 %v3309, %v3308
      %v3401 = vpack.c.b16 %v3311, %v3310
      %v3402 = vpack.c.b16 %v3313, %v3312
      %v3403 = vpack.c.b16 %v3315, %v3314
      %v3404 = vpack.c.b16 %v3317, %v3316
      %v3405 = vpack.c.b16 %v3319, %v3318
      %v3406 = vpack.c.b16 %v3321, %v3320
      %v3407 = vpack.c.b16 %v3323, %v3322
      %v3408 = vpack.c.b16 %v3325, %v3324
      %v3409 = vpack.c.b16 %v3327, %v3326
      %v3410 = vpack.c.b16 %v3329, %v3328
      %v3411 = vpack.c.b16 %v3331, %v3330
      %v3412 = vpack.c.b16 %v3333, %v3332
      %v3413 = vpack.c.b16 %v3335, %v3334
      %v3414 = vpack.c.b16 %v3337, %v3336
      %v3415 = vpack.c.b16 %v3339, %v3338
      %v3416 = vpack.c.b16 %v3341, %v3340
      %v3417 = vpack.c.b16 %v3343, %v3342
      %v3418 = vpack.c.b16 %v3345, %v3344
      %v3419 = vpack.c.b16 %v3347, %v3346
      %v3420 = vpack.c.b16 %v3349, %v3348
      %v3421 = vpack.c.b16 %v3351, %v3350
      %v3422 = vpack.c.b16 %v3353, %v3352
      %v3423 = vpack.c.b16 %v3355, %v3354
      %v3424 = vpack.c.b16 %v3357, %v3356
      %v3425 = vpack.c.b16 %v3359, %v3358
      %v3426 = vpack.c.b16 %v3361, %v3360
      %v3427 = vpack.c.b16 %v3363, %v3362
      %3492 = vmatprep.subr.bf16.mxu0 0
      %3493 = vmatpush1.bf16.msra.mxu0 %v3364
      %3494 = vmatprep.subr.bf16.mxu0 0
      %3495 = vmatpush1.bf16.msra.mxu0 %v3365
      %3496 = vmatprep.subr.bf16.mxu0 0
      %3497 = vmatpush1.bf16.msra.mxu0 %v3366
      %3498 = vmatprep.subr.bf16.mxu0 0
      %3499 = vmatpush1.bf16.msra.mxu0 %v3367
      %3500 = vmatprep.subr.bf16.mxu0 0
      %3501 = vmatpush1.bf16.msra.mxu0 %v3368
      %3502 = vmatprep.subr.bf16.mxu0 0
      %3503 = vmatpush1.bf16.msra.mxu0 %v3369
      %3504 = vmatprep.subr.bf16.mxu0 0
      %3505 = vmatpush1.bf16.msra.mxu0 %v3370
      %3506 = vmatprep.subr.bf16.mxu0 0
      %3507 = vmatpush1.bf16.msra.mxu0 %v3371
      %3508 = vmatprep.subr.bf16.mxu0 0
      %3509 = vmatpush1.bf16.msra.mxu0 %v3372
      %3510 = vmatprep.subr.bf16.mxu0 0
      %3511 = vmatpush1.bf16.msra.mxu0 %v3373
      %3512 = vmatprep.subr.bf16.mxu0 0
      %3513 = vmatpush1.bf16.msra.mxu0 %v3374
      %3514 = vmatprep.subr.bf16.mxu0 0
      %3515 = vmatpush1.bf16.msra.mxu0 %v3375
      %3516 = vmatprep.subr.bf16.mxu0 0
      %3517 = vmatpush1.bf16.msra.mxu0 %v3376
      %3518 = vmatprep.subr.bf16.mxu0 0
      %3519 = vmatpush1.bf16.msra.mxu0 %v3377
      %3520 = vmatprep.subr.bf16.mxu0 0
      %3521 = vmatpush1.bf16.msra.mxu0 %v3378
      %3522 = vmatprep.subr.bf16.mxu0 0
      %3523 = vmatpush1.bf16.msra.mxu0 %v3379
      %3524 = vmatprep.mubr.bf16.mxu0 %v2968
      %3525 = vmatmul.mubr.bf16.gmra.mrb[0].mxu0 %v2967
      %v3526 = vpop.f32.mrb[0].mxu0
      %v3527 = vadd.f32 %v3107, %v3526
      %v3528 = vpop.f32.mrb[0].mxu0
      %v3529 = vpop.f32.mrb[0].mxu0
      %v3530 = vpop.f32.mrb[0].mxu0
      %3531 = vdwg.mxu0
      %3532 = vmatprep.subr.bf16.mxu0 0
      %3533 = vmatpush1.bf16.msra.mxu0 %v3380
      %3534 = vmatprep.subr.bf16.mxu0 0
      %3535 = vmatpush1.bf16.msra.mxu0 %v3381
      %3536 = vmatprep.subr.bf16.mxu0 0
      %3537 = vmatpush1.bf16.msra.mxu0 %v3382
      %3538 = vmatprep.subr.bf16.mxu0 0
      %3539 = vmatpush1.bf16.msra.mxu0 %v3383
      %3540 = vmatprep.subr.bf16.mxu0 0
      %3541 = vmatpush1.bf16.msra.mxu0 %v3384
      %3542 = vmatprep.subr.bf16.mxu0 0
      %3543 = vmatpush1.bf16.msra.mxu0 %v3385
      %3544 = vmatprep.subr.bf16.mxu0 0
      %3545 = vmatpush1.bf16.msra.mxu0 %v3386
      %3546 = vmatprep.subr.bf16.mxu0 0
      %3547 = vmatpush1.bf16.msra.mxu0 %v3387
      %3548 = vmatprep.subr.bf16.mxu0 0
      %3549 = vmatpush1.bf16.msra.mxu0 %v3388
      %3550 = vmatprep.subr.bf16.mxu0 0
      %3551 = vmatpush1.bf16.msra.mxu0 %v3389
      %3552 = vmatprep.subr.bf16.mxu0 0
      %3553 = vmatpush1.bf16.msra.mxu0 %v3390
      %3554 = vmatprep.subr.bf16.mxu0 0
      %3555 = vmatpush1.bf16.msra.mxu0 %v3391
      %3556 = vmatprep.subr.bf16.mxu0 0
      %3557 = vmatpush1.bf16.msra.mxu0 %v3392
      %3558 = vmatprep.subr.bf16.mxu0 0
      %3559 = vmatpush1.bf16.msra.mxu0 %v3393
      %3560 = vmatprep.subr.bf16.mxu0 0
      %3561 = vmatpush1.bf16.msra.mxu0 %v3394
      %3562 = vmatprep.subr.bf16.mxu0 0
      %3563 = vmatpush1.bf16.msra.mxu0 %v3395
      %3564 = vmatprep.mubr.bf16.mxu0 %v2970
      %3565 = vmatmul.mubr.bf16.gmra.mrb[0].mxu0 %v2969
      %v3566 = vpop.f32.mrb[0].mxu0
      %v3567 = vadd.f32 %v3527, %v3566
      %v3568 = vpop.f32.mrb[0].mxu0
      %v3569 = vpop.f32.mrb[0].mxu0
      %v3570 = vpop.f32.mrb[0].mxu0
      %3571 = vdwg.mxu0
      %3572 = vmatprep.subr.bf16.mxu0 0
      %3573 = vmatpush1.bf16.msra.mxu0 %v3396
      %3574 = vmatprep.subr.bf16.mxu0 0
      %3575 = vmatpush1.bf16.msra.mxu0 %v3397
      %3576 = vmatprep.subr.bf16.mxu0 0
      %3577 = vmatpush1.bf16.msra.mxu0 %v3398
      %3578 = vmatprep.subr.bf16.mxu0 0
      %3579 = vmatpush1.bf16.msra.mxu0 %v3399
      %3580 = vmatprep.subr.bf16.mxu0 0
      %3581 = vmatpush1.bf16.msra.mxu0 %v3400
      %3582 = vmatprep.subr.bf16.mxu0 0
      %3583 = vmatpush1.bf16.msra.mxu0 %v3401
      %3584 = vmatprep.subr.bf16.mxu0 0
      %3585 = vmatpush1.bf16.msra.mxu0 %v3402
      %3586 = vmatprep.subr.bf16.mxu0 0
      %3587 = vmatpush1.bf16.msra.mxu0 %v3403
      %3588 = vmatprep.subr.bf16.mxu0 0
      %3589 = vmatpush1.bf16.msra.mxu0 %v3404
      %3590 = vmatprep.subr.bf16.mxu0 0
      %3591 = vmatpush1.bf16.msra.mxu0 %v3405
      %3592 = vmatprep.subr.bf16.mxu0 0
      %3593 = vmatpush1.bf16.msra.mxu0 %v3406
      %3594 = vmatprep.subr.bf16.mxu0 0
      %3595 = vmatpush1.bf16.msra.mxu0 %v3407
      %3596 = vmatprep.subr.bf16.mxu0 0
      %3597 = vmatpush1.bf16.msra.mxu0 %v3408
      %3598 = vmatprep.subr.bf16.mxu0 0
      %3599 = vmatpush1.bf16.msra.mxu0 %v3409
      %3600 = vmatprep.subr.bf16.mxu0 0
      %3601 = vmatpush1.bf16.msra.mxu0 %v3410
      %3602 = vmatprep.subr.bf16.mxu0 0
      %3603 = vmatpush1.bf16.msra.mxu0 %v3411
      %3604 = vmatprep.mubr.bf16.mxu0 %v2972
      %3605 = vmatmul.mubr.bf16.gmra.mrb[0].mxu0 %v2971
      %v3606 = vpop.f32.mrb[0].mxu0
      %v3607 = vadd.f32 %v3567, %v3606
      %v3608 = vpop.f32.mrb[0].mxu0
      %v3609 = vpop.f32.mrb[0].mxu0
      %v3610 = vpop.f32.mrb[0].mxu0
      %3611 = vdwg.mxu0
      %3612 = vmatprep.subr.bf16.mxu0 0
      %3613 = vmatpush1.bf16.msra.mxu0 %v3412
      %3614 = vmatprep.subr.bf16.mxu0 0
      %3615 = vmatpush1.bf16.msra.mxu0 %v3413
      %3616 = vmatprep.subr.bf16.mxu0 0
      %3617 = vmatpush1.bf16.msra.mxu0 %v3414
      %3618 = vmatprep.subr.bf16.mxu0 0
      %3619 = vmatpush1.bf16.msra.mxu0 %v3415
      %3620 = vmatprep.subr.bf16.mxu0 0
      %3621 = vmatpush1.bf16.msra.mxu0 %v3416
      %3622 = vmatprep.subr.bf16.mxu0 0
      %3623 = vmatpush1.bf16.msra.mxu0 %v3417
      %3624 = vmatprep.subr.bf16.mxu0 0
      %3625 = vmatpush1.bf16.msra.mxu0 %v3418
      %3626 = vmatprep.subr.bf16.mxu0 0
      %3627 = vmatpush1.bf16.msra.mxu0 %v3419
      %3628 = vmatprep.subr.bf16.mxu0 0
      %3629 = vmatpush1.bf16.msra.mxu0 %v3420
      %3630 = vmatprep.subr.bf16.mxu0 0
      %3631 = vmatpush1.bf16.msra.mxu0 %v3421
      %3632 = vmatprep.subr.bf16.mxu0 0
      %3633 = vmatpush1.bf16.msra.mxu0 %v3422
      %3634 = vmatprep.subr.bf16.mxu0 0
      %3635 = vmatpush1.bf16.msra.mxu0 %v3423
      %3636 = vmatprep.subr.bf16.mxu0 0
      %3637 = vmatpush1.bf16.msra.mxu0 %v3424
      %3638 = vmatprep.subr.bf16.mxu0 0
      %3639 = vmatpush1.bf16.msra.mxu0 %v3425
      %3640 = vmatprep.subr.bf16.mxu0 0
      %3641 = vmatpush1.bf16.msra.mxu0 %v3426
      %3642 = vmatprep.subr.bf16.mxu0 0
      %3643 = vmatpush1.bf16.msra.mxu0 %v3427
      %3644 = vmatprep.mubr.bf16.mxu0 %v2974
      %3645 = vmatmul.mubr.bf16.gmra.mrb[0].mxu0 %v2973
      %v3646 = vpop.f32.mrb[0].mxu0
      %v3647 = vadd.f32 %v3607, %v3646
      %v3648 = vpop.f32.mrb[0].mxu0
      %v3649 = vpop.f32.mrb[0].mxu0
      %v3650 = vpop.f32.mrb[0].mxu0
      %3651 = vdwg.mxu0
      %v3652 = vmax.f32 %v3647, 0.0
      %v3653 = vld [vmem:[#allocation8] sm:$0xff]
      %v3654 = vld [vmem:[#allocation8 + $0x8] sm:$0xff]
      %v3655 = vld [vmem:[#allocation8 + $0x10] sm:$0xff]
      %v3656 = vld [vmem:[#allocation8 + $0x18] sm:$0xff]
      %v3657 = vld [vmem:[#allocation8 + $0x20] sm:$0xff]
      %v3658 = vld [vmem:[#allocation8 + $0x28] sm:$0xff]
      %v3659 = vld [vmem:[#allocation8 + $0x30] sm:$0xff]
      %v3660 = vld [vmem:[#allocation8 + $0x38] sm:$0xff]
      %v3661 = vld [vmem:[#allocation8 + $0x40] sm:$0xff]
      %v3662 = vld [vmem:[#allocation8 + $0x48] sm:$0xff]
      %v3663 = vld [vmem:[#allocation8 + $0x50] sm:$0xff]
      %v3664 = vld [vmem:[#allocation8 + $0x58] sm:$0xff]
      %v3665 = vld [vmem:[#allocation8 + $0x60] sm:$0xff]
      %v3666 = vld [vmem:[#allocation8 + $0x68] sm:$0xff]
      %v3667 = vld [vmem:[#allocation8 + $0x70] sm:$0xff]
      %v3668 = vld [vmem:[#allocation8 + $0x78] sm:$0xff]
      %v3669 = vld [vmem:[#allocation11] sm:$0xff]
      %v3670 = vld [vmem:[#allocation8 + $0x80] sm:$0xff]
      %v3671 = vld [vmem:[#allocation8 + $0x88] sm:$0xff]
      %vm3672 = vcmask 130048
      %v3674 = vsel %vm3672, %v3669, 0
      %3676 = vmatprep.subr.mxu0 0.0
      %3677 = vmatpush1.msra.mxu0 %v3670
      %3678 = vmatprep.subr.mxu0 0.0
      %3679 = vmatpush1.msra.mxu0 %v3671
      %3680 = vmatprep.subr.mxu0 0.0
      %3681 = vmatpush1.msra.mxu0 0.0
      %3682 = vmatprep.subr.mxu0 0.0
      %3683 = vmatpush1.msra.mxu0 0.0
      %3684 = vmatprep.subr.mxu0 0.0
      %3685 = vmatpush1.msra.mxu0 0.0
      %3686 = vmatprep.subr.mxu0 0.0
      %3687 = vmatpush1.msra.mxu0 0.0
      %3688 = vmatprep.subr.mxu0 0.0
      %3689 = vmatpush1.msra.mxu0 0.0
      %3690 = vmatprep.subr.mxu0 0.0
      %3691 = vmatpush1.msra.mxu0 0.0
      %3692 = vmatprep.subr.mxu0 0.0
      %3693 = vmatpush1.msra.mxu0 0.0
      %3694 = vmatprep.subr.mxu0 0.0
      %3695 = vmatpush1.msra.mxu0 0.0
      %3696 = vmatprep.subr.mxu0 0.0
      %3697 = vmatpush1.msra.mxu0 0.0
      %3698 = vmatprep.subr.mxu0 0.0
      %3699 = vmatpush1.msra.mxu0 0.0
      %3700 = vmatprep.subr.mxu0 0.0
      %3701 = vmatpush1.msra.mxu0 0.0
      %3702 = vmatprep.subr.mxu0 0.0
      %3703 = vmatpush1.msra.mxu0 0.0
      %3704 = vmatprep.subr.mxu0 0.0
      %3705 = vmatpush1.msra.mxu0 0.0
      %3706 = vmatprep.subr.mxu0 0.0
      %3707 = vmatpush1.msra.mxu0 0.0
      %3708 = vmatprep.subr.mxu0 0.0
      %3709 = vmatpush1.msra.mxu0 0.0
      %3710 = vmatprep.subr.mxu0 0.0
      %3711 = vmatpush1.msra.mxu0 0.0
      %3712 = vmatprep.subr.mxu0 0.0
      %3713 = vmatpush1.msra.mxu0 0.0
      %3714 = vmatprep.subr.mxu0 0.0
      %3715 = vmatpush1.msra.mxu0 0.0
      %3716 = vmatprep.subr.mxu0 0.0
      %3717 = vmatpush1.msra.mxu0 0.0
      %3718 = vmatprep.subr.mxu0 0.0
      %3719 = vmatpush1.msra.mxu0 0.0
      %3720 = vmatprep.subr.mxu0 0.0
      %3721 = vmatpush1.msra.mxu0 0.0
      %3722 = vmatprep.subr.mxu0 0.0
      %3723 = vmatpush1.msra.mxu0 0.0
      %3724 = vmatprep.subr.mxu0 0.0
      %3725 = vmatpush1.msra.mxu0 0.0
      %3726 = vmatprep.subr.mxu0 0.0
      %3727 = vmatpush1.msra.mxu0 0.0
      %3728 = vmatprep.subr.mxu0 0.0
      %3729 = vmatpush1.msra.mxu0 0.0
      %3730 = vmatprep.subr.mxu0 0.0
      %3731 = vmatpush1.msra.mxu0 0.0
      %3732 = vmatprep.subr.mxu0 0.0
      %3733 = vmatpush1.msra.mxu0 0.0
      %3734 = vmatprep.subr.mxu0 0.0
      %3735 = vmatpush1.msra.mxu0 0.0
      %3736 = vmatprep.subr.mxu0 0.0
      %3737 = vmatpush1.msra.mxu0 0.0
      %3738 = vmatprep.subr.mxu0 0.0
      %3739 = vmatpush1.msra.mxu0 0.0
      %3740 = vmatprep.mubr.f32.mxu0 0.0
      %3741 = vmatmul.mubr.f32.gmra.mrb[0].mxu0 %v3674
      %v3742 = vpop.f32.mrb[0].mxu0
      %v3743 = vadd.f32 0.0, %v3742
      %v3744 = vpop.f32.mrb[0].mxu0
      %3745 = vdwg.mxu0
      %3746 = vmatprep.subr.mxu0 0.0
      %3747 = vmatpush1.msra.mxu0 %v3653
      %3748 = vmatprep.subr.mxu0 0.0
      %3749 = vmatpush1.msra.mxu0 %v3654
      %3750 = vmatprep.subr.mxu0 0.0
      %3751 = vmatpush1.msra.mxu0 %v3655
      %3752 = vmatprep.subr.mxu0 0.0
      %3753 = vmatpush1.msra.mxu0 %v3656
      %3754 = vmatprep.subr.mxu0 0.0
      %3755 = vmatpush1.msra.mxu0 %v3657
      %3756 = vmatprep.subr.mxu0 0.0
      %3757 = vmatpush1.msra.mxu0 %v3658
      %3758 = vmatprep.subr.mxu0 0.0
      %3759 = vmatpush1.msra.mxu0 %v3659
      %3760 = vmatprep.subr.mxu0 0.0
      %3761 = vmatpush1.msra.mxu0 %v3660
      %3762 = vmatprep.subr.mxu0 0.0
      %3763 = vmatpush1.msra.mxu0 %v3661
      %3764 = vmatprep.subr.mxu0 0.0
      %3765 = vmatpush1.msra.mxu0 %v3662
      %3766 = vmatprep.subr.mxu0 0.0
      %3767 = vmatpush1.msra.mxu0 %v3663
      %3768 = vmatprep.subr.mxu0 0.0
      %3769 = vmatpush1.msra.mxu0 %v3664
      %3770 = vmatprep.subr.mxu0 0.0
      %3771 = vmatpush1.msra.mxu0 %v3665
      %3772 = vmatprep.subr.mxu0 0.0
      %3773 = vmatpush1.msra.mxu0 %v3666
      %3774 = vmatprep.subr.mxu0 0.0
      %3775 = vmatpush1.msra.mxu0 %v3667
      %3776 = vmatprep.subr.mxu0 0.0
      %3777 = vmatpush1.msra.mxu0 %v3668
      %3778 = vmatprep.subr.mxu0 0.0
      %3779 = vmatpush1.msra.mxu0 0.0
      %3780 = vmatprep.subr.mxu0 0.0
      %3781 = vmatpush1.msra.mxu0 0.0
      %3782 = vmatprep.subr.mxu0 0.0
      %3783 = vmatpush1.msra.mxu0 0.0
      %3784 = vmatprep.subr.mxu0 0.0
      %3785 = vmatpush1.msra.mxu0 0.0
      %3786 = vmatprep.subr.mxu0 0.0
      %3787 = vmatpush1.msra.mxu0 0.0
      %3788 = vmatprep.subr.mxu0 0.0
      %3789 = vmatpush1.msra.mxu0 0.0
      %3790 = vmatprep.subr.mxu0 0.0
      %3791 = vmatpush1.msra.mxu0 0.0
      %3792 = vmatprep.subr.mxu0 0.0
      %3793 = vmatpush1.msra.mxu0 0.0
      %3794 = vmatprep.subr.mxu0 0.0
      %3795 = vmatpush1.msra.mxu0 0.0
      %3796 = vmatprep.subr.mxu0 0.0
      %3797 = vmatpush1.msra.mxu0 0.0
      %3798 = vmatprep.subr.mxu0 0.0
      %3799 = vmatpush1.msra.mxu0 0.0
      %3800 = vmatprep.subr.mxu0 0.0
      %3801 = vmatpush1.msra.mxu0 0.0
      %3802 = vmatprep.subr.mxu0 0.0
      %3803 = vmatpush1.msra.mxu0 0.0
      %3804 = vmatprep.subr.mxu0 0.0
      %3805 = vmatpush1.msra.mxu0 0.0
      %3806 = vmatprep.subr.mxu0 0.0
      %3807 = vmatpush1.msra.mxu0 0.0
      %3808 = vmatprep.subr.mxu0 0.0
      %3809 = vmatpush1.msra.mxu0 0.0
      %3810 = vmatprep.mubr.f32.mxu0 0.0
      %3811 = vmatmul.mubr.f32.gmra.mrb[0].mxu0 %v3652
      %v3812 = vpop.f32.mrb[0].mxu0
      %v3813 = vadd.f32 %v3743, %v3812
      %v3814 = vpop.f32.mrb[0].mxu0
      %3815 = vdwg.mxu0
      %v3816 = vld [vmem:[#allocation10 + $0x1] sm:$0x1]
      %v3817 = vlaneseq
      %v3818 = vshrl.u32 %v3817, 7
      %v3819 = vsub.s32 0, %v3818
      %v3820 = vrot.slane %v3816, %v3819
      %v3821 = vadd.f32 %v3813, %v3820
      %v3822 = vmax.f32 %v3821, 0.0
      %v3823 = vld [vmem:[#allocation8 + $0x90] sm:$0xff]
      %v3824 = vld [vmem:[#allocation8 + $0x98] sm:$0xff]
      %v3825 = vld [vmem:[#allocation8 + $0xa0] sm:$0xff]
      %v3826 = vld [vmem:[#allocation8 + $0xa8] sm:$0xff]
      %v3827 = vld [vmem:[#allocation8 + $0xb0] sm:$0xff]
      %v3828 = vld [vmem:[#allocation8 + $0xb8] sm:$0xff]
      %v3829 = vld [vmem:[#allocation8 + $0xc0] sm:$0xff]
      %v3830 = vld [vmem:[#allocation8 + $0xc8] sm:$0xff]
      %v3831 = vld [vmem:[#allocation8 + $0xd0] sm:$0xff]
      %v3832 = vld [vmem:[#allocation8 + $0xd8] sm:$0xff]
      %v3833 = vld [vmem:[#allocation8 + $0xe0] sm:$0xff]
      %v3834 = vld [vmem:[#allocation8 + $0xe8] sm:$0xff]
      %v3835 = vld [vmem:[#allocation8 + $0xf0] sm:$0xff]
      %v3836 = vld [vmem:[#allocation8 + $0xf8] sm:$0xff]
      %v3837 = vld [vmem:[#allocation8 + $0x100] sm:$0xff]
      %v3838 = vld [vmem:[#allocation8 + $0x108] sm:$0xff]
      %v3839 = vld [vmem:[#allocation10 + $0x2] sm:$0x1]
      %v3840 = vlaneseq
      %v3841 = vshrl.u32 %v3840, 7
      %v3842 = vsub.s32 0, %v3841
      %v3843 = vrot.slane %v3839, %v3842
      %3844 = vmatprep.subr.mxu0 0.0
      %3845 = vmatpush1.msra.mxu0 %v3823
      %3846 = vmatprep.subr.mxu0 0.0
      %3847 = vmatpush1.msra.mxu0 %v3824
      %3848 = vmatprep.subr.mxu0 0.0
      %3849 = vmatpush1.msra.mxu0 %v3825
      %3850 = vmatprep.subr.mxu0 0.0
      %3851 = vmatpush1.msra.mxu0 %v3826
      %3852 = vmatprep.subr.mxu0 0.0
      %3853 = vmatpush1.msra.mxu0 %v3827
      %3854 = vmatprep.subr.mxu0 0.0
      %3855 = vmatpush1.msra.mxu0 %v3828
      %3856 = vmatprep.subr.mxu0 0.0
      %3857 = vmatpush1.msra.mxu0 %v3829
      %3858 = vmatprep.subr.mxu0 0.0
      %3859 = vmatpush1.msra.mxu0 %v3830
      %3860 = vmatprep.subr.mxu0 0.0
      %3861 = vmatpush1.msra.mxu0 %v3831
      %3862 = vmatprep.subr.mxu0 0.0
      %3863 = vmatpush1.msra.mxu0 %v3832
      %3864 = vmatprep.subr.mxu0 0.0
      %3865 = vmatpush1.msra.mxu0 %v3833
      %3866 = vmatprep.subr.mxu0 0.0
      %3867 = vmatpush1.msra.mxu0 %v3834
      %3868 = vmatprep.subr.mxu0 0.0
      %3869 = vmatpush1.msra.mxu0 %v3835
      %3870 = vmatprep.subr.mxu0 0.0
      %3871 = vmatpush1.msra.mxu0 %v3836
      %3872 = vmatprep.subr.mxu0 0.0
      %3873 = vmatpush1.msra.mxu0 %v3837
      %3874 = vmatprep.subr.mxu0 0.0
      %3875 = vmatpush1.msra.mxu0 %v3838
      %3876 = vmatprep.subr.mxu0 0.0
      %3877 = vmatpush1.msra.mxu0 0.0
      %3878 = vmatprep.subr.mxu0 0.0
      %3879 = vmatpush1.msra.mxu0 0.0
      %3880 = vmatprep.subr.mxu0 0.0
      %3881 = vmatpush1.msra.mxu0 0.0
      %3882 = vmatprep.subr.mxu0 0.0
      %3883 = vmatpush1.msra.mxu0 0.0
      %3884 = vmatprep.subr.mxu0 0.0
      %3885 = vmatpush1.msra.mxu0 0.0
      %3886 = vmatprep.subr.mxu0 0.0
      %3887 = vmatpush1.msra.mxu0 0.0
      %3888 = vmatprep.subr.mxu0 0.0
      %3889 = vmatpush1.msra.mxu0 0.0
      %3890 = vmatprep.subr.mxu0 0.0
      %3891 = vmatpush1.msra.mxu0 0.0
      %3892 = vmatprep.subr.mxu0 0.0
      %3893 = vmatpush1.msra.mxu0 0.0
      %3894 = vmatprep.subr.mxu0 0.0
      %3895 = vmatpush1.msra.mxu0 0.0
      %3896 = vmatprep.subr.mxu0 0.0
      %3897 = vmatpush1.msra.mxu0 0.0
      %3898 = vmatprep.subr.mxu0 0.0
      %3899 = vmatpush1.msra.mxu0 0.0
      %3900 = vmatprep.subr.mxu0 0.0
      %3901 = vmatpush1.msra.mxu0 0.0
      %3902 = vmatprep.subr.mxu0 0.0
      %3903 = vmatpush1.msra.mxu0 0.0
      %3904 = vmatprep.subr.mxu0 0.0
      %3905 = vmatpush1.msra.mxu0 0.0
      %3906 = vmatprep.subr.mxu0 0.0
      %3907 = vmatpush1.msra.mxu0 0.0
      %3908 = vmatprep.mubr.f32.mxu0 0.0
      %3909 = vmatmul.mubr.f32.gmra.mrb[0].mxu0 %v3822
      %v3910 = vpop.f32.mrb[0].mxu0
      %v3911 = vadd.f32 %v3843, %v3910
      %v3912 = vpop.f32.mrb[0].mxu0
      %3913 = vdwg.mxu0
      %v3914 = vmax.f32 %v3911, 0.0
      %v3915 = vld [vmem:[#allocation8 + $0x110] sm:$0xff]
      %v3916 = vld [vmem:[#allocation8 + $0x118] sm:$0xff]
      %v3917 = vld [vmem:[#allocation8 + $0x120] sm:$0xff]
      %v3918 = vld [vmem:[#allocation8 + $0x128] sm:$0xff]
      %v3919 = vld [vmem:[#allocation8 + $0x130] sm:$0xff]
      %v3920 = vld [vmem:[#allocation8 + $0x138] sm:$0xff]
      %v3921 = vld [vmem:[#allocation8 + $0x140] sm:$0xff]
      %v3922 = vld [vmem:[#allocation8 + $0x148] sm:$0xff]
      %v3923 = vld [vmem:[#allocation8 + $0x150] sm:$0xff]
      %v3924 = vld [vmem:[#allocation8 + $0x158] sm:$0xff]
      %v3925 = vld [vmem:[#allocation8 + $0x160] sm:$0xff]
      %v3926 = vld [vmem:[#allocation8 + $0x168] sm:$0xff]
      %v3927 = vld [vmem:[#allocation8 + $0x170] sm:$0xff]
      %v3928 = vld [vmem:[#allocation8 + $0x178] sm:$0xff]
      %v3929 = vld [vmem:[#allocation8 + $0x180] sm:$0xff]
      %v3930 = vld [vmem:[#allocation8 + $0x188] sm:$0xff]
      %v3931 = vld [vmem:[#allocation10 + $0x3] sm:$0x1]
      %v3932 = vlaneseq
      %v3933 = vshrl.u32 %v3932, 7
      %v3934 = vsub.s32 0, %v3933
      %v3935 = vrot.slane %v3931, %v3934
      %3936 = vmatprep.subr.mxu0 0.0
      %3937 = vmatpush1.msra.mxu0 %v3915
      %3938 = vmatprep.subr.mxu0 0.0
      %3939 = vmatpush1.msra.mxu0 %v3916
      %3940 = vmatprep.subr.mxu0 0.0
      %3941 = vmatpush1.msra.mxu0 %v3917
      %3942 = vmatprep.subr.mxu0 0.0
      %3943 = vmatpush1.msra.mxu0 %v3918
      %3944 = vmatprep.subr.mxu0 0.0
      %3945 = vmatpush1.msra.mxu0 %v3919
      %3946 = vmatprep.subr.mxu0 0.0
      %3947 = vmatpush1.msra.mxu0 %v3920
      %3948 = vmatprep.subr.mxu0 0.0
      %3949 = vmatpush1.msra.mxu0 %v3921
      %3950 = vmatprep.subr.mxu0 0.0
      %3951 = vmatpush1.msra.mxu0 %v3922
      %3952 = vmatprep.subr.mxu0 0.0
      %3953 = vmatpush1.msra.mxu0 %v3923
      %3954 = vmatprep.subr.mxu0 0.0
      %3955 = vmatpush1.msra.mxu0 %v3924
      %3956 = vmatprep.subr.mxu0 0.0
      %3957 = vmatpush1.msra.mxu0 %v3925
      %3958 = vmatprep.subr.mxu0 0.0
      %3959 = vmatpush1.msra.mxu0 %v3926
      %3960 = vmatprep.subr.mxu0 0.0
      %3961 = vmatpush1.msra.mxu0 %v3927
      %3962 = vmatprep.subr.mxu0 0.0
      %3963 = vmatpush1.msra.mxu0 %v3928
      %3964 = vmatprep.subr.mxu0 0.0
      %3965 = vmatpush1.msra.mxu0 %v3929
      %3966 = vmatprep.subr.mxu0 0.0
      %3967 = vmatpush1.msra.mxu0 %v3930
      %3968 = vmatprep.subr.mxu0 0.0
      %3969 = vmatpush1.msra.mxu0 0.0
      %3970 = vmatprep.subr.mxu0 0.0
      %3971 = vmatpush1.msra.mxu0 0.0
      %3972 = vmatprep.subr.mxu0 0.0
      %3973 = vmatpush1.msra.mxu0 0.0
      %3974 = vmatprep.subr.mxu0 0.0
      %3975 = vmatpush1.msra.mxu0 0.0
      %3976 = vmatprep.subr.mxu0 0.0
      %3977 = vmatpush1.msra.mxu0 0.0
      %3978 = vmatprep.subr.mxu0 0.0
      %3979 = vmatpush1.msra.mxu0 0.0
      %3980 = vmatprep.subr.mxu0 0.0
      %3981 = vmatpush1.msra.mxu0 0.0
      %3982 = vmatprep.subr.mxu0 0.0
      %3983 = vmatpush1.msra.mxu0 0.0
      %3984 = vmatprep.subr.mxu0 0.0
      %3985 = vmatpush1.msra.mxu0 0.0
      %3986 = vmatprep.subr.mxu0 0.0
      %3987 = vmatpush1.msra.mxu0 0.0
      %3988 = vmatprep.subr.mxu0 0.0
      %3989 = vmatpush1.msra.mxu0 0.0
      %3990 = vmatprep.subr.mxu0 0.0
      %3991 = vmatpush1.msra.mxu0 0.0
      %3992 = vmatprep.subr.mxu0 0.0
      %3993 = vmatpush1.msra.mxu0 0.0
      %3994 = vmatprep.subr.mxu0 0.0
      %3995 = vmatpush1.msra.mxu0 0.0
      %3996 = vmatprep.subr.mxu0 0.0
      %3997 = vmatpush1.msra.mxu0 0.0
      %3998 = vmatprep.subr.mxu0 0.0
      %3999 = vmatpush1.msra.mxu0 0.0
      %4000 = vmatprep.mubr.f32.mxu0 0.0
      %4001 = vmatmul.mubr.f32.gmra.mrb[0].mxu0 %v3914
      %v4002 = vpop.f32.mrb[0].mxu0
      %v4003 = vadd.f32 %v3935, %v4002
      %v4004 = vpop.f32.mrb[0].mxu0
      %4005 = vdwg.mxu0
      %v4006 = vmax.f32 %v4003, 0.0
      %v4007 = vld [vmem:[#allocation8 + $0x190] sm:$0xff]
      %v4008 = vld [vmem:[#allocation8 + $0x198] sm:$0xff]
      %v4009 = vld [vmem:[#allocation8 + $0x1a0] sm:$0xff]
      %v4010 = vld [vmem:[#allocation8 + $0x1a8] sm:$0xff]
      %v4011 = vld [vmem:[#allocation8 + $0x1b0] sm:$0xff]
      %v4012 = vld [vmem:[#allocation8 + $0x1b8] sm:$0xff]
      %v4013 = vld [vmem:[#allocation8 + $0x1c0] sm:$0xff]
      %v4014 = vld [vmem:[#allocation8 + $0x1c8] sm:$0xff]
      %v4015 = vld [vmem:[#allocation8 + $0x1d0] sm:$0xff]
      %v4016 = vld [vmem:[#allocation8 + $0x1d8] sm:$0xff]
      %v4017 = vld [vmem:[#allocation8 + $0x1e0] sm:$0xff]
      %v4018 = vld [vmem:[#allocation8 + $0x1e8] sm:$0xff]
      %v4019 = vld [vmem:[#allocation8 + $0x1f0] sm:$0xff]
      %v4020 = vld [vmem:[#allocation8 + $0x1f8] sm:$0xff]
      %v4021 = vld [vmem:[#allocation8 + $0x200] sm:$0xff]
      %v4022 = vld [vmem:[#allocation8 + $0x208] sm:$0xff]
      %v4023 = vld [vmem:[#allocation10 + $0x4] sm:$0x1]
      %v4024 = vlaneseq
      %v4025 = vshrl.u32 %v4024, 7
      %v4026 = vsub.s32 0, %v4025
      %v4027 = vrot.slane %v4023, %v4026
      %4028 = vmatprep.subr.mxu0 0.0
      %4029 = vmatpush1.msra.mxu0 %v4007
      %4030 = vmatprep.subr.mxu0 0.0
      %4031 = vmatpush1.msra.mxu0 %v4008
      %4032 = vmatprep.subr.mxu0 0.0
      %4033 = vmatpush1.msra.mxu0 %v4009
      %4034 = vmatprep.subr.mxu0 0.0
      %4035 = vmatpush1.msra.mxu0 %v4010
      %4036 = vmatprep.subr.mxu0 0.0
      %4037 = vmatpush1.msra.mxu0 %v4011
      %4038 = vmatprep.subr.mxu0 0.0
      %4039 = vmatpush1.msra.mxu0 %v4012
      %4040 = vmatprep.subr.mxu0 0.0
      %4041 = vmatpush1.msra.mxu0 %v4013
      %4042 = vmatprep.subr.mxu0 0.0
      %4043 = vmatpush1.msra.mxu0 %v4014
      %4044 = vmatprep.subr.mxu0 0.0
      %4045 = vmatpush1.msra.mxu0 %v4015
      %4046 = vmatprep.subr.mxu0 0.0
      %4047 = vmatpush1.msra.mxu0 %v4016
      %4048 = vmatprep.subr.mxu0 0.0
      %4049 = vmatpush1.msra.mxu0 %v4017
      %4050 = vmatprep.subr.mxu0 0.0
      %4051 = vmatpush1.msra.mxu0 %v4018
      %4052 = vmatprep.subr.mxu0 0.0
      %4053 = vmatpush1.msra.mxu0 %v4019
      %4054 = vmatprep.subr.mxu0 0.0
      %4055 = vmatpush1.msra.mxu0 %v4020
      %4056 = vmatprep.subr.mxu0 0.0
      %4057 = vmatpush1.msra.mxu0 %v4021
      %4058 = vmatprep.subr.mxu0 0.0
      %4059 = vmatpush1.msra.mxu0 %v4022
      %4060 = vmatprep.subr.mxu0 0.0
      %4061 = vmatpush1.msra.mxu0 0.0
      %4062 = vmatprep.subr.mxu0 0.0
      %4063 = vmatpush1.msra.mxu0 0.0
      %4064 = vmatprep.subr.mxu0 0.0
      %4065 = vmatpush1.msra.mxu0 0.0
      %4066 = vmatprep.subr.mxu0 0.0
      %4067 = vmatpush1.msra.mxu0 0.0
      %4068 = vmatprep.subr.mxu0 0.0
      %4069 = vmatpush1.msra.mxu0 0.0
      %4070 = vmatprep.subr.mxu0 0.0
      %4071 = vmatpush1.msra.mxu0 0.0
      %4072 = vmatprep.subr.mxu0 0.0
      %4073 = vmatpush1.msra.mxu0 0.0
      %4074 = vmatprep.subr.mxu0 0.0
      %4075 = vmatpush1.msra.mxu0 0.0
      %4076 = vmatprep.subr.mxu0 0.0
      %4077 = vmatpush1.msra.mxu0 0.0
      %4078 = vmatprep.subr.mxu0 0.0
      %4079 = vmatpush1.msra.mxu0 0.0
      %4080 = vmatprep.subr.mxu0 0.0
      %4081 = vmatpush1.msra.mxu0 0.0
      %4082 = vmatprep.subr.mxu0 0.0
      %4083 = vmatpush1.msra.mxu0 0.0
      %4084 = vmatprep.subr.mxu0 0.0
      %4085 = vmatpush1.msra.mxu0 0.0
      %4086 = vmatprep.subr.mxu0 0.0
      %4087 = vmatpush1.msra.mxu0 0.0
      %4088 = vmatprep.subr.mxu0 0.0
      %4089 = vmatpush1.msra.mxu0 0.0
      %4090 = vmatprep.subr.mxu0 0.0
      %4091 = vmatpush1.msra.mxu0 0.0
      %4092 = vmatprep.mubr.f32.mxu0 0.0
      %4093 = vmatmul.mubr.f32.gmra.mrb[0].mxu0 %v4006
      %v4094 = vpop.f32.mrb[0].mxu0
      %v4095 = vadd.f32 %v4027, %v4094
      %v4096 = vpop.f32.mrb[0].mxu0
      %4097 = vdwg.mxu0
      %vm4098 = vcmask 15360
      %4099 = vst.msk [vmem:[%s6] sm:$0xff] %vm4098, %v4095
    $region57: #{tpu_custom_call.1} parent=1 // pred_fallthru
      _
    // Predicated region
    $region58: #{tpu_custom_call.1} parent=1 // pred_check
      _
    $region59: #{tpu_custom_call.1} parent=1 // pred_check_branch
      %4101 = sbr.rel (0) target = $region61
    $region60: #{tpu_custom_call.1} parent=1 // pred_region
      _
    $region61: #{tpu_custom_call.1} parent=1 // pred_fallthru
      _
    // Predicated region
    $region62: #{tpu_custom_call.1} parent=1 // pred_check
      _
    $region63: #{tpu_custom_call.1} parent=1 // pred_check_branch
      %4103 = sbr.rel (0) target = $region65
    $region64: #{tpu_custom_call.1} parent=1 // pred_region
      _
    $region65: #{tpu_custom_call.1} parent=1 // pred_fallthru
      _
    %4104 = vsyncpa [#allocation4], 1
    %4105 = vsyncpa [#allocation6], 1
    %4106 = vsyncpa [#allocation9], 1
    %4107 = vsyncpa [#allocation12], 1

</llo_original>
